<compile_context>
chip_gen: v5e
topology: v5e:2x2
jax: 0.10.0
libtpu: 0.0.40
codegen_flags: <defaults>
</compile_context>

<pallas_src>
import functools

import jax
import jax.numpy as jnp
from jax.experimental import pallas as pl
from jax.experimental.pallas import tpu as pltpu

# ---- model hyper-params (small, consistent with the module's structure) ----
N_EMBD = 128          # module uses 768; scaled down, divisible by n_head
N_HEAD = 4            # module uses 8
HEAD_SIZE = N_EMBD // N_HEAD
SEQ_LEN = 64          # <= block_size (512) in the module
BATCH = 2
LN_EPS = 1e-5         # PyTorch nn.LayerNorm default


def block_kernel(x_ref,
                 ln1g_ref, ln1b_ref,
                 wqkv_ref, wp_ref, bp_ref,
                 ln2g_ref, ln2b_ref,
                 w1_ref, b1_ref,
                 w2_ref, b2_ref,
                 o_ref, *, n_head):
    x = x_ref[...]                                   # (T, C) f32 — one batch element
    T, C = x.shape
    hs = C // n_head

    def layer_norm(v, g, b):
        mu = jnp.mean(v, axis=-1, keepdims=True)
        var = jnp.mean((v - mu) * (v - mu), axis=-1, keepdims=True)
        return (v - mu) * jax.lax.rsqrt(var + LN_EPS) * g + b

    # ---------------- self-attention branch ----------------
    x_ln = layer_norm(x, ln1g_ref[...], ln1b_ref[...]).astype(jnp.bfloat16)

    # Fused QKV projection (bf16 MXU operands, f32 accumulation).
    qkv = jnp.dot(x_ln, wqkv_ref[...],
                  preferred_element_type=jnp.float32).astype(jnp.bfloat16)  # (T, 3C)

    # 128-lane-aligned C-wide splits, then head-major rearrange so both attention
    # einsums have a LEADING batch (head) dimension.
    def head_major(sl):
        return pltpu.einshape("thd->htd", sl.reshape(T, n_head, hs))       # (H, T, hs)

    q = head_major(qkv[:, :C])
    k = head_major(qkv[:, C:2 * C])
    v = head_major(qkv[:, 2 * C:])

    # NOTE: the PyTorch Head scales by n_embd**-0.5 (not head_size**-0.5) — intentional.
    scale = 1.0 / (C ** 0.5)
    s = jnp.einsum("hqd,hkd->hqk", q, k,
                   preferred_element_type=jnp.float32) * scale             # (H, T, T)

    # (T, T) causal mask, broadcast over heads (at least one unmasked col per row,
    # so the -inf fill can never produce a fully-masked / NaN softmax row).
    row = jax.lax.broadcasted_iota(jnp.int32, (T, T), 0)
    col = jax.lax.broadcasted_iota(jnp.int32, (T, T), 1)
    s = jnp.where((row >= col)[None, :, :], s, -jnp.inf)

    s = s - jnp.max(s, axis=-1, keepdims=True)
    p = jnp.exp(s)
    p = p * pl.reciprocal(jnp.sum(p, axis=-1, keepdims=True), approx=True)

    ctx = jnp.einsum("hqk,hkd->hqd", p.astype(jnp.bfloat16), v,
                     preferred_element_type=jnp.float32)                   # (H, T, hs)
    sa = pltpu.einshape("htd->thd", ctx.astype(jnp.bfloat16)).reshape(T, C)
    sa = jnp.dot(sa, wp_ref[...], preferred_element_type=jnp.float32) + bp_ref[...]
    x1 = x + sa

    # ---------------- feed-forward branch ----------------
    x1_ln = layer_norm(x1, ln2g_ref[...], ln2b_ref[...]).astype(jnp.bfloat16)
    h1 = jnp.dot(x1_ln, w1_ref[...], preferred_element_type=jnp.float32) + b1_ref[...]
    h1 = jnp.maximum(h1, 0.0).astype(jnp.bfloat16)                         # ReLU
    ff = jnp.dot(h1, w2_ref[...], preferred_element_type=jnp.float32) + b2_ref[...]

    o_ref[...] = (x1 + ff).astype(o_ref.dtype)


def prepare_params(params):
    """One-time weight preparation (hoisted out of the forward pass).

    Fuses Q/K/V into a single (C, 3C) matrix and casts every matmul weight to
    bfloat16 (halves weight DMA bytes, native MXU fast path).  Biases / LayerNorm
    parameters stay f32.
    """
    wqkv = jnp.concatenate([params["wq"], params["wk"], params["wv"]],
                           axis=1).astype(jnp.bfloat16)
    return (
        params["ln1_g"], params["ln1_b"],
        wqkv,
        params["wp"].astype(jnp.bfloat16), params["bp"],
        params["ln2_g"], params["ln2_b"],
        params["w1"].astype(jnp.bfloat16), params["b1"],
        params["w2"].astype(jnp.bfloat16), params["b2"],
    )


@jax.jit
def block_forward(x, prepared):
    B, T, C = x.shape
    x2d = x.reshape(B * T, C)          # per-batch (T, C) row blocks for the grid

    def weight_spec(shape):
        nd = len(shape)
        # Grid-invariant block: constant index_map, DMA'd once and reused each step.
        # TODO(synk): pipeline_mode=pl.Buffered(1) here at real dims (see header).
        return pl.BlockSpec(shape, lambda b, _n=nd: (0,) * _n)

    act_spec = pl.BlockSpec((T, C), lambda b: (b, 0))

    kernel = functools.partial(block_kernel, n_head=N_HEAD)

    out2d = pl.pallas_call(
        kernel,
        out_shape=jax.ShapeDtypeStruct((B * T, C), x.dtype),
        grid_spec=pltpu.PrefetchScalarGridSpec(
            num_scalar_prefetch=0,
            grid=(B,),                           # one batch element per grid step
            in_specs=[act_spec] + [weight_spec(w.shape) for w in prepared],
            out_specs=act_spec,
        ),
        compiler_params=pltpu.CompilerParams(
            dimension_semantics=("parallel",),   # shard batch across TCs on v7x
            vmem_limit_bytes=32 * 1024 * 1024,   # raise v5e's 16 MiB scoped default
        ),
    )(x2d, *prepared)
    return out2d.reshape(B, T, C)


def init_params(key, n_embd=N_EMBD):
    ks = jax.random.split(key, 8)
    scale = 0.02
    return {
        "ln1_g": jnp.ones((1, n_embd), jnp.float32),
        "ln1_b": jnp.zeros((1, n_embd), jnp.float32),
        # per-head K/Q/V weights concatenated along the output dim -> (C, C)
        "wq": scale * jax.random.normal(ks[0], (n_embd, n_embd), jnp.float32),
        "wk": scale * jax.random.normal(ks[1], (n_embd, n_embd), jnp.float32),
        "wv": scale * jax.random.normal(ks[2], (n_embd, n_embd), jnp.float32),
        "wp": scale * jax.random.normal(ks[3], (n_embd, n_embd), jnp.float32),
        "bp": scale * jax.random.normal(ks[4], (1, n_embd), jnp.float32),
        "ln2_g": jnp.ones((1, n_embd), jnp.float32),
        "ln2_b": jnp.zeros((1, n_embd), jnp.float32),
        "w1": scale * jax.random.normal(ks[5], (n_embd, 4 * n_embd), jnp.float32),
        "b1": scale * jax.random.normal(ks[6], (1, 4 * n_embd), jnp.float32),
        "w2": scale * jax.random.normal(ks[7], (4 * n_embd, n_embd), jnp.float32),
        "b2": jnp.zeros((1, n_embd), jnp.float32),
    }


def block_reference(x, p):
    """Pure-JAX f32 reference mirroring the PyTorch Block.forward (eval mode)."""
    def ln(v, g, b):
        mu = jnp.mean(v, axis=-1, keepdims=True)
        var = jnp.mean((v - mu) ** 2, axis=-1, keepdims=True)
        return (v - mu) / jnp.sqrt(var + LN_EPS) * g + b

    B, T, C = x.shape
    xl = ln(x, p["ln1_g"], p["ln1_b"])
    q = (xl @ p["wq"]).reshape(B, T, N_HEAD, HEAD_SIZE).transpose(0, 2, 1, 3)
    k = (xl @ p["wk"]).reshape(B, T, N_HEAD, HEAD_SIZE).transpose(0, 2, 1, 3)
    v = (xl @ p["wv"]).reshape(B, T, N_HEAD, HEAD_SIZE).transpose(0, 2, 1, 3)
    s = jnp.einsum("bhtd,bhsd->bhts", q, k) * (C ** -0.5)
    mask = jnp.tril(jnp.ones((T, T), bool))
    s = jnp.where(mask, s, -jnp.inf)
    w = jax.nn.softmax(s, axis=-1)
    o = jnp.einsum("bhts,bhsd->bhtd", w, v).transpose(0, 2, 1, 3).reshape(B, T, C)
    sa = o @ p["wp"] + p["bp"]
    x1 = x + sa
    x1l = ln(x1, p["ln2_g"], p["ln2_b"])
    ff = jnp.maximum(x1l @ p["w1"] + p["b1"], 0.0) @ p["w2"] + p["b2"]
    return x1 + ff


if __name__ == "__main__":
    key = jax.random.PRNGKey(0)
    kx, kp = jax.random.split(key)
    x = jax.random.normal(kx, (BATCH, SEQ_LEN, N_EMBD), jnp.float32)
    params = init_params(kp)
    prepared = prepare_params(params)   # one-time weight prep (not per-forward)

    out = block_forward(x, prepared)
    out = jax.block_until_ready(out)

    ref = block_reference(x, params)
    assert out.shape == (BATCH, SEQ_LEN, N_EMBD)
    # bf16 matmul operands (f32 accumulation) + approx reciprocal vs. pure-f32
    # reference: expected max-abs error is O(1e-3); 2e-2 is comfortable.
    assert jnp.allclose(out, ref, atol=2e-2, rtol=2e-2), (
        float(jnp.max(jnp.abs(out - ref))))
    print("KERNEL_OK")
</pallas_src>

<mosaic_0001>
module attributes {stable_mosaic.version = 11 : i64} {
  func.func @block_kernel(%arg0: i32, %arg1: memref<64x128xf32, #tpu.memory_space<vmem>>, %arg2: memref<1x128xf32, #tpu.memory_space<vmem>>, %arg3: memref<1x128xf32, #tpu.memory_space<vmem>>, %arg4: memref<128x384xbf16, #tpu.memory_space<vmem>>, %arg5: memref<128x128xbf16, #tpu.memory_space<vmem>>, %arg6: memref<1x128xf32, #tpu.memory_space<vmem>>, %arg7: memref<1x128xf32, #tpu.memory_space<vmem>>, %arg8: memref<1x128xf32, #tpu.memory_space<vmem>>, %arg9: memref<128x512xbf16, #tpu.memory_space<vmem>>, %arg10: memref<1x512xf32, #tpu.memory_space<vmem>>, %arg11: memref<512x128xbf16, #tpu.memory_space<vmem>>, %arg12: memref<1x128xf32, #tpu.memory_space<vmem>>, %arg13: memref<64x128xf32, #tpu.memory_space<vmem>>) attributes {dimension_semantics = [#tpu.dimension_semantics<parallel>], iteration_bounds = array<i64: 2>, scalar_prefetch = 0 : i64, scratch_operands = 0 : i64, tpu.core_type = #tpu.core_type<tc>, window_params = [{transform_indices = @transform_0, window_bounds = array<i64: 64, 128>}, {pipeline_mode = #tpu.pipeline_mode<synchronous>, transform_indices = @transform_1, window_bounds = array<i64: 1, 128>}, {pipeline_mode = #tpu.pipeline_mode<synchronous>, transform_indices = @transform_2, window_bounds = array<i64: 1, 128>}, {pipeline_mode = #tpu.pipeline_mode<synchronous>, transform_indices = @transform_3, window_bounds = array<i64: 128, 384>}, {pipeline_mode = #tpu.pipeline_mode<synchronous>, transform_indices = @transform_4, window_bounds = array<i64: 128, 128>}, {pipeline_mode = #tpu.pipeline_mode<synchronous>, transform_indices = @transform_5, window_bounds = array<i64: 1, 128>}, {pipeline_mode = #tpu.pipeline_mode<synchronous>, transform_indices = @transform_6, window_bounds = array<i64: 1, 128>}, {pipeline_mode = #tpu.pipeline_mode<synchronous>, transform_indices = @transform_7, window_bounds = array<i64: 1, 128>}, {pipeline_mode = #tpu.pipeline_mode<synchronous>, transform_indices = @transform_8, window_bounds = array<i64: 128, 512>}, {pipeline_mode = #tpu.pipeline_mode<synchronous>, transform_indices = @transform_9, window_bounds = array<i64: 1, 512>}, {pipeline_mode = #tpu.pipeline_mode<synchronous>, transform_indices = @transform_10, window_bounds = array<i64: 512, 128>}, {pipeline_mode = #tpu.pipeline_mode<synchronous>, transform_indices = @transform_11, window_bounds = array<i64: 1, 128>}, {transform_indices = @transform_12, window_bounds = array<i64: 64, 128>}]} {
    %c0 = arith.constant 0 : index
    %c0_0 = arith.constant 0 : index
    %0 = vector.load %arg1[%c0, %c0_0] : memref<64x128xf32, #tpu.memory_space<vmem>>, vector<64x128xf32>
    %c0_1 = arith.constant 0 : index
    %c0_2 = arith.constant 0 : index
    %1 = vector.load %arg2[%c0_1, %c0_2] : memref<1x128xf32, #tpu.memory_space<vmem>>, vector<1x128xf32>
    %c0_3 = arith.constant 0 : index
    %c0_4 = arith.constant 0 : index
    %2 = vector.load %arg3[%c0_3, %c0_4] : memref<1x128xf32, #tpu.memory_space<vmem>>, vector<1x128xf32>
    %cst = arith.constant dense<0.000000e+00> : vector<64xf32>
    %3 = vector.multi_reduction <add>, %0, %cst [1] : vector<64x128xf32> to vector<64xf32>
    %4 = vector.shape_cast %3 : vector<64xf32> to vector<64x1xf32>
    %cst_5 = arith.constant 1.280000e+02 : f32
    %5 = vector.broadcast %cst_5 : f32 to vector<64x1xf32>
    %6 = arith.divf %4, %5 : vector<64x1xf32>
    %7 = vector.broadcast %6 : vector<64x1xf32> to vector<64x128xf32>
    %8 = arith.subf %0, %7 : vector<64x128xf32>
    %9 = vector.broadcast %6 : vector<64x1xf32> to vector<64x128xf32>
    %10 = arith.subf %0, %9 : vector<64x128xf32>
    %11 = arith.mulf %8, %10 : vector<64x128xf32>
    %cst_6 = arith.constant dense<0.000000e+00> : vector<64xf32>
    %12 = vector.multi_reduction <add>, %11, %cst_6 [1] : vector<64x128xf32> to vector<64xf32>
    %13 = vector.shape_cast %12 : vector<64xf32> to vector<64x1xf32>
    %cst_7 = arith.constant 1.280000e+02 : f32
    %14 = vector.broadcast %cst_7 : f32 to vector<64x1xf32>
    %15 = arith.divf %13, %14 : vector<64x1xf32>
    %16 = vector.broadcast %6 : vector<64x1xf32> to vector<64x128xf32>
    %17 = arith.subf %0, %16 : vector<64x128xf32>
    %cst_8 = arith.constant 9.99999974E-6 : f32
    %18 = vector.broadcast %cst_8 : f32 to vector<64x1xf32>
    %19 = arith.addf %15, %18 : vector<64x1xf32>
    %20 = math.rsqrt %19 : vector<64x1xf32>
    %21 = vector.broadcast %20 : vector<64x1xf32> to vector<64x128xf32>
    %22 = arith.mulf %17, %21 : vector<64x128xf32>
    %23 = vector.broadcast %1 : vector<1x128xf32> to vector<64x128xf32>
    %24 = arith.mulf %22, %23 : vector<64x128xf32>
    %25 = vector.broadcast %2 : vector<1x128xf32> to vector<64x128xf32>
    %26 = arith.addf %24, %25 : vector<64x128xf32>
    %27 = arith.truncf %26 : vector<64x128xf32> to vector<64x128xbf16>
    %c0_9 = arith.constant 0 : index
    %c0_10 = arith.constant 0 : index
    %28 = vector.load %arg4[%c0_9, %c0_10] : memref<128x384xbf16, #tpu.memory_space<vmem>>, vector<128x384xbf16>
    %cst_11 = arith.constant dense<0.000000e+00> : vector<64x384xf32>
    %29 = tpu.matmul %27, %28, %cst_11 {dimension_numbers = #tpu.dot_dimension_numbers<[1], [0], [0], [1], [0, 0, 1, 1], [], []>} : vector<64x128xbf16>, vector<128x384xbf16>, vector<64x384xf32> -> vector<64x384xf32>
    %30 = arith.truncf %29 : vector<64x384xf32> to vector<64x384xbf16>
    %31 = vector.extract_strided_slice %30 {offsets = [0, 0], sizes = [64, 128], strides = [1, 1]} : vector<64x384xbf16> to vector<64x128xbf16>
    %32 = vector.shape_cast %31 : vector<64x128xbf16> to vector<64x4x32xbf16>
    %33 = tpu.transpose %32, [1, 0, 2] : vector<64x4x32xbf16> -> vector<4x64x32xbf16>
    %34 = vector.extract_strided_slice %30 {offsets = [0, 128], sizes = [64, 128], strides = [1, 1]} : vector<64x384xbf16> to vector<64x128xbf16>
    %35 = vector.shape_cast %34 : vector<64x128xbf16> to vector<64x4x32xbf16>
    %36 = tpu.transpose %35, [1, 0, 2] : vector<64x4x32xbf16> -> vector<4x64x32xbf16>
    %37 = vector.extract_strided_slice %30 {offsets = [0, 256], sizes = [64, 128], strides = [1, 1]} : vector<64x384xbf16> to vector<64x128xbf16>
    %38 = vector.shape_cast %37 : vector<64x128xbf16> to vector<64x4x32xbf16>
    %39 = tpu.transpose %38, [1, 0, 2] : vector<64x4x32xbf16> -> vector<4x64x32xbf16>
    "tpu.trace_start"() <{level = 10 : i32, message = "hqd,hkd->hqk"}> : () -> ()
    %cst_12 = arith.constant dense<0.000000e+00> : vector<4x64x64xf32>
    %40 = tpu.matmul %33, %36, %cst_12 {dimension_numbers = #tpu.dot_dimension_numbers<[2], [2], [1], [1], [0, 0, 0, 1, 1, 1], [0], [0]>} : vector<4x64x32xbf16>, vector<4x64x32xbf16>, vector<4x64x64xf32> -> vector<4x64x64xf32>
    "tpu.trace_stop"() : () -> ()
    %cst_13 = arith.constant 0.0883883461 : f32
    %41 = vector.broadcast %cst_13 : f32 to vector<4x64x64xf32>
    %42 = arith.mulf %40, %41 : vector<4x64x64xf32>
    %43 = tpu.iota {dimensions = array<i32: 0>} : vector<64x64xi32>
    %44 = tpu.iota {dimensions = array<i32: 1>} : vector<64x64xi32>
    %45 = arith.cmpi sge, %43, %44 : vector<64x64xi32>
    %46 = vector.shape_cast %45 : vector<64x64xi1> to vector<1x64x64xi1>
    %cst_14 = arith.constant 0xFF800000 : f32
    %47 = vector.shape_cast %46 : vector<1x64x64xi1> to vector<1x64x64xi1>
    %48 = vector.broadcast %47 : vector<1x64x64xi1> to vector<4x64x64xi1>
    %49 = vector.broadcast %cst_14 : f32 to vector<4x64x64xf32>
    %50 = arith.select %48, %42, %49 : vector<4x64x64xi1>, vector<4x64x64xf32>
    %cst_15 = arith.constant dense<0xFF800000> : vector<4x64xf32>
    %51 = vector.multi_reduction <maximumf>, %50, %cst_15 [2] : vector<4x64x64xf32> to vector<4x64xf32>
    %52 = vector.shape_cast %51 : vector<4x64xf32> to vector<4x64x1xf32>
    %53 = vector.broadcast %52 : vector<4x64x1xf32> to vector<4x64x64xf32>
    %54 = arith.subf %50, %53 : vector<4x64x64xf32>
    %55 = math.exp %54 : vector<4x64x64xf32>
    %cst_16 = arith.constant dense<0.000000e+00> : vector<4x64xf32>
    %56 = vector.multi_reduction <add>, %55, %cst_16 [2] : vector<4x64x64xf32> to vector<4x64xf32>
    %57 = vector.shape_cast %56 : vector<4x64xf32> to vector<4x64x1xf32>
    %58 = tpu.reciprocal %57 {approx = true} : vector<4x64x1xf32> -> vector<4x64x1xf32>
    %59 = vector.broadcast %58 : vector<4x64x1xf32> to vector<4x64x64xf32>
    %60 = arith.mulf %55, %59 : vector<4x64x64xf32>
    %61 = arith.truncf %60 : vector<4x64x64xf32> to vector<4x64x64xbf16>
    "tpu.trace_start"() <{level = 10 : i32, message = "hqk,hkd->hqd"}> : () -> ()
    %cst_17 = arith.constant dense<0.000000e+00> : vector<4x64x32xf32>
    %62 = tpu.matmul %61, %39, %cst_17 {dimension_numbers = #tpu.dot_dimension_numbers<[2], [1], [1], [2], [0, 0, 0, 1, 1, 2], [0], [0]>} : vector<4x64x64xbf16>, vector<4x64x32xbf16>, vector<4x64x32xf32> -> vector<4x64x32xf32>
    "tpu.trace_stop"() : () -> ()
    %63 = arith.truncf %62 : vector<4x64x32xf32> to vector<4x64x32xbf16>
    %64 = tpu.transpose %63, [1, 0, 2] : vector<4x64x32xbf16> -> vector<64x4x32xbf16>
    %65 = vector.shape_cast %64 : vector<64x4x32xbf16> to vector<64x128xbf16>
    %c0_18 = arith.constant 0 : index
    %c0_19 = arith.constant 0 : index
    %66 = vector.load %arg5[%c0_18, %c0_19] : memref<128x128xbf16, #tpu.memory_space<vmem>>, vector<128x128xbf16>
    %cst_20 = arith.constant dense<0.000000e+00> : vector<64x128xf32>
    %67 = tpu.matmul %65, %66, %cst_20 {dimension_numbers = #tpu.dot_dimension_numbers<[1], [0], [0], [1], [0, 0, 1, 1], [], []>} : vector<64x128xbf16>, vector<128x128xbf16>, vector<64x128xf32> -> vector<64x128xf32>
    %c0_21 = arith.constant 0 : index
    %c0_22 = arith.constant 0 : index
    %68 = vector.load %arg6[%c0_21, %c0_22] : memref<1x128xf32, #tpu.memory_space<vmem>>, vector<1x128xf32>
    %69 = vector.broadcast %68 : vector<1x128xf32> to vector<64x128xf32>
    %70 = arith.addf %67, %69 : vector<64x128xf32>
    %71 = arith.addf %0, %70 : vector<64x128xf32>
    %c0_23 = arith.constant 0 : index
    %c0_24 = arith.constant 0 : index
    %72 = vector.load %arg7[%c0_23, %c0_24] : memref<1x128xf32, #tpu.memory_space<vmem>>, vector<1x128xf32>
    %c0_25 = arith.constant 0 : index
    %c0_26 = arith.constant 0 : index
    %73 = vector.load %arg8[%c0_25, %c0_26] : memref<1x128xf32, #tpu.memory_space<vmem>>, vector<1x128xf32>
    %cst_27 = arith.constant dense<0.000000e+00> : vector<64xf32>
    %74 = vector.multi_reduction <add>, %71, %cst_27 [1] : vector<64x128xf32> to vector<64xf32>
    %75 = vector.shape_cast %74 : vector<64xf32> to vector<64x1xf32>
    %cst_28 = arith.constant 1.280000e+02 : f32
    %76 = vector.broadcast %cst_28 : f32 to vector<64x1xf32>
    %77 = arith.divf %75, %76 : vector<64x1xf32>
    %78 = vector.broadcast %77 : vector<64x1xf32> to vector<64x128xf32>
    %79 = arith.subf %71, %78 : vector<64x128xf32>
    %80 = vector.broadcast %77 : vector<64x1xf32> to vector<64x128xf32>
    %81 = arith.subf %71, %80 : vector<64x128xf32>
    %82 = arith.mulf %79, %81 : vector<64x128xf32>
    %cst_29 = arith.constant dense<0.000000e+00> : vector<64xf32>
    %83 = vector.multi_reduction <add>, %82, %cst_29 [1] : vector<64x128xf32> to vector<64xf32>
    %84 = vector.shape_cast %83 : vector<64xf32> to vector<64x1xf32>
    %cst_30 = arith.constant 1.280000e+02 : f32
    %85 = vector.broadcast %cst_30 : f32 to vector<64x1xf32>
    %86 = arith.divf %84, %85 : vector<64x1xf32>
    %87 = vector.broadcast %77 : vector<64x1xf32> to vector<64x128xf32>
    %88 = arith.subf %71, %87 : vector<64x128xf32>
    %cst_31 = arith.constant 9.99999974E-6 : f32
    %89 = vector.broadcast %cst_31 : f32 to vector<64x1xf32>
    %90 = arith.addf %86, %89 : vector<64x1xf32>
    %91 = math.rsqrt %90 : vector<64x1xf32>
    %92 = vector.broadcast %91 : vector<64x1xf32> to vector<64x128xf32>
    %93 = arith.mulf %88, %92 : vector<64x128xf32>
    %94 = vector.broadcast %72 : vector<1x128xf32> to vector<64x128xf32>
    %95 = arith.mulf %93, %94 : vector<64x128xf32>
    %96 = vector.broadcast %73 : vector<1x128xf32> to vector<64x128xf32>
    %97 = arith.addf %95, %96 : vector<64x128xf32>
    %98 = arith.truncf %97 : vector<64x128xf32> to vector<64x128xbf16>
    %c0_32 = arith.constant 0 : index
    %c0_33 = arith.constant 0 : index
    %99 = vector.load %arg9[%c0_32, %c0_33] : memref<128x512xbf16, #tpu.memory_space<vmem>>, vector<128x512xbf16>
    %cst_34 = arith.constant dense<0.000000e+00> : vector<64x512xf32>
    %100 = tpu.matmul %98, %99, %cst_34 {dimension_numbers = #tpu.dot_dimension_numbers<[1], [0], [0], [1], [0, 0, 1, 1], [], []>} : vector<64x128xbf16>, vector<128x512xbf16>, vector<64x512xf32> -> vector<64x512xf32>
    %c0_35 = arith.constant 0 : index
    %c0_36 = arith.constant 0 : index
    %101 = vector.load %arg10[%c0_35, %c0_36] : memref<1x512xf32, #tpu.memory_space<vmem>>, vector<1x512xf32>
    %102 = vector.broadcast %101 : vector<1x512xf32> to vector<64x512xf32>
    %103 = arith.addf %100, %102 : vector<64x512xf32>
    %cst_37 = arith.constant 0.000000e+00 : f32
    %104 = vector.broadcast %cst_37 : f32 to vector<64x512xf32>
    %105 = arith.maximumf %103, %104 : vector<64x512xf32>
    %106 = arith.truncf %105 : vector<64x512xf32> to vector<64x512xbf16>
    %c0_38 = arith.constant 0 : index
    %c0_39 = arith.constant 0 : index
    %107 = vector.load %arg11[%c0_38, %c0_39] : memref<512x128xbf16, #tpu.memory_space<vmem>>, vector<512x128xbf16>
    %cst_40 = arith.constant dense<0.000000e+00> : vector<64x128xf32>
    %108 = tpu.matmul %106, %107, %cst_40 {dimension_numbers = #tpu.dot_dimension_numbers<[1], [0], [0], [1], [0, 0, 1, 1], [], []>} : vector<64x512xbf16>, vector<512x128xbf16>, vector<64x128xf32> -> vector<64x128xf32>
    %c0_41 = arith.constant 0 : index
    %c0_42 = arith.constant 0 : index
    %109 = vector.load %arg12[%c0_41, %c0_42] : memref<1x128xf32, #tpu.memory_space<vmem>>, vector<1x128xf32>
    %110 = vector.broadcast %109 : vector<1x128xf32> to vector<64x128xf32>
    %111 = arith.addf %108, %110 : vector<64x128xf32>
    %112 = arith.addf %71, %111 : vector<64x128xf32>
    %c0_43 = arith.constant 0 : index
    %c0_44 = arith.constant 0 : index
    %113 = vector.load %arg13[%c0_43, %c0_44] : memref<64x128xf32, #tpu.memory_space<vmem>>, vector<64x128xf32>
    tpu.vector_store %arg13[%c0_43, %c0_44], %112 {strides = array<i32>} : memref<64x128xf32, #tpu.memory_space<vmem>>, vector<64x128xf32>,
    return
  }
  func.func @transform_0(%arg0: i32) -> (i32, i32) {
    %c0_i32 = arith.constant 0 : i32
    %c0_i32_0 = arith.constant 0 : i32
    return %arg0, %c0_i32 : i32, i32
  }
  func.func @transform_1(%arg0: i32) -> (i32, i32) {
    %c0_i32 = arith.constant 0 : i32
    %c0_i32_0 = arith.constant 0 : i32
    %c0_i32_1 = arith.constant 0 : i32
    return %c0_i32, %c0_i32_0 : i32, i32
  }
  func.func @transform_2(%arg0: i32) -> (i32, i32) {
    %c0_i32 = arith.constant 0 : i32
    %c0_i32_0 = arith.constant 0 : i32
    %c0_i32_1 = arith.constant 0 : i32
    return %c0_i32, %c0_i32_0 : i32, i32
  }
  func.func @transform_3(%arg0: i32) -> (i32, i32) {
    %c0_i32 = arith.constant 0 : i32
    %c0_i32_0 = arith.constant 0 : i32
    %c0_i32_1 = arith.constant 0 : i32
    return %c0_i32, %c0_i32_0 : i32, i32
  }
  func.func @transform_4(%arg0: i32) -> (i32, i32) {
    %c0_i32 = arith.constant 0 : i32
    %c0_i32_0 = arith.constant 0 : i32
    %c0_i32_1 = arith.constant 0 : i32
    return %c0_i32, %c0_i32_0 : i32, i32
  }
  func.func @transform_5(%arg0: i32) -> (i32, i32) {
    %c0_i32 = arith.constant 0 : i32
    %c0_i32_0 = arith.constant 0 : i32
    %c0_i32_1 = arith.constant 0 : i32
    return %c0_i32, %c0_i32_0 : i32, i32
  }
  func.func @transform_6(%arg0: i32) -> (i32, i32) {
    %c0_i32 = arith.constant 0 : i32
    %c0_i32_0 = arith.constant 0 : i32
    %c0_i32_1 = arith.constant 0 : i32
    return %c0_i32, %c0_i32_0 : i32, i32
  }
  func.func @transform_7(%arg0: i32) -> (i32, i32) {
    %c0_i32 = arith.constant 0 : i32
    %c0_i32_0 = arith.constant 0 : i32
    %c0_i32_1 = arith.constant 0 : i32
    return %c0_i32, %c0_i32_0 : i32, i32
  }
  func.func @transform_8(%arg0: i32) -> (i32, i32) {
    %c0_i32 = arith.constant 0 : i32
    %c0_i32_0 = arith.constant 0 : i32
    %c0_i32_1 = arith.constant 0 : i32
    return %c0_i32, %c0_i32_0 : i32, i32
  }
  func.func @transform_9(%arg0: i32) -> (i32, i32) {
    %c0_i32 = arith.constant 0 : i32
    %c0_i32_0 = arith.constant 0 : i32
    %c0_i32_1 = arith.constant 0 : i32
    return %c0_i32, %c0_i32_0 : i32, i32
  }
  func.func @transform_10(%arg0: i32) -> (i32, i32) {
    %c0_i32 = arith.constant 0 : i32
    %c0_i32_0 = arith.constant 0 : i32
    %c0_i32_1 = arith.constant 0 : i32
    return %c0_i32, %c0_i32_0 : i32, i32
  }
  func.func @transform_11(%arg0: i32) -> (i32, i32) {
    %c0_i32 = arith.constant 0 : i32
    %c0_i32_0 = arith.constant 0 : i32
    %c0_i32_1 = arith.constant 0 : i32
    return %c0_i32, %c0_i32_0 : i32, i32
  }
  func.func @transform_12(%arg0: i32) -> (i32, i32) {
    %c0_i32 = arith.constant 0 : i32
    %c0_i32_0 = arith.constant 0 : i32
    return %arg0, %c0_i32 : i32, i32
  }
}

</mosaic_0001>

<llo_original>
// kernel: block_forward.1
$region0: #{block_forward.1}
  #allocation0 [shape = 'u32[]', space=smem, size = 0x4, offset = 0x4, fixed_abs, tag = 'smem constant byte address 0x4 - core index']
  #allocation1 [shape = 'u32[72,128]{1,0:T(1,128)}', space=vmem, size = 0x9000, scoped, tag = 'internal scratch']
  %s0 = inlined_call_operand.hbm [shape: f32[128,128], index: 0, kind: input, shape index: {}]
  %s1 = inlined_call_operand.vmem [shape: f32[1,128], index: 1, kind: input, shape index: {}]
  %s2 = inlined_call_operand.vmem [shape: f32[1,128], index: 2, kind: input, shape index: {}]
  %s3 = inlined_call_operand.hbm [shape: bf16[128,384], index: 3, kind: input, shape index: {}]
  %s4 = inlined_call_operand.hbm [shape: bf16[128,128], index: 4, kind: input, shape index: {}]
  %s5 = inlined_call_operand.vmem [shape: f32[1,128], index: 5, kind: input, shape index: {}]
  %s6 = inlined_call_operand.hbm [shape: f32[1,128], index: 6, kind: input, shape index: {}]
  %s7 = inlined_call_operand.hbm [shape: f32[1,128], index: 7, kind: input, shape index: {}]
  %s8 = inlined_call_operand.hbm [shape: bf16[128,512], index: 8, kind: input, shape index: {}]
  %s9 = inlined_call_operand.vmem [shape: f32[1,512], index: 9, kind: input, shape index: {}]
  %s10 = inlined_call_operand.hbm [shape: bf16[512,128], index: 10, kind: input, shape index: {}]
  %s11 = inlined_call_operand.vmem [shape: f32[1,128], index: 11, kind: input, shape index: {}]
  %s12 = inlined_call_operand.hbm [shape: f32[128,128], index: 12, kind: output, shape index: {}]
  %s13 = sld [smem:[#allocation0]]
  $region109: #{block_forward.1} parent=0
    _
  %s15 = ssub.s32 1, %s13
  %s16 = scalar_select 0, %s15, %s13
  $region1: #{block_forward.1} parent=0
    #allocation2 [shape = 'u8[65536]{0}', space=vmem, size = 0x10000, scoped, tag = 'input window, operand 0']
    #allocation3 [shape = 's32[2]{0}', space=sflag, size = 0x8, scoped, tag = 'scoped memory for block_forward.1']
    #allocation4 [shape = 's32[2]{0}', space=sflag, size = 0x8, scoped, tag = 'scoped memory for block_forward.1']
    #allocation5 [shape = 'u8[98304]{0}', space=vmem, size = 0x18000, scoped, tag = 'input window, operand 3, single buffered']
    #allocation6 [shape = 's32[1]{0}', space=sflag, size = 0x4, scoped, tag = 'scoped memory for block_forward.1']
    #allocation7 [shape = 'u8[32768]{0}', space=vmem, size = 0x8000, scoped, tag = 'input window, operand 4, single buffered']
    #allocation8 [shape = 'u8[512]{0}', space=vmem, size = 0x400, scoped, tag = 'input window, operand 6, single buffered']
    #allocation9 [shape = 's32[1]{0}', space=sflag, size = 0x4, scoped, tag = 'scoped memory for block_forward.1']
    #allocation10 [shape = 'u8[512]{0}', space=vmem, size = 0x400, scoped, tag = 'input window, operand 7, single buffered']
    #allocation11 [shape = 'u8[131072]{0}', space=vmem, size = 0x20000, scoped, tag = 'input window, operand 8, single buffered']
    #allocation12 [shape = 's32[1]{0}', space=sflag, size = 0x4, scoped, tag = 'scoped memory for block_forward.1']
    #allocation13 [shape = 'u8[131072]{0}', space=vmem, size = 0x20000, scoped, tag = 'input window, operand 10, single buffered']
    #allocation14 [shape = 'u8[65536]{0}', space=vmem, size = 0x10000, scoped, tag = 'output window, operand 0']
    %17 = vsyncpa [#allocation3], 0
    %s18 = scalar_lea.sflag [#allocation3], 1
    %19 = vsyncpa %s18, 0
    %20 = vsyncpa [#allocation6], 0
    %21 = vsyncpa [#allocation9], 0
    %22 = vsyncpa [#allocation12], 0
    %23 = vsyncpa [#allocation4], 0
    %s24 = scalar_lea.sflag [#allocation4], 1
    %25 = vsyncpa %s24, 0
    loop: start=0, step=1, limit=4
    $region2: #{block_forward.1} parent=1 // loop_pre_header
      _
    $region3: #{block_forward.1} parent=1 // loop_header
      %s27 = sphi 0, %s31
      %p28 = scmp.ge.s32.totalorder %s27, 4
      %s37 = sphi 0, %s39
      %s40 = sphi 0, %s37
      %s41 = sphi 0, %s40
      %s57 = sphi 0, %s41
      %s61 = sphi 0, %s61
      %s63 = sphi 0, %s61
      %s64 = sphi 0, %s63
      %s78 = sphi 0, %s64
      %s82 = sphi 0, %s82
      %s84 = sphi 0, %s82
      %s85 = sphi 0, %s84
      %s99 = sphi 0, %s85
      %s103 = sphi 0, %s103
      %s105 = sphi 0, %s103
      %s106 = sphi 0, %s105
      %s120 = sphi 0, %s106
      %s124 = sphi 0, %s124
      %s126 = sphi 0, %s124
      %s127 = sphi 0, %s126
      %s141 = sphi 0, %s127
      %s145 = sphi 0, %s145
      %s147 = sphi 0, %s145
      %s148 = sphi 0, %s147
      %s162 = sphi 0, %s148
      %s166 = sphi 0, %s166
      %s168 = sphi 0, %s166
      %s169 = sphi 0, %s168
      %s183 = sphi 0, %s169
      %s187 = sphi 0, %s187
      %s189 = sphi 0, %s187
      %s190 = sphi 0, %s189
      %s204 = sphi 0, %s190
      %s208 = sphi 0, %s208
      %s210 = sphi 0, %s208
      %s211 = sphi 0, %s210
      %s225 = sphi 0, %s211
      %s229 = sphi 0, %s229
      %s231 = sphi 0, %s229
      %s232 = sphi 0, %s231
      %s246 = sphi 0, %s232
      %s250 = sphi 0, %s250
      %s252 = sphi 0, %s250
      %s253 = sphi 0, %s252
      %s267 = sphi 0, %s253
      %s271 = sphi 0, %s271
      %s273 = sphi 0, %s271
      %s274 = sphi 0, %s273
      %s288 = sphi 0, %s274
      %s294 = sphi 0, %s296
      %s297 = sphi 0, %s294
      %s298 = sphi 0, %s297
      %s314 = sphi 0, %s298
    $region4: #{block_forward.1} parent=1 // loop_header_branch
      %30 = sbr.rel (%p28) target = $region8
    $region5: #{block_forward.1} parent=1 // loop_body
      %s32 = ssub.s32 %s27, 1
      %s33 = ssub.s32 %s27, 2
      %s34 = sadd.s32 %s27, 1
      %s35 = ssub.s32 %s27, %s34
      %p36 = scmp.eq.s32.totalorder %s35, 0
      %s38 = sadd.s32 %s37, 1
      %s39 = scalar_select %p36, %s37, %s38
      %p42 = pneg %p36
      %p43 = scmp.eq.s32.totalorder %s27, 1
      %p44 = por %p42, %p43
      %p45 = scmp.ne.s32.totalorder %s37, %s40
      %p46 = scmp.eq.s32.totalorder %s27, 0
      %p47 = por %p45, %p46
      %p48 = scmp.ne.s32.totalorder %s37, %s40
      %p49 = scmp.eq.s32.totalorder %s32, 1
      %p50 = por %p48, %p49
      %p51 = scmp.ne.s32.totalorder %s40, %s41
      %p52 = scmp.eq.s32.totalorder %s32, 0
      %p53 = por %p51, %p52
      %p54 = scmp.ne.s32.totalorder %s40, %s41
      %p55 = scmp.eq.s32.totalorder %s33, 1
      %p56 = por %p54, %p55
      %p58 = scmp.ne.s32.totalorder %s41, %s57
      %p59 = scmp.eq.s32.totalorder %s33, 0
      %p60 = por %p58, %p59
      %s62 = sadd.s32 %s61, 1
      %p65 = scmp.eq.s32.totalorder %s27, 1
      %p66 = scmp.ne.s32.totalorder %s61, %s63
      %p67 = scmp.eq.s32.totalorder %s27, 0
      %p68 = por %p66, %p67
      %p69 = scmp.ne.s32.totalorder %s61, %s63
      %p70 = scmp.eq.s32.totalorder %s32, 1
      %p71 = por %p69, %p70
      %p72 = scmp.ne.s32.totalorder %s63, %s64
      %p73 = scmp.eq.s32.totalorder %s32, 0
      %p74 = por %p72, %p73
      %p75 = scmp.ne.s32.totalorder %s63, %s64
      %p76 = scmp.eq.s32.totalorder %s33, 1
      %p77 = por %p75, %p76
      %p79 = scmp.ne.s32.totalorder %s64, %s78
      %p80 = scmp.eq.s32.totalorder %s33, 0
      %p81 = por %p79, %p80
      %s83 = sadd.s32 %s82, 1
      %p86 = scmp.eq.s32.totalorder %s27, 1
      %p87 = scmp.ne.s32.totalorder %s82, %s84
      %p88 = scmp.eq.s32.totalorder %s27, 0
      %p89 = por %p87, %p88
      %p90 = scmp.ne.s32.totalorder %s82, %s84
      %p91 = scmp.eq.s32.totalorder %s32, 1
      %p92 = por %p90, %p91
      %p93 = scmp.ne.s32.totalorder %s84, %s85
      %p94 = scmp.eq.s32.totalorder %s32, 0
      %p95 = por %p93, %p94
      %p96 = scmp.ne.s32.totalorder %s84, %s85
      %p97 = scmp.eq.s32.totalorder %s33, 1
      %p98 = por %p96, %p97
      %p100 = scmp.ne.s32.totalorder %s85, %s99
      %p101 = scmp.eq.s32.totalorder %s33, 0
      %p102 = por %p100, %p101
      %s104 = sadd.s32 %s103, 1
      %p107 = scmp.eq.s32.totalorder %s27, 1
      %p108 = scmp.ne.s32.totalorder %s103, %s105
      %p109 = scmp.eq.s32.totalorder %s27, 0
      %p110 = por %p108, %p109
      %p111 = scmp.ne.s32.totalorder %s103, %s105
      %p112 = scmp.eq.s32.totalorder %s32, 1
      %p113 = por %p111, %p112
      %p114 = scmp.ne.s32.totalorder %s105, %s106
      %p115 = scmp.eq.s32.totalorder %s32, 0
      %p116 = por %p114, %p115
      %p117 = scmp.ne.s32.totalorder %s105, %s106
      %p118 = scmp.eq.s32.totalorder %s33, 1
      %p119 = por %p117, %p118
      %p121 = scmp.ne.s32.totalorder %s106, %s120
      %p122 = scmp.eq.s32.totalorder %s33, 0
      %p123 = por %p121, %p122
      %s125 = sadd.s32 %s124, 1
      %p128 = scmp.eq.s32.totalorder %s27, 1
      %p129 = scmp.ne.s32.totalorder %s124, %s126
      %p130 = scmp.eq.s32.totalorder %s27, 0
      %p131 = por %p129, %p130
      %p132 = scmp.ne.s32.totalorder %s124, %s126
      %p133 = scmp.eq.s32.totalorder %s32, 1
      %p134 = por %p132, %p133
      %p135 = scmp.ne.s32.totalorder %s126, %s127
      %p136 = scmp.eq.s32.totalorder %s32, 0
      %p137 = por %p135, %p136
      %p138 = scmp.ne.s32.totalorder %s126, %s127
      %p139 = scmp.eq.s32.totalorder %s33, 1
      %p140 = por %p138, %p139
      %p142 = scmp.ne.s32.totalorder %s127, %s141
      %p143 = scmp.eq.s32.totalorder %s33, 0
      %p144 = por %p142, %p143
      %s146 = sadd.s32 %s145, 1
      %p149 = scmp.eq.s32.totalorder %s27, 1
      %p150 = scmp.ne.s32.totalorder %s145, %s147
      %p151 = scmp.eq.s32.totalorder %s27, 0
      %p152 = por %p150, %p151
      %p153 = scmp.ne.s32.totalorder %s145, %s147
      %p154 = scmp.eq.s32.totalorder %s32, 1
      %p155 = por %p153, %p154
      %p156 = scmp.ne.s32.totalorder %s147, %s148
      %p157 = scmp.eq.s32.totalorder %s32, 0
      %p158 = por %p156, %p157
      %p159 = scmp.ne.s32.totalorder %s147, %s148
      %p160 = scmp.eq.s32.totalorder %s33, 1
      %p161 = por %p159, %p160
      %p163 = scmp.ne.s32.totalorder %s148, %s162
      %p164 = scmp.eq.s32.totalorder %s33, 0
      %p165 = por %p163, %p164
      %s167 = sadd.s32 %s166, 1
      %p170 = scmp.eq.s32.totalorder %s27, 1
      %p171 = scmp.ne.s32.totalorder %s166, %s168
      %p172 = scmp.eq.s32.totalorder %s27, 0
      %p173 = por %p171, %p172
      %p174 = scmp.ne.s32.totalorder %s166, %s168
      %p175 = scmp.eq.s32.totalorder %s32, 1
      %p176 = por %p174, %p175
      %p177 = scmp.ne.s32.totalorder %s168, %s169
      %p178 = scmp.eq.s32.totalorder %s32, 0
      %p179 = por %p177, %p178
      %p180 = scmp.ne.s32.totalorder %s168, %s169
      %p181 = scmp.eq.s32.totalorder %s33, 1
      %p182 = por %p180, %p181
      %p184 = scmp.ne.s32.totalorder %s169, %s183
      %p185 = scmp.eq.s32.totalorder %s33, 0
      %p186 = por %p184, %p185
      %s188 = sadd.s32 %s187, 1
      %p191 = scmp.eq.s32.totalorder %s27, 1
      %p192 = scmp.ne.s32.totalorder %s187, %s189
      %p193 = scmp.eq.s32.totalorder %s27, 0
      %p194 = por %p192, %p193
      %p195 = scmp.ne.s32.totalorder %s187, %s189
      %p196 = scmp.eq.s32.totalorder %s32, 1
      %p197 = por %p195, %p196
      %p198 = scmp.ne.s32.totalorder %s189, %s190
      %p199 = scmp.eq.s32.totalorder %s32, 0
      %p200 = por %p198, %p199
      %p201 = scmp.ne.s32.totalorder %s189, %s190
      %p202 = scmp.eq.s32.totalorder %s33, 1
      %p203 = por %p201, %p202
      %p205 = scmp.ne.s32.totalorder %s190, %s204
      %p206 = scmp.eq.s32.totalorder %s33, 0
      %p207 = por %p205, %p206
      %s209 = sadd.s32 %s208, 1
      %p212 = scmp.eq.s32.totalorder %s27, 1
      %p213 = scmp.ne.s32.totalorder %s208, %s210
      %p214 = scmp.eq.s32.totalorder %s27, 0
      %p215 = por %p213, %p214
      %p216 = scmp.ne.s32.totalorder %s208, %s210
      %p217 = scmp.eq.s32.totalorder %s32, 1
      %p218 = por %p216, %p217
      %p219 = scmp.ne.s32.totalorder %s210, %s211
      %p220 = scmp.eq.s32.totalorder %s32, 0
      %p221 = por %p219, %p220
      %p222 = scmp.ne.s32.totalorder %s210, %s211
      %p223 = scmp.eq.s32.totalorder %s33, 1
      %p224 = por %p222, %p223
      %p226 = scmp.ne.s32.totalorder %s211, %s225
      %p227 = scmp.eq.s32.totalorder %s33, 0
      %p228 = por %p226, %p227
      %s230 = sadd.s32 %s229, 1
      %p233 = scmp.eq.s32.totalorder %s27, 1
      %p234 = scmp.ne.s32.totalorder %s229, %s231
      %p235 = scmp.eq.s32.totalorder %s27, 0
      %p236 = por %p234, %p235
      %p237 = scmp.ne.s32.totalorder %s229, %s231
      %p238 = scmp.eq.s32.totalorder %s32, 1
      %p239 = por %p237, %p238
      %p240 = scmp.ne.s32.totalorder %s231, %s232
      %p241 = scmp.eq.s32.totalorder %s32, 0
      %p242 = por %p240, %p241
      %p243 = scmp.ne.s32.totalorder %s231, %s232
      %p244 = scmp.eq.s32.totalorder %s33, 1
      %p245 = por %p243, %p244
      %p247 = scmp.ne.s32.totalorder %s232, %s246
      %p248 = scmp.eq.s32.totalorder %s33, 0
      %p249 = por %p247, %p248
      %s251 = sadd.s32 %s250, 1
      %p254 = scmp.eq.s32.totalorder %s27, 1
      %p255 = scmp.ne.s32.totalorder %s250, %s252
      %p256 = scmp.eq.s32.totalorder %s27, 0
      %p257 = por %p255, %p256
      %p258 = scmp.ne.s32.totalorder %s250, %s252
      %p259 = scmp.eq.s32.totalorder %s32, 1
      %p260 = por %p258, %p259
      %p261 = scmp.ne.s32.totalorder %s252, %s253
      %p262 = scmp.eq.s32.totalorder %s32, 0
      %p263 = por %p261, %p262
      %p264 = scmp.ne.s32.totalorder %s252, %s253
      %p265 = scmp.eq.s32.totalorder %s33, 1
      %p266 = por %p264, %p265
      %p268 = scmp.ne.s32.totalorder %s253, %s267
      %p269 = scmp.eq.s32.totalorder %s33, 0
      %p270 = por %p268, %p269
      %s272 = sadd.s32 %s271, 1
      %p275 = scmp.eq.s32.totalorder %s27, 1
      %p276 = scmp.ne.s32.totalorder %s271, %s273
      %p277 = scmp.eq.s32.totalorder %s27, 0
      %p278 = por %p276, %p277
      %p279 = scmp.ne.s32.totalorder %s271, %s273
      %p280 = scmp.eq.s32.totalorder %s32, 1
      %p281 = por %p279, %p280
      %p282 = scmp.ne.s32.totalorder %s273, %s274
      %p283 = scmp.eq.s32.totalorder %s32, 0
      %p284 = por %p282, %p283
      %p285 = scmp.ne.s32.totalorder %s273, %s274
      %p286 = scmp.eq.s32.totalorder %s33, 1
      %p287 = por %p285, %p286
      %p289 = scmp.ne.s32.totalorder %s274, %s288
      %p290 = scmp.eq.s32.totalorder %s33, 0
      %p291 = por %p289, %p290
      %s292 = ssub.s32 %s27, %s34
      %p293 = scmp.eq.s32.totalorder %s292, 0
      %s295 = sadd.s32 %s294, 1
      %s296 = scalar_select %p293, %s294, %s295
      %p299 = pneg %p293
      %p300 = scmp.eq.s32.totalorder %s27, 1
      %p301 = por %p299, %p300
      %p302 = scmp.ne.s32.totalorder %s294, %s297
      %p303 = scmp.eq.s32.totalorder %s27, 0
      %p304 = por %p302, %p303
      %p305 = scmp.ne.s32.totalorder %s294, %s297
      %p306 = scmp.eq.s32.totalorder %s32, 1
      %p307 = por %p305, %p306
      %p308 = scmp.ne.s32.totalorder %s297, %s298
      %p309 = scmp.eq.s32.totalorder %s32, 0
      %p310 = por %p308, %p309
      %p311 = scmp.ne.s32.totalorder %s297, %s298
      %p312 = scmp.eq.s32.totalorder %s33, 1
      %p313 = por %p311, %p312
      %p315 = scmp.ne.s32.totalorder %s298, %s314
      %p316 = scmp.eq.s32.totalorder %s33, 0
      %p317 = por %p315, %p316
      %p318 = scmp.le.s32.totalorder 1, %s27
      %p319 = scmp.lt.s32.totalorder %s27, 3
      %p320 = pnand %p318, %p319
      %p321 = pneg %p320
      // Predicated region
      $region9: #{block_forward.1} parent=5 // pred_check
        _
      $region10: #{block_forward.1} parent=5 // pred_check_branch
        %323 = sbr.rel (%p320) target = $region12
      $region11: #{block_forward.1} parent=5 // pred_region
        %s324 = ssub.s32 %s27, 1
        // Predicated region
        $region13: #{block_forward.1} parent=11 // pred_check
          %p325 = pneg %p74
        $region14: #{block_forward.1} parent=11 // pred_check_branch
          %327 = sbr.rel (%p325) target = $region16
        $region15: #{block_forward.1} parent=11 // pred_region
          _
        $region16: #{block_forward.1} parent=11 // pred_fallthru
          _
        // Predicated region
        $region17: #{block_forward.1} parent=11 // pred_check
          %p328 = pneg %p95
        $region18: #{block_forward.1} parent=11 // pred_check_branch
          %330 = sbr.rel (%p328) target = $region20
        $region19: #{block_forward.1} parent=11 // pred_region
          _
        $region20: #{block_forward.1} parent=11 // pred_fallthru
          _
        // Predicated region
        $region21: #{block_forward.1} parent=11 // pred_check
          %p331 = pneg %p116
        $region22: #{block_forward.1} parent=11 // pred_check_branch
          %333 = sbr.rel (%p331) target = $region24
        $region23: #{block_forward.1} parent=11 // pred_region
          %335 = vsyncadd [#allocation6], 0
          %s336 = sshll.u32 %s3, 4
          %s337 = int_to_ptr.hbm [resolvable:$true] %s336
          %s338 = sshll.u32 [#allocation5], 4
          %s339 = int_to_ptr.vmem [resolvable:$true] %s338
          %344 = dma.hbm_to_vmem [thread:$0]  %s337, 3072, %s339, [#allocation6], 192, 192, 12
        $region24: #{block_forward.1} parent=11 // pred_fallthru
          _
        // Predicated region
        $region25: #{block_forward.1} parent=11 // pred_check
          %p345 = pneg %p137
        $region26: #{block_forward.1} parent=11 // pred_check_branch
          %347 = sbr.rel (%p345) target = $region28
        $region27: #{block_forward.1} parent=11 // pred_region
          %349 = vsyncadd [#allocation6], 0
          %s350 = sshll.u32 %s4, 4
          %s351 = int_to_ptr.hbm [resolvable:$true] %s350
          %s352 = sshll.u32 [#allocation7], 4
          %s353 = int_to_ptr.vmem [resolvable:$true] %s352
          %358 = dma.hbm_to_vmem [thread:$0]  %s351, 1024, %s353, [#allocation6], 64, 64, 4
        $region28: #{block_forward.1} parent=11 // pred_fallthru
          _
        // Predicated region
        $region29: #{block_forward.1} parent=11 // pred_check
          %p359 = pneg %p158
        $region30: #{block_forward.1} parent=11 // pred_check_branch
          %361 = sbr.rel (%p359) target = $region32
        $region31: #{block_forward.1} parent=11 // pred_region
          _
        $region32: #{block_forward.1} parent=11 // pred_fallthru
          _
        // Predicated region
        $region33: #{block_forward.1} parent=11 // pred_check
          %p362 = pneg %p179
        $region34: #{block_forward.1} parent=11 // pred_check_branch
          %364 = sbr.rel (%p362) target = $region36
        $region35: #{block_forward.1} parent=11 // pred_region
          %366 = vsyncadd [#allocation9], 0
          %s368 = sshll.u32 %s6, 4
          %s369 = int_to_ptr.hbm [resolvable:$true] %s368
          %s370 = sshll.u32 [#allocation8], 4
          %s371 = int_to_ptr.vmem [resolvable:$true] %s370
          %373 = dma.hbm_to_vmem [thread:$0]  %s369, 16, %s371, [#allocation9]
        $region36: #{block_forward.1} parent=11 // pred_fallthru
          _
        // Predicated region
        $region37: #{block_forward.1} parent=11 // pred_check
          %p374 = pneg %p200
        $region38: #{block_forward.1} parent=11 // pred_check_branch
          %376 = sbr.rel (%p374) target = $region40
        $region39: #{block_forward.1} parent=11 // pred_region
          %378 = vsyncadd [#allocation9], 0
          %s380 = sshll.u32 %s7, 4
          %s381 = int_to_ptr.hbm [resolvable:$true] %s380
          %s382 = sshll.u32 [#allocation10], 4
          %s383 = int_to_ptr.vmem [resolvable:$true] %s382
          %385 = dma.hbm_to_vmem [thread:$0]  %s381, 16, %s383, [#allocation9]
        $region40: #{block_forward.1} parent=11 // pred_fallthru
          _
        // Predicated region
        $region41: #{block_forward.1} parent=11 // pred_check
          %p386 = pneg %p221
        $region42: #{block_forward.1} parent=11 // pred_check_branch
          %388 = sbr.rel (%p386) target = $region44
        $region43: #{block_forward.1} parent=11 // pred_region
          %390 = vsyncadd [#allocation12], 0
          %s391 = sshll.u32 %s8, 4
          %s392 = int_to_ptr.hbm [resolvable:$true] %s391
          %s393 = sshll.u32 [#allocation11], 4
          %s394 = int_to_ptr.vmem [resolvable:$true] %s393
          %399 = dma.hbm_to_vmem [thread:$0]  %s392, 4096, %s394, [#allocation12], 256, 256, 16
        $region44: #{block_forward.1} parent=11 // pred_fallthru
          _
        // Predicated region
        $region45: #{block_forward.1} parent=11 // pred_check
          %p400 = pneg %p242
        $region46: #{block_forward.1} parent=11 // pred_check_branch
          %402 = sbr.rel (%p400) target = $region48
        $region47: #{block_forward.1} parent=11 // pred_region
          _
        $region48: #{block_forward.1} parent=11 // pred_fallthru
          _
        // Predicated region
        $region49: #{block_forward.1} parent=11 // pred_check
          %p403 = pneg %p263
        $region50: #{block_forward.1} parent=11 // pred_check_branch
          %405 = sbr.rel (%p403) target = $region52
        $region51: #{block_forward.1} parent=11 // pred_region
          %407 = vsyncadd [#allocation12], 0
          %s408 = sshll.u32 %s10, 4
          %s409 = int_to_ptr.hbm [resolvable:$true] %s408
          %s410 = sshll.u32 [#allocation13], 4
          %s411 = int_to_ptr.vmem [resolvable:$true] %s410
          %416 = dma.hbm_to_vmem [thread:$0]  %s409, 4096, %s411, [#allocation12], 64, 64, 4
        $region52: #{block_forward.1} parent=11 // pred_fallthru
          _
        // Predicated region
        $region53: #{block_forward.1} parent=11 // pred_check
          %p417 = pneg %p284
        $region54: #{block_forward.1} parent=11 // pred_check_branch
          %419 = sbr.rel (%p417) target = $region56
        $region55: #{block_forward.1} parent=11 // pred_region
          _
        $region56: #{block_forward.1} parent=11 // pred_fallthru
          _
      $region12: #{block_forward.1} parent=5 // pred_fallthru
        _
      %p420 = scmp.lt.s32.totalorder %s27, 2
      // Predicated region
      $region57: #{block_forward.1} parent=5 // pred_check
        %p421 = pneg %p420
      $region58: #{block_forward.1} parent=5 // pred_check_branch
        %423 = sbr.rel (%p421) target = $region60
      $region59: #{block_forward.1} parent=5 // pred_region
        // Predicated region
        $region61: #{block_forward.1} parent=59 // pred_check
          %p424 = pneg %p47
        $region62: #{block_forward.1} parent=59 // pred_check_branch
          %426 = sbr.rel (%p424) target = $region64
        $region63: #{block_forward.1} parent=59 // pred_region
          %s427 = sand.u32 %s37, 1
          %s428 = scalar_lea.sflag [#allocation3], %s427
          %s429 = sand.u32 %s37, 1
          %s430 = smul.addr %s429, 64
          %s431 = scalar_lea.vmem [#allocation2], %s430
          %s432 = smul.u32 8, %s27
          %434 = vsyncadd %s428, 0
          %s435 = smul.addr %s432, 8
          %s436 = scalar_lea.hbm %s0, %s435
          %s437 = sshll.u32 %s436, 4
          %s438 = int_to_ptr.hbm [resolvable:$true] %s437
          %s439 = sshll.u32 %s431, 4
          %s440 = int_to_ptr.vmem [resolvable:$true] %s439
          %445 = dma.hbm_to_vmem [thread:$0]  %s438, 1024, %s440, %s428, 128, 128, 8
        $region64: #{block_forward.1} parent=59 // pred_fallthru
          _
      $region60: #{block_forward.1} parent=5 // pred_fallthru
        _
      %p446 = scmp.le.s32.totalorder 1, %s27
      %p447 = scmp.lt.s32.totalorder %s27, 3
      %p448 = pnand %p446, %p447
      %p449 = pneg %p448
      // Predicated region
      $region65: #{block_forward.1} parent=5 // pred_check
        _
      $region66: #{block_forward.1} parent=5 // pred_check_branch
        %451 = sbr.rel (%p448) target = $region68
      $region67: #{block_forward.1} parent=5 // pred_region
        %s452 = ssub.s32 %s27, 1
        %s453 = sand.u32 %s40, 1
        %s454 = scalar_lea.sflag [#allocation3], %s453
        %s455 = sand.u32 %s40, 1
        %s456 = smul.addr %s455, 64
        %s457 = scalar_lea.vmem [#allocation2], %s456
        // Predicated region
        $region69: #{block_forward.1} parent=67 // pred_check
          %p458 = pneg %p53
        $region70: #{block_forward.1} parent=67 // pred_check_branch
          %460 = sbr.rel (%p458) target = $region72
        $region71: #{block_forward.1} parent=67 // pred_region
          %462 = dma.done %s454, 1024
        $region72: #{block_forward.1} parent=67 // pred_fallthru
          _
        // Predicated region
        $region73: #{block_forward.1} parent=67 // pred_check
          %p463 = pneg %p116
        $region74: #{block_forward.1} parent=67 // pred_check_branch
          %465 = sbr.rel (%p463) target = $region76
        $region75: #{block_forward.1} parent=67 // pred_region
          %467 = dma.done [#allocation6], 3072
        $region76: #{block_forward.1} parent=67 // pred_fallthru
          _
        // Predicated region
        $region77: #{block_forward.1} parent=67 // pred_check
          %p468 = pneg %p137
        $region78: #{block_forward.1} parent=67 // pred_check_branch
          %470 = sbr.rel (%p468) target = $region80
        $region79: #{block_forward.1} parent=67 // pred_region
          %472 = dma.done [#allocation6], 1024
        $region80: #{block_forward.1} parent=67 // pred_fallthru
          _
        // Predicated region
        $region81: #{block_forward.1} parent=67 // pred_check
          %p473 = pneg %p179
        $region82: #{block_forward.1} parent=67 // pred_check_branch
          %475 = sbr.rel (%p473) target = $region84
        $region83: #{block_forward.1} parent=67 // pred_region
          %477 = dma.done [#allocation9], 16
        $region84: #{block_forward.1} parent=67 // pred_fallthru
          _
        // Predicated region
        $region85: #{block_forward.1} parent=67 // pred_check
          %p478 = pneg %p200
        $region86: #{block_forward.1} parent=67 // pred_check_branch
          %480 = sbr.rel (%p478) target = $region88
        $region87: #{block_forward.1} parent=67 // pred_region
          %482 = dma.done [#allocation9], 16
        $region88: #{block_forward.1} parent=67 // pred_fallthru
          _
        // Predicated region
        $region89: #{block_forward.1} parent=67 // pred_check
          %p483 = pneg %p221
        $region90: #{block_forward.1} parent=67 // pred_check_branch
          %485 = sbr.rel (%p483) target = $region92
        $region91: #{block_forward.1} parent=67 // pred_region
          %487 = dma.done [#allocation12], 4096
        $region92: #{block_forward.1} parent=67 // pred_fallthru
          _
        // Predicated region
        $region93: #{block_forward.1} parent=67 // pred_check
          %p488 = pneg %p263
        $region94: #{block_forward.1} parent=67 // pred_check_branch
          %490 = sbr.rel (%p488) target = $region96
        $region95: #{block_forward.1} parent=67 // pred_region
          %492 = dma.done [#allocation12], 4096
        $region96: #{block_forward.1} parent=67 // pred_fallthru
          _
        %s493 = sand.u32 %s40, 1
        %s494 = scalar_lea.sflag [#allocation3], %s493
        %s495 = sand.u32 %s40, 1
        %s496 = smul.addr %s495, 64
        %s497 = scalar_lea.vmem [#allocation2], %s496
        %p498 = pneg %p53
        %p499 = pneg %p50
        %p500 = pneg %p74
        %p501 = pneg %p71
        %p502 = pneg %p95
        %p503 = pneg %p92
        %p504 = pneg %p116
        %p505 = pneg %p113
        %p506 = pneg %p137
        %p507 = pneg %p134
        %p508 = pneg %p158
        %p509 = pneg %p155
        %p510 = pneg %p179
        %p511 = pneg %p176
        %p512 = pneg %p200
        %p513 = pneg %p197
        %p514 = pneg %p221
        %p515 = pneg %p218
        %p516 = pneg %p242
        %p517 = pneg %p239
        %p518 = pneg %p263
        %p519 = pneg %p260
        %p520 = pneg %p284
        %p521 = pneg %p281
        %p522 = pneg %p310
        %p523 = pneg %p307
        %s524 = sand.u32 %s297, 1
        %s525 = scalar_lea.sflag [#allocation4], %s524
        %s526 = sand.u32 %s297, 1
        %s527 = smul.addr %s526, 64
        %s528 = scalar_lea.vmem [#allocation14], %s527
        %s529 = smul.u32 8, %s32
        %s530 = smul.u32 8, %s32
        %v532 = vld [vmem:[%s457] sm:$0xff]
        %v533 = vld [vmem:[%s457 + $0x8] sm:$0xff]
        %v534 = vld [vmem:[%s457 + $0x10] sm:$0xff]
        %v535 = vld [vmem:[%s457 + $0x18] sm:$0xff]
        %v536 = vld [vmem:[%s457 + $0x20] sm:$0xff]
        %v537 = vld [vmem:[%s457 + $0x28] sm:$0xff]
        %v538 = vld [vmem:[%s457 + $0x30] sm:$0xff]
        %v539 = vld [vmem:[%s457 + $0x38] sm:$0xff]
        %v540 = vld [vmem:[%s1] sm:$0x1]
        %v541 = vld [vmem:[%s2] sm:$0x1]
        %542 = vadd.xlane.f32.xlu0 %v532
        %v543 = vpop.xlane.xlu0 %542
        %544 = vadd.xlane.f32.xlu0 %v533
        %v545 = vpop.xlane.xlu0 %544
        %546 = vadd.xlane.f32.xlu0 %v534
        %v547 = vpop.xlane.xlu0 %546
        %548 = vadd.xlane.f32.xlu0 %v535
        %v549 = vpop.xlane.xlu0 %548
        %550 = vadd.xlane.f32.xlu0 %v536
        %v551 = vpop.xlane.xlu0 %550
        %552 = vadd.xlane.f32.xlu0 %v537
        %v553 = vpop.xlane.xlu0 %552
        %554 = vadd.xlane.f32.xlu0 %v538
        %v555 = vpop.xlane.xlu0 %554
        %556 = vadd.xlane.f32.xlu0 %v539
        %v557 = vpop.xlane.xlu0 %556
        %v558 = vrcp.pop 128.0
        %v559 = vmul.f32 128.0, %v558
        %v560 = vsub.f32 1.0, %v559
        %v561 = vmul.f32 %v558, %v560
        %v562 = vadd.f32 %v558, %v561
        %vm563 = vweird.f32 %v558
        %v564 = vsel %vm563, %v558, %v562
        %v565 = vmul.f32 %v543, %v564
        %v566 = vmul.f32 %v545, %v564
        %v567 = vmul.f32 %v547, %v564
        %v568 = vmul.f32 %v549, %v564
        %v569 = vmul.f32 %v551, %v564
        %v570 = vmul.f32 %v553, %v564
        %v571 = vmul.f32 %v555, %v564
        %v572 = vmul.f32 %v557, %v564
        %v573 = vsub.f32 %v532, %v565
        %v574 = vsub.f32 %v533, %v566
        %v575 = vsub.f32 %v534, %v567
        %v576 = vsub.f32 %v535, %v568
        %v577 = vsub.f32 %v536, %v569
        %v578 = vsub.f32 %v537, %v570
        %v579 = vsub.f32 %v538, %v571
        %v580 = vsub.f32 %v539, %v572
        %v581 = vmul.f32 %v573, %v573
        %v582 = vmul.f32 %v574, %v574
        %v583 = vmul.f32 %v575, %v575
        %v584 = vmul.f32 %v576, %v576
        %v585 = vmul.f32 %v577, %v577
        %v586 = vmul.f32 %v578, %v578
        %v587 = vmul.f32 %v579, %v579
        %v588 = vmul.f32 %v580, %v580
        %589 = vadd.xlane.f32.xlu0 %v581
        %v590 = vpop.xlane.xlu0 %589
        %591 = vadd.xlane.f32.xlu0 %v582
        %v592 = vpop.xlane.xlu0 %591
        %593 = vadd.xlane.f32.xlu0 %v583
        %v594 = vpop.xlane.xlu0 %593
        %595 = vadd.xlane.f32.xlu0 %v584
        %v596 = vpop.xlane.xlu0 %595
        %597 = vadd.xlane.f32.xlu0 %v585
        %v598 = vpop.xlane.xlu0 %597
        %599 = vadd.xlane.f32.xlu0 %v586
        %v600 = vpop.xlane.xlu0 %599
        %601 = vadd.xlane.f32.xlu0 %v587
        %v602 = vpop.xlane.xlu0 %601
        %603 = vadd.xlane.f32.xlu0 %v588
        %v604 = vpop.xlane.xlu0 %603
        %v605 = vmul.f32 %v590, %v564
        %v606 = vmul.f32 %v592, %v564
        %v607 = vmul.f32 %v594, %v564
        %v608 = vmul.f32 %v596, %v564
        %v609 = vmul.f32 %v598, %v564
        %v610 = vmul.f32 %v600, %v564
        %v611 = vmul.f32 %v602, %v564
        %v612 = vmul.f32 %v604, %v564
        %v613 = vadd.f32 %v605, 1e-05
        %v614 = vadd.f32 %v606, 1e-05
        %v615 = vadd.f32 %v607, 1e-05
        %v616 = vadd.f32 %v608, 1e-05
        %v617 = vadd.f32 %v609, 1e-05
        %v618 = vadd.f32 %v610, 1e-05
        %v619 = vadd.f32 %v611, 1e-05
        %v620 = vadd.f32 %v612, 1e-05
        %v621 = vrsqrt.pop %v613
        %v622 = vmul.f32 %v621, %v613
        %v623 = vmul.f32 %v622, %v621
        %v624 = vmul.f32 0.5, %v623
        %v625 = vsub.f32 1.5, %v624
        %v626 = vmul.f32 %v621, %v625
        %vm627 = vweird.f32 %v613
        %vm628 = vweird.f32 %v621
        %vm629 = vmor %vm627, %vm628
        %v630 = vsel %vm629, %v621, %v626
        %v631 = vrsqrt.pop %v614
        %v632 = vmul.f32 %v631, %v614
        %v633 = vmul.f32 %v632, %v631
        %v634 = vmul.f32 0.5, %v633
        %v635 = vsub.f32 1.5, %v634
        %v636 = vmul.f32 %v631, %v635
        %vm637 = vweird.f32 %v614
        %vm638 = vweird.f32 %v631
        %vm639 = vmor %vm637, %vm638
        %v640 = vsel %vm639, %v631, %v636
        %v641 = vrsqrt.pop %v615
        %v642 = vmul.f32 %v641, %v615
        %v643 = vmul.f32 %v642, %v641
        %v644 = vmul.f32 0.5, %v643
        %v645 = vsub.f32 1.5, %v644
        %v646 = vmul.f32 %v641, %v645
        %vm647 = vweird.f32 %v615
        %vm648 = vweird.f32 %v641
        %vm649 = vmor %vm647, %vm648
        %v650 = vsel %vm649, %v641, %v646
        %v651 = vrsqrt.pop %v616
        %v652 = vmul.f32 %v651, %v616
        %v653 = vmul.f32 %v652, %v651
        %v654 = vmul.f32 0.5, %v653
        %v655 = vsub.f32 1.5, %v654
        %v656 = vmul.f32 %v651, %v655
        %vm657 = vweird.f32 %v616
        %vm658 = vweird.f32 %v651
        %vm659 = vmor %vm657, %vm658
        %v660 = vsel %vm659, %v651, %v656
        %v661 = vrsqrt.pop %v617
        %v662 = vmul.f32 %v661, %v617
        %v663 = vmul.f32 %v662, %v661
        %v664 = vmul.f32 0.5, %v663
        %v665 = vsub.f32 1.5, %v664
        %v666 = vmul.f32 %v661, %v665
        %vm667 = vweird.f32 %v617
        %vm668 = vweird.f32 %v661
        %vm669 = vmor %vm667, %vm668
        %v670 = vsel %vm669, %v661, %v666
        %v671 = vrsqrt.pop %v618
        %v672 = vmul.f32 %v671, %v618
        %v673 = vmul.f32 %v672, %v671
        %v674 = vmul.f32 0.5, %v673
        %v675 = vsub.f32 1.5, %v674
        %v676 = vmul.f32 %v671, %v675
        %vm677 = vweird.f32 %v618
        %vm678 = vweird.f32 %v671
        %vm679 = vmor %vm677, %vm678
        %v680 = vsel %vm679, %v671, %v676
        %v681 = vrsqrt.pop %v619
        %v682 = vmul.f32 %v681, %v619
        %v683 = vmul.f32 %v682, %v681
        %v684 = vmul.f32 0.5, %v683
        %v685 = vsub.f32 1.5, %v684
        %v686 = vmul.f32 %v681, %v685
        %vm687 = vweird.f32 %v619
        %vm688 = vweird.f32 %v681
        %vm689 = vmor %vm687, %vm688
        %v690 = vsel %vm689, %v681, %v686
        %v691 = vrsqrt.pop %v620
        %v692 = vmul.f32 %v691, %v620
        %v693 = vmul.f32 %v692, %v691
        %v694 = vmul.f32 0.5, %v693
        %v695 = vsub.f32 1.5, %v694
        %v696 = vmul.f32 %v691, %v695
        %vm697 = vweird.f32 %v620
        %vm698 = vweird.f32 %v691
        %vm699 = vmor %vm697, %vm698
        %v700 = vsel %vm699, %v691, %v696
        %v701 = vmul.f32 %v573, %v630
        %v702 = vmul.f32 %v574, %v640
        %v703 = vmul.f32 %v575, %v650
        %v704 = vmul.f32 %v576, %v660
        %v705 = vmul.f32 %v577, %v670
        %v706 = vmul.f32 %v578, %v680
        %v707 = vmul.f32 %v579, %v690
        %v708 = vmul.f32 %v580, %v700
        %v710 = vperm.slane %v540, 0
        %v712 = vmul.f32 %v701, %v710
        %v713 = vmul.f32 %v702, %v710
        %v714 = vmul.f32 %v703, %v710
        %v715 = vmul.f32 %v704, %v710
        %v716 = vmul.f32 %v705, %v710
        %v717 = vmul.f32 %v706, %v710
        %v718 = vmul.f32 %v707, %v710
        %v719 = vmul.f32 %v708, %v710
        %v721 = vperm.slane %v541, 0
        %v723 = vadd.f32 %v712, %v721
        %v724 = vadd.f32 %v713, %v721
        %v725 = vadd.f32 %v714, %v721
        %v726 = vadd.f32 %v715, %v721
        %v727 = vadd.f32 %v716, %v721
        %v728 = vadd.f32 %v717, %v721
        %v729 = vadd.f32 %v718, %v721
        %v730 = vadd.f32 %v719, %v721
        %v731 = vpack.c.bf16 %v724, %v723
        %v732 = vpack.c.bf16 %v726, %v725
        %v733 = vpack.c.bf16 %v728, %v727
        %v734 = vpack.c.bf16 %v730, %v729
        %v735 = vld [vmem:[#allocation5] sm:$0xff]
        %v736 = vld [vmem:[#allocation5 + $0x8] sm:$0xf]
        %v737 = vld [vmem:[#allocation5 + $0xc] sm:$0xff]
        %v738 = vld [vmem:[#allocation5 + $0x14] sm:$0xf]
        %v739 = vld [vmem:[#allocation5 + $0x18] sm:$0xff]
        %v740 = vld [vmem:[#allocation5 + $0x20] sm:$0xf]
        %v741 = vld [vmem:[#allocation5 + $0x24] sm:$0xff]
        %v742 = vld [vmem:[#allocation5 + $0x2c] sm:$0xf]
        %v743 = vld [vmem:[#allocation5 + $0x30] sm:$0xff]
        %v744 = vld [vmem:[#allocation5 + $0x38] sm:$0xf]
        %v745 = vld [vmem:[#allocation5 + $0x3c] sm:$0xff]
        %v746 = vld [vmem:[#allocation5 + $0x44] sm:$0xf]
        %v747 = vld [vmem:[#allocation5 + $0x48] sm:$0xff]
        %v748 = vld [vmem:[#allocation5 + $0x50] sm:$0xf]
        %v749 = vld [vmem:[#allocation5 + $0x54] sm:$0xff]
        %v750 = vld [vmem:[#allocation5 + $0x5c] sm:$0xf]
        %v751 = vld [vmem:[#allocation5 + $0x60] sm:$0xff]
        %v752 = vld [vmem:[#allocation5 + $0x68] sm:$0xf]
        %v753 = vld [vmem:[#allocation5 + $0x6c] sm:$0xff]
        %v754 = vld [vmem:[#allocation5 + $0x74] sm:$0xf]
        %v755 = vld [vmem:[#allocation5 + $0x78] sm:$0xff]
        %v756 = vld [vmem:[#allocation5 + $0x80] sm:$0xf]
        %v757 = vld [vmem:[#allocation5 + $0x84] sm:$0xff]
        %v758 = vld [vmem:[#allocation5 + $0x8c] sm:$0xf]
        %v759 = vld [vmem:[#allocation5 + $0x90] sm:$0xff]
        %v760 = vld [vmem:[#allocation5 + $0x98] sm:$0xf]
        %v761 = vld [vmem:[#allocation5 + $0x9c] sm:$0xff]
        %v762 = vld [vmem:[#allocation5 + $0xa4] sm:$0xf]
        %v763 = vld [vmem:[#allocation5 + $0xa8] sm:$0xff]
        %v764 = vld [vmem:[#allocation5 + $0xb0] sm:$0xf]
        %v765 = vld [vmem:[#allocation5 + $0xb4] sm:$0xff]
        %v766 = vld [vmem:[#allocation5 + $0xbc] sm:$0xf]
        %v799 = vunpack.c.l.b16 %v735
        %v800 = vunpack.c.h.b16 %v735
        %v801 = vunpack.c.l.b16 %v736
        %v802 = vunpack.c.l.b16 %v737
        %v803 = vunpack.c.h.b16 %v737
        %v804 = vunpack.c.l.b16 %v738
        %v805 = vunpack.c.l.b16 %v739
        %v806 = vunpack.c.h.b16 %v739
        %v807 = vunpack.c.l.b16 %v740
        %v808 = vunpack.c.l.b16 %v741
        %v809 = vunpack.c.h.b16 %v741
        %v810 = vunpack.c.l.b16 %v742
        %v811 = vunpack.c.l.b16 %v743
        %v812 = vunpack.c.h.b16 %v743
        %v813 = vunpack.c.l.b16 %v744
        %v814 = vunpack.c.l.b16 %v745
        %v815 = vunpack.c.h.b16 %v745
        %v816 = vunpack.c.l.b16 %v746
        %v817 = vunpack.c.l.b16 %v747
        %v818 = vunpack.c.h.b16 %v747
        %v819 = vunpack.c.l.b16 %v748
        %v820 = vunpack.c.l.b16 %v749
        %v821 = vunpack.c.h.b16 %v749
        %v822 = vunpack.c.l.b16 %v750
        %v823 = vunpack.c.l.b16 %v751
        %v824 = vunpack.c.h.b16 %v751
        %v825 = vunpack.c.l.b16 %v752
        %v826 = vunpack.c.l.b16 %v753
        %v827 = vunpack.c.h.b16 %v753
        %v828 = vunpack.c.l.b16 %v754
        %v829 = vunpack.c.l.b16 %v755
        %v830 = vunpack.c.h.b16 %v755
        %v831 = vunpack.c.l.b16 %v756
        %v832 = vunpack.c.l.b16 %v757
        %v833 = vunpack.c.h.b16 %v757
        %v834 = vunpack.c.l.b16 %v758
        %v835 = vunpack.c.l.b16 %v759
        %v836 = vunpack.c.h.b16 %v759
        %v837 = vunpack.c.l.b16 %v760
        %v838 = vunpack.c.l.b16 %v761
        %v839 = vunpack.c.h.b16 %v761
        %v840 = vunpack.c.l.b16 %v762
        %v841 = vunpack.c.l.b16 %v763
        %v842 = vunpack.c.h.b16 %v763
        %v843 = vunpack.c.l.b16 %v764
        %v844 = vunpack.c.l.b16 %v765
        %v845 = vunpack.c.h.b16 %v765
        %v846 = vunpack.c.l.b16 %v766
        %v847 = vpack.c.b16 %v802, %v799
        %v848 = vpack.c.b16 %v803, %v800
        %v849 = vpack.c.b16 %v804, %v801
        %v850 = vpack.c.b16 %v808, %v805
        %v851 = vpack.c.b16 %v809, %v806
        %v852 = vpack.c.b16 %v810, %v807
        %v853 = vpack.c.b16 %v814, %v811
        %v854 = vpack.c.b16 %v815, %v812
        %v855 = vpack.c.b16 %v816, %v813
        %v856 = vpack.c.b16 %v820, %v817
        %v857 = vpack.c.b16 %v821, %v818
        %v858 = vpack.c.b16 %v822, %v819
        %v859 = vpack.c.b16 %v826, %v823
        %v860 = vpack.c.b16 %v827, %v824
        %v861 = vpack.c.b16 %v828, %v825
        %v862 = vpack.c.b16 %v832, %v829
        %v863 = vpack.c.b16 %v833, %v830
        %v864 = vpack.c.b16 %v834, %v831
        %v865 = vpack.c.b16 %v838, %v835
        %v866 = vpack.c.b16 %v839, %v836
        %v867 = vpack.c.b16 %v840, %v837
        %v868 = vpack.c.b16 %v844, %v841
        %v869 = vpack.c.b16 %v845, %v842
        %v870 = vpack.c.b16 %v846, %v843
        %895 = vmatpush.bf16.msra.mxu0 %v868
        %896 = vmatpush.bf16.msra.mxu0 %v865
        %897 = vmatpush.bf16.msra.mxu0 %v862
        %898 = vmatpush.bf16.msra.mxu0 %v859
        %899 = vmatpush.bf16.msra.mxu0 %v856
        %900 = vmatpush.bf16.msra.mxu0 %v853
        %901 = vmatpush.bf16.msra.mxu0 %v850
        %902 = vmatpush.bf16.msra.mxu0 %v847
        %903 = vmatmul.bf16.gmra.mxu0 %v731
        %v904 = vpop.f32.mrf.mxu0
        %v905 = vadd.f32 0.0, %v904
        %v906 = vpop.f32.mrf.mxu0
        %v907 = vadd.f32 0.0, %v906
        %908 = vmatmul.bf16.gmra.mxu0 %v732
        %v909 = vpop.f32.mrf.mxu0
        %v910 = vadd.f32 0.0, %v909
        %v911 = vpop.f32.mrf.mxu0
        %v912 = vadd.f32 0.0, %v911
        %913 = vmatmul.bf16.gmra.mxu0 %v733
        %v914 = vpop.f32.mrf.mxu0
        %v915 = vadd.f32 0.0, %v914
        %v916 = vpop.f32.mrf.mxu0
        %v917 = vadd.f32 0.0, %v916
        %918 = vmatmul.bf16.gmra.mxu0 %v734
        %v919 = vpop.f32.mrf.mxu0
        %v920 = vadd.f32 0.0, %v919
        %v921 = vpop.f32.mrf.mxu0
        %v922 = vadd.f32 0.0, %v921
        %923 = vdwg.mxu0
        %924 = vmatpush.bf16.msra.mxu0 %v869
        %925 = vmatpush.bf16.msra.mxu0 %v866
        %926 = vmatpush.bf16.msra.mxu0 %v863
        %927 = vmatpush.bf16.msra.mxu0 %v860
        %928 = vmatpush.bf16.msra.mxu0 %v857
        %929 = vmatpush.bf16.msra.mxu0 %v854
        %930 = vmatpush.bf16.msra.mxu0 %v851
        %931 = vmatpush.bf16.msra.mxu0 %v848
        %932 = vmatmul.bf16.gmra.mxu0 %v731
        %v933 = vpop.f32.mrf.mxu0
        %v934 = vadd.f32 0.0, %v933
        %v935 = vpop.f32.mrf.mxu0
        %v936 = vadd.f32 0.0, %v935
        %937 = vmatmul.bf16.gmra.mxu0 %v732
        %v938 = vpop.f32.mrf.mxu0
        %v939 = vadd.f32 0.0, %v938
        %v940 = vpop.f32.mrf.mxu0
        %v941 = vadd.f32 0.0, %v940
        %942 = vmatmul.bf16.gmra.mxu0 %v733
        %v943 = vpop.f32.mrf.mxu0
        %v944 = vadd.f32 0.0, %v943
        %v945 = vpop.f32.mrf.mxu0
        %v946 = vadd.f32 0.0, %v945
        %947 = vmatmul.bf16.gmra.mxu0 %v734
        %v948 = vpop.f32.mrf.mxu0
        %v949 = vadd.f32 0.0, %v948
        %v950 = vpop.f32.mrf.mxu0
        %v951 = vadd.f32 0.0, %v950
        %952 = vdwg.mxu0
        %953 = vmatpush.bf16.msra.mxu0 %v870
        %954 = vmatpush.bf16.msra.mxu0 %v867
        %955 = vmatpush.bf16.msra.mxu0 %v864
        %956 = vmatpush.bf16.msra.mxu0 %v861
        %957 = vmatpush.bf16.msra.mxu0 %v858
        %958 = vmatpush.bf16.msra.mxu0 %v855
        %959 = vmatpush.bf16.msra.mxu0 %v852
        %960 = vmatpush.bf16.msra.mxu0 %v849
        %961 = vmatmul.bf16.gmra.mxu0 %v731
        %v962 = vpop.f32.mrf.mxu0
        %v963 = vadd.f32 0.0, %v962
        %v964 = vpop.f32.mrf.mxu0
        %v965 = vadd.f32 0.0, %v964
        %966 = vmatmul.bf16.gmra.mxu0 %v732
        %v967 = vpop.f32.mrf.mxu0
        %v968 = vadd.f32 0.0, %v967
        %v969 = vpop.f32.mrf.mxu0
        %v970 = vadd.f32 0.0, %v969
        %971 = vmatmul.bf16.gmra.mxu0 %v733
        %v972 = vpop.f32.mrf.mxu0
        %v973 = vadd.f32 0.0, %v972
        %v974 = vpop.f32.mrf.mxu0
        %v975 = vadd.f32 0.0, %v974
        %976 = vmatmul.bf16.gmra.mxu0 %v734
        %v977 = vpop.f32.mrf.mxu0
        %v978 = vadd.f32 0.0, %v977
        %v979 = vpop.f32.mrf.mxu0
        %v980 = vadd.f32 0.0, %v979
        %981 = vdwg.mxu0
        %v982 = vpack.c.bf16 %v934, %v905
        %v983 = vpack.c.bf16 %v963, %v963
        %v984 = vpack.c.bf16 %v936, %v907
        %v985 = vpack.c.bf16 %v965, %v965
        %v986 = vpack.c.bf16 %v939, %v910
        %v987 = vpack.c.bf16 %v968, %v968
        %v988 = vpack.c.bf16 %v941, %v912
        %v989 = vpack.c.bf16 %v970, %v970
        %v990 = vpack.c.bf16 %v944, %v915
        %v991 = vpack.c.bf16 %v973, %v973
        %v992 = vpack.c.bf16 %v946, %v917
        %v993 = vpack.c.bf16 %v975, %v975
        %v994 = vpack.c.bf16 %v949, %v920
        %v995 = vpack.c.bf16 %v978, %v978
        %v996 = vpack.c.bf16 %v951, %v922
        %v997 = vpack.c.bf16 %v980, %v980
        %1006 = vrot.lane.b32.xlu0 %v982, 96
        %v1007 = vpop.permute.xlu0 %1006
        %1008 = vrot.lane.b32.xlu0 %v984, 96
        %v1009 = vpop.permute.xlu0 %1008
        %1010 = vrot.lane.b32.xlu0 %v986, 96
        %v1011 = vpop.permute.xlu0 %1010
        %1012 = vrot.lane.b32.xlu0 %v988, 96
        %v1013 = vpop.permute.xlu0 %1012
        %1014 = vrot.lane.b32.xlu0 %v990, 96
        %v1015 = vpop.permute.xlu0 %1014
        %1016 = vrot.lane.b32.xlu0 %v992, 96
        %v1017 = vpop.permute.xlu0 %1016
        %1018 = vrot.lane.b32.xlu0 %v994, 96
        %v1019 = vpop.permute.xlu0 %1018
        %1020 = vrot.lane.b32.xlu0 %v996, 96
        %v1021 = vpop.permute.xlu0 %1020
        %1022 = vrot.lane.b32.xlu0 %v982, 64
        %v1023 = vpop.permute.xlu0 %1022
        %1024 = vrot.lane.b32.xlu0 %v984, 64
        %v1025 = vpop.permute.xlu0 %1024
        %1026 = vrot.lane.b32.xlu0 %v986, 64
        %v1027 = vpop.permute.xlu0 %1026
        %1028 = vrot.lane.b32.xlu0 %v988, 64
        %v1029 = vpop.permute.xlu0 %1028
        %1030 = vrot.lane.b32.xlu0 %v990, 64
        %v1031 = vpop.permute.xlu0 %1030
        %1032 = vrot.lane.b32.xlu0 %v992, 64
        %v1033 = vpop.permute.xlu0 %1032
        %1034 = vrot.lane.b32.xlu0 %v994, 64
        %v1035 = vpop.permute.xlu0 %1034
        %1036 = vrot.lane.b32.xlu0 %v996, 64
        %v1037 = vpop.permute.xlu0 %1036
        %1038 = vrot.lane.b32.xlu0 %v982, 32
        %v1039 = vpop.permute.xlu0 %1038
        %1040 = vrot.lane.b32.xlu0 %v984, 32
        %v1041 = vpop.permute.xlu0 %1040
        %1042 = vrot.lane.b32.xlu0 %v986, 32
        %v1043 = vpop.permute.xlu0 %1042
        %1044 = vrot.lane.b32.xlu0 %v988, 32
        %v1045 = vpop.permute.xlu0 %1044
        %1046 = vrot.lane.b32.xlu0 %v990, 32
        %v1047 = vpop.permute.xlu0 %1046
        %1048 = vrot.lane.b32.xlu0 %v992, 32
        %v1049 = vpop.permute.xlu0 %1048
        %1050 = vrot.lane.b32.xlu0 %v994, 32
        %v1051 = vpop.permute.xlu0 %1050
        %1052 = vrot.lane.b32.xlu0 %v996, 32
        %v1053 = vpop.permute.xlu0 %1052
        %v1056 = vpack.i.b16 %v1007, %v982
        %v1057 = vshrl.u32 %v982, 16
        %v1058 = vshrl.u32 %v1007, 16
        %v1059 = vpack.i.b16 %v1058, %v1057
        %v1062 = vpack.i.b16 %v1039, %v1023
        %v1063 = vshrl.u32 %v1023, 16
        %v1064 = vshrl.u32 %v1039, 16
        %v1065 = vpack.i.b16 %v1064, %v1063
        %v1068 = vpack.i.b16 %v1009, %v984
        %v1069 = vshrl.u32 %v984, 16
        %v1070 = vshrl.u32 %v1009, 16
        %v1071 = vpack.i.b16 %v1070, %v1069
        %v1074 = vpack.i.b16 %v1041, %v1025
        %v1075 = vshrl.u32 %v1025, 16
        %v1076 = vshrl.u32 %v1041, 16
        %v1077 = vpack.i.b16 %v1076, %v1075
        %v1080 = vpack.i.b16 %v1011, %v986
        %v1081 = vshrl.u32 %v986, 16
        %v1082 = vshrl.u32 %v1011, 16
        %v1083 = vpack.i.b16 %v1082, %v1081
        %v1086 = vpack.i.b16 %v1043, %v1027
        %v1087 = vshrl.u32 %v1027, 16
        %v1088 = vshrl.u32 %v1043, 16
        %v1089 = vpack.i.b16 %v1088, %v1087
        %v1092 = vpack.i.b16 %v1013, %v988
        %v1093 = vshrl.u32 %v988, 16
        %v1094 = vshrl.u32 %v1013, 16
        %v1095 = vpack.i.b16 %v1094, %v1093
        %v1098 = vpack.i.b16 %v1045, %v1029
        %v1099 = vshrl.u32 %v1029, 16
        %v1100 = vshrl.u32 %v1045, 16
        %v1101 = vpack.i.b16 %v1100, %v1099
        %v1104 = vpack.i.b16 %v1015, %v990
        %v1105 = vshrl.u32 %v990, 16
        %v1106 = vshrl.u32 %v1015, 16
        %v1107 = vpack.i.b16 %v1106, %v1105
        %v1110 = vpack.i.b16 %v1047, %v1031
        %v1111 = vshrl.u32 %v1031, 16
        %v1112 = vshrl.u32 %v1047, 16
        %v1113 = vpack.i.b16 %v1112, %v1111
        %v1116 = vpack.i.b16 %v1017, %v992
        %v1117 = vshrl.u32 %v992, 16
        %v1118 = vshrl.u32 %v1017, 16
        %v1119 = vpack.i.b16 %v1118, %v1117
        %v1122 = vpack.i.b16 %v1049, %v1033
        %v1123 = vshrl.u32 %v1033, 16
        %v1124 = vshrl.u32 %v1049, 16
        %v1125 = vpack.i.b16 %v1124, %v1123
        %v1128 = vpack.i.b16 %v1019, %v994
        %v1129 = vshrl.u32 %v994, 16
        %v1130 = vshrl.u32 %v1019, 16
        %v1131 = vpack.i.b16 %v1130, %v1129
        %v1134 = vpack.i.b16 %v1051, %v1035
        %v1135 = vshrl.u32 %v1035, 16
        %v1136 = vshrl.u32 %v1051, 16
        %v1137 = vpack.i.b16 %v1136, %v1135
        %v1140 = vpack.i.b16 %v1021, %v996
        %v1141 = vshrl.u32 %v996, 16
        %v1142 = vshrl.u32 %v1021, 16
        %v1143 = vpack.i.b16 %v1142, %v1141
        %v1146 = vpack.i.b16 %v1053, %v1037
        %v1147 = vshrl.u32 %v1037, 16
        %v1148 = vshrl.u32 %v1053, 16
        %v1149 = vpack.i.b16 %v1148, %v1147
        %v1152 = vunpack.c.l.s4 1983009808
        %v1153 = vunpack.c.0.s8 %v1152
        %v1154 = vperm.slane %v1056, %v1153
        %v1157 = vunpack.c.l.s4 1983009808
        %v1158 = vunpack.c.0.s8 %v1157
        %v1159 = vperm.slane %v1062, %v1158
        %v1160 = vrot.slane %v1159, 4
        %vm1161 = vcmask 1047556
        %v1162 = vsel %vm1161, %v1160, %v1154
        %v1163 = vrot.slane %v1154, 4
        %v1164 = vsel %vm1161, %v1159, %v1163
        %v1166 = vunpack.c.l.s4 1934713408
        %v1167 = vunpack.c.0.s8 %v1166
        %v1168 = vperm.slane %v1162, %v1167
        %v1170 = vunpack.c.l.s4 1934713408
        %v1171 = vunpack.c.0.s8 %v1170
        %v1172 = vperm.slane %v1164, %v1171
        %v1173 = vrot.slane %v1168, 4
        %v1174 = vsel %vm1161, 0, %v1173
        %v1175 = vrot.slane %v1172, 4
        %v1176 = vsel %vm1161, 0, %v1175
        %v1179 = vunpack.c.l.s4 1983009808
        %v1180 = vunpack.c.0.s8 %v1179
        %v1181 = vperm.slane %v1059, %v1180
        %v1184 = vunpack.c.l.s4 1983009808
        %v1185 = vunpack.c.0.s8 %v1184
        %v1186 = vperm.slane %v1065, %v1185
        %v1187 = vrot.slane %v1186, 4
        %v1188 = vsel %vm1161, %v1187, %v1181
        %v1189 = vrot.slane %v1181, 4
        %v1190 = vsel %vm1161, %v1186, %v1189
        %v1192 = vunpack.c.l.s4 1934713408
        %v1193 = vunpack.c.0.s8 %v1192
        %v1194 = vperm.slane %v1188, %v1193
        %v1196 = vunpack.c.l.s4 1934713408
        %v1197 = vunpack.c.0.s8 %v1196
        %v1198 = vperm.slane %v1190, %v1197
        %v1199 = vrot.slane %v1194, 4
        %v1200 = vsel %vm1161, 0, %v1199
        %v1201 = vrot.slane %v1198, 4
        %v1202 = vsel %vm1161, 0, %v1201
        %v1205 = vunpack.c.l.s4 1983009808
        %v1206 = vunpack.c.0.s8 %v1205
        %v1207 = vperm.slane %v1068, %v1206
        %v1210 = vunpack.c.l.s4 1983009808
        %v1211 = vunpack.c.0.s8 %v1210
        %v1212 = vperm.slane %v1074, %v1211
        %v1213 = vrot.slane %v1212, 4
        %v1214 = vsel %vm1161, %v1213, %v1207
        %v1215 = vrot.slane %v1207, 4
        %v1216 = vsel %vm1161, %v1212, %v1215
        %v1218 = vunpack.c.l.s4 1934713408
        %v1219 = vunpack.c.0.s8 %v1218
        %v1220 = vperm.slane %v1214, %v1219
        %v1222 = vunpack.c.l.s4 1934713408
        %v1223 = vunpack.c.0.s8 %v1222
        %v1224 = vperm.slane %v1216, %v1223
        %v1225 = vrot.slane %v1220, 4
        %v1226 = vsel %vm1161, 0, %v1225
        %v1227 = vrot.slane %v1224, 4
        %v1228 = vsel %vm1161, 0, %v1227
        %v1231 = vunpack.c.l.s4 1983009808
        %v1232 = vunpack.c.0.s8 %v1231
        %v1233 = vperm.slane %v1071, %v1232
        %v1236 = vunpack.c.l.s4 1983009808
        %v1237 = vunpack.c.0.s8 %v1236
        %v1238 = vperm.slane %v1077, %v1237
        %v1239 = vrot.slane %v1238, 4
        %v1240 = vsel %vm1161, %v1239, %v1233
        %v1241 = vrot.slane %v1233, 4
        %v1242 = vsel %vm1161, %v1238, %v1241
        %v1244 = vunpack.c.l.s4 1934713408
        %v1245 = vunpack.c.0.s8 %v1244
        %v1246 = vperm.slane %v1240, %v1245
        %v1248 = vunpack.c.l.s4 1934713408
        %v1249 = vunpack.c.0.s8 %v1248
        %v1250 = vperm.slane %v1242, %v1249
        %v1251 = vrot.slane %v1246, 4
        %v1252 = vsel %vm1161, 0, %v1251
        %v1253 = vrot.slane %v1250, 4
        %v1254 = vsel %vm1161, 0, %v1253
        %v1257 = vunpack.c.l.s4 1983009808
        %v1258 = vunpack.c.0.s8 %v1257
        %v1259 = vperm.slane %v1080, %v1258
        %v1262 = vunpack.c.l.s4 1983009808
        %v1263 = vunpack.c.0.s8 %v1262
        %v1264 = vperm.slane %v1086, %v1263
        %v1265 = vrot.slane %v1264, 4
        %v1266 = vsel %vm1161, %v1265, %v1259
        %v1267 = vrot.slane %v1259, 4
        %v1268 = vsel %vm1161, %v1264, %v1267
        %v1270 = vunpack.c.l.s4 1934713408
        %v1271 = vunpack.c.0.s8 %v1270
        %v1272 = vperm.slane %v1266, %v1271
        %v1274 = vunpack.c.l.s4 1934713408
        %v1275 = vunpack.c.0.s8 %v1274
        %v1276 = vperm.slane %v1268, %v1275
        %v1277 = vrot.slane %v1272, 4
        %v1278 = vsel %vm1161, 0, %v1277
        %v1279 = vrot.slane %v1276, 4
        %v1280 = vsel %vm1161, 0, %v1279
        %v1283 = vunpack.c.l.s4 1983009808
        %v1284 = vunpack.c.0.s8 %v1283
        %v1285 = vperm.slane %v1083, %v1284
        %v1288 = vunpack.c.l.s4 1983009808
        %v1289 = vunpack.c.0.s8 %v1288
        %v1290 = vperm.slane %v1089, %v1289
        %v1291 = vrot.slane %v1290, 4
        %v1292 = vsel %vm1161, %v1291, %v1285
        %v1293 = vrot.slane %v1285, 4
        %v1294 = vsel %vm1161, %v1290, %v1293
        %v1296 = vunpack.c.l.s4 1934713408
        %v1297 = vunpack.c.0.s8 %v1296
        %v1298 = vperm.slane %v1292, %v1297
        %v1300 = vunpack.c.l.s4 1934713408
        %v1301 = vunpack.c.0.s8 %v1300
        %v1302 = vperm.slane %v1294, %v1301
        %v1303 = vrot.slane %v1298, 4
        %v1304 = vsel %vm1161, 0, %v1303
        %v1305 = vrot.slane %v1302, 4
        %v1306 = vsel %vm1161, 0, %v1305
        %v1309 = vunpack.c.l.s4 1983009808
        %v1310 = vunpack.c.0.s8 %v1309
        %v1311 = vperm.slane %v1092, %v1310
        %v1314 = vunpack.c.l.s4 1983009808
        %v1315 = vunpack.c.0.s8 %v1314
        %v1316 = vperm.slane %v1098, %v1315
        %v1317 = vrot.slane %v1316, 4
        %v1318 = vsel %vm1161, %v1317, %v1311
        %v1319 = vrot.slane %v1311, 4
        %v1320 = vsel %vm1161, %v1316, %v1319
        %v1322 = vunpack.c.l.s4 1934713408
        %v1323 = vunpack.c.0.s8 %v1322
        %v1324 = vperm.slane %v1318, %v1323
        %v1326 = vunpack.c.l.s4 1934713408
        %v1327 = vunpack.c.0.s8 %v1326
        %v1328 = vperm.slane %v1320, %v1327
        %v1329 = vrot.slane %v1324, 4
        %v1330 = vsel %vm1161, 0, %v1329
        %v1331 = vrot.slane %v1328, 4
        %v1332 = vsel %vm1161, 0, %v1331
        %v1335 = vunpack.c.l.s4 1983009808
        %v1336 = vunpack.c.0.s8 %v1335
        %v1337 = vperm.slane %v1095, %v1336
        %v1340 = vunpack.c.l.s4 1983009808
        %v1341 = vunpack.c.0.s8 %v1340
        %v1342 = vperm.slane %v1101, %v1341
        %v1343 = vrot.slane %v1342, 4
        %v1344 = vsel %vm1161, %v1343, %v1337
        %v1345 = vrot.slane %v1337, 4
        %v1346 = vsel %vm1161, %v1342, %v1345
        %v1348 = vunpack.c.l.s4 1934713408
        %v1349 = vunpack.c.0.s8 %v1348
        %v1350 = vperm.slane %v1344, %v1349
        %v1352 = vunpack.c.l.s4 1934713408
        %v1353 = vunpack.c.0.s8 %v1352
        %v1354 = vperm.slane %v1346, %v1353
        %v1355 = vrot.slane %v1350, 4
        %v1356 = vsel %vm1161, 0, %v1355
        %v1357 = vrot.slane %v1354, 4
        %v1358 = vsel %vm1161, 0, %v1357
        %v1361 = vunpack.c.l.s4 1983009808
        %v1362 = vunpack.c.0.s8 %v1361
        %v1363 = vperm.slane %v1104, %v1362
        %v1366 = vunpack.c.l.s4 1983009808
        %v1367 = vunpack.c.0.s8 %v1366
        %v1368 = vperm.slane %v1110, %v1367
        %v1369 = vrot.slane %v1368, 4
        %v1370 = vsel %vm1161, %v1369, %v1363
        %v1371 = vrot.slane %v1363, 4
        %v1372 = vsel %vm1161, %v1368, %v1371
        %v1374 = vunpack.c.l.s4 1934713408
        %v1375 = vunpack.c.0.s8 %v1374
        %v1376 = vperm.slane %v1370, %v1375
        %v1378 = vunpack.c.l.s4 1934713408
        %v1379 = vunpack.c.0.s8 %v1378
        %v1380 = vperm.slane %v1372, %v1379
        %v1381 = vrot.slane %v1376, 4
        %v1382 = vsel %vm1161, 0, %v1381
        %v1383 = vrot.slane %v1380, 4
        %v1384 = vsel %vm1161, 0, %v1383
        %v1387 = vunpack.c.l.s4 1983009808
        %v1388 = vunpack.c.0.s8 %v1387
        %v1389 = vperm.slane %v1107, %v1388
        %v1392 = vunpack.c.l.s4 1983009808
        %v1393 = vunpack.c.0.s8 %v1392
        %v1394 = vperm.slane %v1113, %v1393
        %v1395 = vrot.slane %v1394, 4
        %v1396 = vsel %vm1161, %v1395, %v1389
        %v1397 = vrot.slane %v1389, 4
        %v1398 = vsel %vm1161, %v1394, %v1397
        %v1400 = vunpack.c.l.s4 1934713408
        %v1401 = vunpack.c.0.s8 %v1400
        %v1402 = vperm.slane %v1396, %v1401
        %v1404 = vunpack.c.l.s4 1934713408
        %v1405 = vunpack.c.0.s8 %v1404
        %v1406 = vperm.slane %v1398, %v1405
        %v1407 = vrot.slane %v1402, 4
        %v1408 = vsel %vm1161, 0, %v1407
        %v1409 = vrot.slane %v1406, 4
        %v1410 = vsel %vm1161, 0, %v1409
        %v1413 = vunpack.c.l.s4 1983009808
        %v1414 = vunpack.c.0.s8 %v1413
        %v1415 = vperm.slane %v1116, %v1414
        %v1418 = vunpack.c.l.s4 1983009808
        %v1419 = vunpack.c.0.s8 %v1418
        %v1420 = vperm.slane %v1122, %v1419
        %v1421 = vrot.slane %v1420, 4
        %v1422 = vsel %vm1161, %v1421, %v1415
        %v1423 = vrot.slane %v1415, 4
        %v1424 = vsel %vm1161, %v1420, %v1423
        %v1426 = vunpack.c.l.s4 1934713408
        %v1427 = vunpack.c.0.s8 %v1426
        %v1428 = vperm.slane %v1422, %v1427
        %v1430 = vunpack.c.l.s4 1934713408
        %v1431 = vunpack.c.0.s8 %v1430
        %v1432 = vperm.slane %v1424, %v1431
        %v1433 = vrot.slane %v1428, 4
        %v1434 = vsel %vm1161, 0, %v1433
        %v1435 = vrot.slane %v1432, 4
        %v1436 = vsel %vm1161, 0, %v1435
        %v1439 = vunpack.c.l.s4 1983009808
        %v1440 = vunpack.c.0.s8 %v1439
        %v1441 = vperm.slane %v1119, %v1440
        %v1444 = vunpack.c.l.s4 1983009808
        %v1445 = vunpack.c.0.s8 %v1444
        %v1446 = vperm.slane %v1125, %v1445
        %v1447 = vrot.slane %v1446, 4
        %v1448 = vsel %vm1161, %v1447, %v1441
        %v1449 = vrot.slane %v1441, 4
        %v1450 = vsel %vm1161, %v1446, %v1449
        %v1452 = vunpack.c.l.s4 1934713408
        %v1453 = vunpack.c.0.s8 %v1452
        %v1454 = vperm.slane %v1448, %v1453
        %v1456 = vunpack.c.l.s4 1934713408
        %v1457 = vunpack.c.0.s8 %v1456
        %v1458 = vperm.slane %v1450, %v1457
        %v1459 = vrot.slane %v1454, 4
        %v1460 = vsel %vm1161, 0, %v1459
        %v1461 = vrot.slane %v1458, 4
        %v1462 = vsel %vm1161, 0, %v1461
        %v1465 = vunpack.c.l.s4 1983009808
        %v1466 = vunpack.c.0.s8 %v1465
        %v1467 = vperm.slane %v1128, %v1466
        %v1470 = vunpack.c.l.s4 1983009808
        %v1471 = vunpack.c.0.s8 %v1470
        %v1472 = vperm.slane %v1134, %v1471
        %v1473 = vrot.slane %v1472, 4
        %v1474 = vsel %vm1161, %v1473, %v1467
        %v1475 = vrot.slane %v1467, 4
        %v1476 = vsel %vm1161, %v1472, %v1475
        %v1478 = vunpack.c.l.s4 1934713408
        %v1479 = vunpack.c.0.s8 %v1478
        %v1480 = vperm.slane %v1474, %v1479
        %v1482 = vunpack.c.l.s4 1934713408
        %v1483 = vunpack.c.0.s8 %v1482
        %v1484 = vperm.slane %v1476, %v1483
        %v1485 = vrot.slane %v1480, 4
        %v1486 = vsel %vm1161, 0, %v1485
        %v1487 = vrot.slane %v1484, 4
        %v1488 = vsel %vm1161, 0, %v1487
        %v1491 = vunpack.c.l.s4 1983009808
        %v1492 = vunpack.c.0.s8 %v1491
        %v1493 = vperm.slane %v1131, %v1492
        %v1496 = vunpack.c.l.s4 1983009808
        %v1497 = vunpack.c.0.s8 %v1496
        %v1498 = vperm.slane %v1137, %v1497
        %v1499 = vrot.slane %v1498, 4
        %v1500 = vsel %vm1161, %v1499, %v1493
        %v1501 = vrot.slane %v1493, 4
        %v1502 = vsel %vm1161, %v1498, %v1501
        %v1504 = vunpack.c.l.s4 1934713408
        %v1505 = vunpack.c.0.s8 %v1504
        %v1506 = vperm.slane %v1500, %v1505
        %v1508 = vunpack.c.l.s4 1934713408
        %v1509 = vunpack.c.0.s8 %v1508
        %v1510 = vperm.slane %v1502, %v1509
        %v1511 = vrot.slane %v1506, 4
        %v1512 = vsel %vm1161, 0, %v1511
        %v1513 = vrot.slane %v1510, 4
        %v1514 = vsel %vm1161, 0, %v1513
        %v1517 = vunpack.c.l.s4 1983009808
        %v1518 = vunpack.c.0.s8 %v1517
        %v1519 = vperm.slane %v1140, %v1518
        %v1522 = vunpack.c.l.s4 1983009808
        %v1523 = vunpack.c.0.s8 %v1522
        %v1524 = vperm.slane %v1146, %v1523
        %v1525 = vrot.slane %v1524, 4
        %v1526 = vsel %vm1161, %v1525, %v1519
        %v1527 = vrot.slane %v1519, 4
        %v1528 = vsel %vm1161, %v1524, %v1527
        %v1530 = vunpack.c.l.s4 1934713408
        %v1531 = vunpack.c.0.s8 %v1530
        %v1532 = vperm.slane %v1526, %v1531
        %v1534 = vunpack.c.l.s4 1934713408
        %v1535 = vunpack.c.0.s8 %v1534
        %v1536 = vperm.slane %v1528, %v1535
        %v1537 = vrot.slane %v1532, 4
        %v1538 = vsel %vm1161, 0, %v1537
        %v1539 = vrot.slane %v1536, 4
        %v1540 = vsel %vm1161, 0, %v1539
        %v1543 = vunpack.c.l.s4 1983009808
        %v1544 = vunpack.c.0.s8 %v1543
        %v1545 = vperm.slane %v1143, %v1544
        %v1548 = vunpack.c.l.s4 1983009808
        %v1549 = vunpack.c.0.s8 %v1548
        %v1550 = vperm.slane %v1149, %v1549
        %v1551 = vrot.slane %v1550, 4
        %v1552 = vsel %vm1161, %v1551, %v1545
        %v1553 = vrot.slane %v1545, 4
        %v1554 = vsel %vm1161, %v1550, %v1553
        %v1556 = vunpack.c.l.s4 1934713408
        %v1557 = vunpack.c.0.s8 %v1556
        %v1558 = vperm.slane %v1552, %v1557
        %v1560 = vunpack.c.l.s4 1934713408
        %v1561 = vunpack.c.0.s8 %v1560
        %v1562 = vperm.slane %v1554, %v1561
        %v1563 = vrot.slane %v1558, 4
        %v1564 = vsel %vm1161, 0, %v1563
        %v1565 = vrot.slane %v1562, 4
        %v1566 = vsel %vm1161, 0, %v1565
        %v1567 = vsel %vm1161, %v1175, %v1168
        %v1569 = vunpack.c.l.s4 1983009808
        %v1570 = vunpack.c.0.s8 %v1569
        %v1571 = vperm.slane %v1567, %v1570
        %v1572 = vrot.slane %v1176, 4
        %v1573 = vsel %vm1161, %v1572, %v1174
        %v1575 = vunpack.c.l.s4 1983009808
        %v1576 = vunpack.c.0.s8 %v1575
        %v1577 = vperm.slane %v1573, %v1576
        %v1578 = vrot.slane %v1577, 4
        %v1579 = vsel %vm1161, %v1578, %v1571
        %v1581 = vunpack.c.l.s4 1934713408
        %v1582 = vunpack.c.0.s8 %v1581
        %v1583 = vperm.slane %v1579, %v1582
        %v1584 = vrot.slane %v1583, 4
        %v1585 = vsel %vm1161, 0, %v1584
        %v1586 = vsel %vm1161, %v1201, %v1194
        %v1588 = vunpack.c.l.s4 1983009808
        %v1589 = vunpack.c.0.s8 %v1588
        %v1590 = vperm.slane %v1586, %v1589
        %v1591 = vrot.slane %v1202, 4
        %v1592 = vsel %vm1161, %v1591, %v1200
        %v1594 = vunpack.c.l.s4 1983009808
        %v1595 = vunpack.c.0.s8 %v1594
        %v1596 = vperm.slane %v1592, %v1595
        %v1597 = vrot.slane %v1596, 4
        %v1598 = vsel %vm1161, %v1597, %v1590
        %v1600 = vunpack.c.l.s4 1934713408
        %v1601 = vunpack.c.0.s8 %v1600
        %v1602 = vperm.slane %v1598, %v1601
        %v1603 = vrot.slane %v1602, 4
        %v1604 = vsel %vm1161, 0, %v1603
        %v1605 = vsel %vm1161, %v1227, %v1220
        %v1607 = vunpack.c.l.s4 1983009808
        %v1608 = vunpack.c.0.s8 %v1607
        %v1609 = vperm.slane %v1605, %v1608
        %v1610 = vrot.slane %v1228, 4
        %v1611 = vsel %vm1161, %v1610, %v1226
        %v1613 = vunpack.c.l.s4 1983009808
        %v1614 = vunpack.c.0.s8 %v1613
        %v1615 = vperm.slane %v1611, %v1614
        %v1616 = vrot.slane %v1615, 4
        %v1617 = vsel %vm1161, %v1616, %v1609
        %v1619 = vunpack.c.l.s4 1934713408
        %v1620 = vunpack.c.0.s8 %v1619
        %v1621 = vperm.slane %v1617, %v1620
        %v1622 = vrot.slane %v1621, 4
        %v1623 = vsel %vm1161, 0, %v1622
        %v1624 = vsel %vm1161, %v1253, %v1246
        %v1626 = vunpack.c.l.s4 1983009808
        %v1627 = vunpack.c.0.s8 %v1626
        %v1628 = vperm.slane %v1624, %v1627
        %v1629 = vrot.slane %v1254, 4
        %v1630 = vsel %vm1161, %v1629, %v1252
        %v1632 = vunpack.c.l.s4 1983009808
        %v1633 = vunpack.c.0.s8 %v1632
        %v1634 = vperm.slane %v1630, %v1633
        %v1635 = vrot.slane %v1634, 4
        %v1636 = vsel %vm1161, %v1635, %v1628
        %v1638 = vunpack.c.l.s4 1934713408
        %v1639 = vunpack.c.0.s8 %v1638
        %v1640 = vperm.slane %v1636, %v1639
        %v1641 = vrot.slane %v1640, 4
        %v1642 = vsel %vm1161, 0, %v1641
        %v1643 = vsel %vm1161, %v1279, %v1272
        %v1645 = vunpack.c.l.s4 1983009808
        %v1646 = vunpack.c.0.s8 %v1645
        %v1647 = vperm.slane %v1643, %v1646
        %v1648 = vrot.slane %v1280, 4
        %v1649 = vsel %vm1161, %v1648, %v1278
        %v1651 = vunpack.c.l.s4 1983009808
        %v1652 = vunpack.c.0.s8 %v1651
        %v1653 = vperm.slane %v1649, %v1652
        %v1654 = vrot.slane %v1653, 4
        %v1655 = vsel %vm1161, %v1654, %v1647
        %v1657 = vunpack.c.l.s4 1934713408
        %v1658 = vunpack.c.0.s8 %v1657
        %v1659 = vperm.slane %v1655, %v1658
        %v1660 = vrot.slane %v1659, 4
        %v1661 = vsel %vm1161, 0, %v1660
        %v1662 = vsel %vm1161, %v1305, %v1298
        %v1664 = vunpack.c.l.s4 1983009808
        %v1665 = vunpack.c.0.s8 %v1664
        %v1666 = vperm.slane %v1662, %v1665
        %v1667 = vrot.slane %v1306, 4
        %v1668 = vsel %vm1161, %v1667, %v1304
        %v1670 = vunpack.c.l.s4 1983009808
        %v1671 = vunpack.c.0.s8 %v1670
        %v1672 = vperm.slane %v1668, %v1671
        %v1673 = vrot.slane %v1672, 4
        %v1674 = vsel %vm1161, %v1673, %v1666
        %v1676 = vunpack.c.l.s4 1934713408
        %v1677 = vunpack.c.0.s8 %v1676
        %v1678 = vperm.slane %v1674, %v1677
        %v1679 = vrot.slane %v1678, 4
        %v1680 = vsel %vm1161, 0, %v1679
        %v1681 = vsel %vm1161, %v1331, %v1324
        %v1683 = vunpack.c.l.s4 1983009808
        %v1684 = vunpack.c.0.s8 %v1683
        %v1685 = vperm.slane %v1681, %v1684
        %v1686 = vrot.slane %v1332, 4
        %v1687 = vsel %vm1161, %v1686, %v1330
        %v1689 = vunpack.c.l.s4 1983009808
        %v1690 = vunpack.c.0.s8 %v1689
        %v1691 = vperm.slane %v1687, %v1690
        %v1692 = vrot.slane %v1691, 4
        %v1693 = vsel %vm1161, %v1692, %v1685
        %v1695 = vunpack.c.l.s4 1934713408
        %v1696 = vunpack.c.0.s8 %v1695
        %v1697 = vperm.slane %v1693, %v1696
        %v1698 = vrot.slane %v1697, 4
        %v1699 = vsel %vm1161, 0, %v1698
        %v1700 = vsel %vm1161, %v1357, %v1350
        %v1702 = vunpack.c.l.s4 1983009808
        %v1703 = vunpack.c.0.s8 %v1702
        %v1704 = vperm.slane %v1700, %v1703
        %v1705 = vrot.slane %v1358, 4
        %v1706 = vsel %vm1161, %v1705, %v1356
        %v1708 = vunpack.c.l.s4 1983009808
        %v1709 = vunpack.c.0.s8 %v1708
        %v1710 = vperm.slane %v1706, %v1709
        %v1711 = vrot.slane %v1710, 4
        %v1712 = vsel %vm1161, %v1711, %v1704
        %v1714 = vunpack.c.l.s4 1934713408
        %v1715 = vunpack.c.0.s8 %v1714
        %v1716 = vperm.slane %v1712, %v1715
        %v1717 = vrot.slane %v1716, 4
        %v1718 = vsel %vm1161, 0, %v1717
        %v1719 = vsel %vm1161, %v1383, %v1376
        %v1721 = vunpack.c.l.s4 1983009808
        %v1722 = vunpack.c.0.s8 %v1721
        %v1723 = vperm.slane %v1719, %v1722
        %v1724 = vrot.slane %v1384, 4
        %v1725 = vsel %vm1161, %v1724, %v1382
        %v1727 = vunpack.c.l.s4 1983009808
        %v1728 = vunpack.c.0.s8 %v1727
        %v1729 = vperm.slane %v1725, %v1728
        %v1730 = vrot.slane %v1729, 4
        %v1731 = vsel %vm1161, %v1730, %v1723
        %v1733 = vunpack.c.l.s4 1934713408
        %v1734 = vunpack.c.0.s8 %v1733
        %v1735 = vperm.slane %v1731, %v1734
        %v1736 = vrot.slane %v1735, 4
        %v1737 = vsel %vm1161, 0, %v1736
        %v1738 = vsel %vm1161, %v1409, %v1402
        %v1740 = vunpack.c.l.s4 1983009808
        %v1741 = vunpack.c.0.s8 %v1740
        %v1742 = vperm.slane %v1738, %v1741
        %v1743 = vrot.slane %v1410, 4
        %v1744 = vsel %vm1161, %v1743, %v1408
        %v1746 = vunpack.c.l.s4 1983009808
        %v1747 = vunpack.c.0.s8 %v1746
        %v1748 = vperm.slane %v1744, %v1747
        %v1749 = vrot.slane %v1748, 4
        %v1750 = vsel %vm1161, %v1749, %v1742
        %v1752 = vunpack.c.l.s4 1934713408
        %v1753 = vunpack.c.0.s8 %v1752
        %v1754 = vperm.slane %v1750, %v1753
        %v1755 = vrot.slane %v1754, 4
        %v1756 = vsel %vm1161, 0, %v1755
        %v1757 = vsel %vm1161, %v1435, %v1428
        %v1759 = vunpack.c.l.s4 1983009808
        %v1760 = vunpack.c.0.s8 %v1759
        %v1761 = vperm.slane %v1757, %v1760
        %v1762 = vrot.slane %v1436, 4
        %v1763 = vsel %vm1161, %v1762, %v1434
        %v1765 = vunpack.c.l.s4 1983009808
        %v1766 = vunpack.c.0.s8 %v1765
        %v1767 = vperm.slane %v1763, %v1766
        %v1768 = vrot.slane %v1767, 4
        %v1769 = vsel %vm1161, %v1768, %v1761
        %v1771 = vunpack.c.l.s4 1934713408
        %v1772 = vunpack.c.0.s8 %v1771
        %v1773 = vperm.slane %v1769, %v1772
        %v1774 = vrot.slane %v1773, 4
        %v1775 = vsel %vm1161, 0, %v1774
        %v1776 = vsel %vm1161, %v1461, %v1454
        %v1778 = vunpack.c.l.s4 1983009808
        %v1779 = vunpack.c.0.s8 %v1778
        %v1780 = vperm.slane %v1776, %v1779
        %v1781 = vrot.slane %v1462, 4
        %v1782 = vsel %vm1161, %v1781, %v1460
        %v1784 = vunpack.c.l.s4 1983009808
        %v1785 = vunpack.c.0.s8 %v1784
        %v1786 = vperm.slane %v1782, %v1785
        %v1787 = vrot.slane %v1786, 4
        %v1788 = vsel %vm1161, %v1787, %v1780
        %v1790 = vunpack.c.l.s4 1934713408
        %v1791 = vunpack.c.0.s8 %v1790
        %v1792 = vperm.slane %v1788, %v1791
        %v1793 = vrot.slane %v1792, 4
        %v1794 = vsel %vm1161, 0, %v1793
        %v1795 = vsel %vm1161, %v1487, %v1480
        %v1797 = vunpack.c.l.s4 1983009808
        %v1798 = vunpack.c.0.s8 %v1797
        %v1799 = vperm.slane %v1795, %v1798
        %v1800 = vrot.slane %v1488, 4
        %v1801 = vsel %vm1161, %v1800, %v1486
        %v1803 = vunpack.c.l.s4 1983009808
        %v1804 = vunpack.c.0.s8 %v1803
        %v1805 = vperm.slane %v1801, %v1804
        %v1806 = vrot.slane %v1805, 4
        %v1807 = vsel %vm1161, %v1806, %v1799
        %v1809 = vunpack.c.l.s4 1934713408
        %v1810 = vunpack.c.0.s8 %v1809
        %v1811 = vperm.slane %v1807, %v1810
        %v1812 = vrot.slane %v1811, 4
        %v1813 = vsel %vm1161, 0, %v1812
        %v1814 = vsel %vm1161, %v1513, %v1506
        %v1816 = vunpack.c.l.s4 1983009808
        %v1817 = vunpack.c.0.s8 %v1816
        %v1818 = vperm.slane %v1814, %v1817
        %v1819 = vrot.slane %v1514, 4
        %v1820 = vsel %vm1161, %v1819, %v1512
        %v1822 = vunpack.c.l.s4 1983009808
        %v1823 = vunpack.c.0.s8 %v1822
        %v1824 = vperm.slane %v1820, %v1823
        %v1825 = vrot.slane %v1824, 4
        %v1826 = vsel %vm1161, %v1825, %v1818
        %v1828 = vunpack.c.l.s4 1934713408
        %v1829 = vunpack.c.0.s8 %v1828
        %v1830 = vperm.slane %v1826, %v1829
        %v1831 = vrot.slane %v1830, 4
        %v1832 = vsel %vm1161, 0, %v1831
        %v1833 = vsel %vm1161, %v1539, %v1532
        %v1835 = vunpack.c.l.s4 1983009808
        %v1836 = vunpack.c.0.s8 %v1835
        %v1837 = vperm.slane %v1833, %v1836
        %v1838 = vrot.slane %v1540, 4
        %v1839 = vsel %vm1161, %v1838, %v1538
        %v1841 = vunpack.c.l.s4 1983009808
        %v1842 = vunpack.c.0.s8 %v1841
        %v1843 = vperm.slane %v1839, %v1842
        %v1844 = vrot.slane %v1843, 4
        %v1845 = vsel %vm1161, %v1844, %v1837
        %v1847 = vunpack.c.l.s4 1934713408
        %v1848 = vunpack.c.0.s8 %v1847
        %v1849 = vperm.slane %v1845, %v1848
        %v1850 = vrot.slane %v1849, 4
        %v1851 = vsel %vm1161, 0, %v1850
        %v1852 = vsel %vm1161, %v1565, %v1558
        %v1854 = vunpack.c.l.s4 1983009808
        %v1855 = vunpack.c.0.s8 %v1854
        %v1856 = vperm.slane %v1852, %v1855
        %v1857 = vrot.slane %v1566, 4
        %v1858 = vsel %vm1161, %v1857, %v1564
        %v1860 = vunpack.c.l.s4 1983009808
        %v1861 = vunpack.c.0.s8 %v1860
        %v1862 = vperm.slane %v1858, %v1861
        %v1863 = vrot.slane %v1862, 4
        %v1864 = vsel %vm1161, %v1863, %v1856
        %v1866 = vunpack.c.l.s4 1934713408
        %v1867 = vunpack.c.0.s8 %v1866
        %v1868 = vperm.slane %v1864, %v1867
        %v1869 = vrot.slane %v1868, 4
        %v1870 = vsel %vm1161, 0, %v1869
        %v1873 = vpack.i.b16 %v1602, %v1583
        %v1874 = vshrl.u32 %v1583, 16
        %v1875 = vshrl.u32 %v1602, 16
        %v1876 = vpack.i.b16 %v1875, %v1874
        %v1879 = vpack.i.b16 %v1604, %v1585
        %v1880 = vshrl.u32 %v1585, 16
        %v1881 = vshrl.u32 %v1604, 16
        %v1882 = vpack.i.b16 %v1881, %v1880
        %v1885 = vpack.i.b16 %v1640, %v1621
        %v1886 = vshrl.u32 %v1621, 16
        %v1887 = vshrl.u32 %v1640, 16
        %v1888 = vpack.i.b16 %v1887, %v1886
        %v1891 = vpack.i.b16 %v1642, %v1623
        %v1892 = vshrl.u32 %v1623, 16
        %v1893 = vshrl.u32 %v1642, 16
        %v1894 = vpack.i.b16 %v1893, %v1892
        %v1897 = vpack.i.b16 %v1678, %v1659
        %v1898 = vshrl.u32 %v1659, 16
        %v1899 = vshrl.u32 %v1678, 16
        %v1900 = vpack.i.b16 %v1899, %v1898
        %v1903 = vpack.i.b16 %v1680, %v1661
        %v1904 = vshrl.u32 %v1661, 16
        %v1905 = vshrl.u32 %v1680, 16
        %v1906 = vpack.i.b16 %v1905, %v1904
        %v1909 = vpack.i.b16 %v1716, %v1697
        %v1910 = vshrl.u32 %v1697, 16
        %v1911 = vshrl.u32 %v1716, 16
        %v1912 = vpack.i.b16 %v1911, %v1910
        %v1915 = vpack.i.b16 %v1718, %v1699
        %v1916 = vshrl.u32 %v1699, 16
        %v1917 = vshrl.u32 %v1718, 16
        %v1918 = vpack.i.b16 %v1917, %v1916
        %v1921 = vpack.i.b16 %v1754, %v1735
        %v1922 = vshrl.u32 %v1735, 16
        %v1923 = vshrl.u32 %v1754, 16
        %v1924 = vpack.i.b16 %v1923, %v1922
        %v1927 = vpack.i.b16 %v1756, %v1737
        %v1928 = vshrl.u32 %v1737, 16
        %v1929 = vshrl.u32 %v1756, 16
        %v1930 = vpack.i.b16 %v1929, %v1928
        %v1933 = vpack.i.b16 %v1792, %v1773
        %v1934 = vshrl.u32 %v1773, 16
        %v1935 = vshrl.u32 %v1792, 16
        %v1936 = vpack.i.b16 %v1935, %v1934
        %v1939 = vpack.i.b16 %v1794, %v1775
        %v1940 = vshrl.u32 %v1775, 16
        %v1941 = vshrl.u32 %v1794, 16
        %v1942 = vpack.i.b16 %v1941, %v1940
        %v1945 = vpack.i.b16 %v1830, %v1811
        %v1946 = vshrl.u32 %v1811, 16
        %v1947 = vshrl.u32 %v1830, 16
        %v1948 = vpack.i.b16 %v1947, %v1946
        %v1951 = vpack.i.b16 %v1832, %v1813
        %v1952 = vshrl.u32 %v1813, 16
        %v1953 = vshrl.u32 %v1832, 16
        %v1954 = vpack.i.b16 %v1953, %v1952
        %v1957 = vpack.i.b16 %v1868, %v1849
        %v1958 = vshrl.u32 %v1849, 16
        %v1959 = vshrl.u32 %v1868, 16
        %v1960 = vpack.i.b16 %v1959, %v1958
        %v1963 = vpack.i.b16 %v1870, %v1851
        %v1964 = vshrl.u32 %v1851, 16
        %v1965 = vshrl.u32 %v1870, 16
        %v1966 = vpack.i.b16 %v1965, %v1964
        %v1967 = vrot.slane %v982, 4
        %v1968 = vrot.slane %v984, 4
        %v1969 = vrot.slane %v986, 4
        %v1970 = vrot.slane %v988, 4
        %v1971 = vrot.slane %v990, 4
        %v1972 = vrot.slane %v992, 4
        %v1973 = vrot.slane %v994, 4
        %v1974 = vrot.slane %v996, 4
        %v1975 = vrot.slane %v1007, 4
        %v1976 = vrot.slane %v1009, 4
        %v1977 = vrot.slane %v1011, 4
        %v1978 = vrot.slane %v1013, 4
        %v1979 = vrot.slane %v1015, 4
        %v1980 = vrot.slane %v1017, 4
        %v1981 = vrot.slane %v1019, 4
        %v1982 = vrot.slane %v1021, 4
        %v1983 = vrot.slane %v1023, 4
        %v1984 = vrot.slane %v1025, 4
        %v1985 = vrot.slane %v1027, 4
        %v1986 = vrot.slane %v1029, 4
        %v1987 = vrot.slane %v1031, 4
        %v1988 = vrot.slane %v1033, 4
        %v1989 = vrot.slane %v1035, 4
        %v1990 = vrot.slane %v1037, 4
        %v1991 = vrot.slane %v1039, 4
        %v1992 = vrot.slane %v1041, 4
        %v1993 = vrot.slane %v1043, 4
        %v1994 = vrot.slane %v1045, 4
        %v1995 = vrot.slane %v1047, 4
        %v1996 = vrot.slane %v1049, 4
        %v1997 = vrot.slane %v1051, 4
        %v1998 = vrot.slane %v1053, 4
        %v2001 = vpack.i.b16 %v1975, %v1967
        %v2002 = vshrl.u32 %v1967, 16
        %v2003 = vshrl.u32 %v1975, 16
        %v2004 = vpack.i.b16 %v2003, %v2002
        %v2007 = vpack.i.b16 %v1991, %v1983
        %v2008 = vshrl.u32 %v1983, 16
        %v2009 = vshrl.u32 %v1991, 16
        %v2010 = vpack.i.b16 %v2009, %v2008
        %v2013 = vpack.i.b16 %v1976, %v1968
        %v2014 = vshrl.u32 %v1968, 16
        %v2015 = vshrl.u32 %v1976, 16
        %v2016 = vpack.i.b16 %v2015, %v2014
        %v2019 = vpack.i.b16 %v1992, %v1984
        %v2020 = vshrl.u32 %v1984, 16
        %v2021 = vshrl.u32 %v1992, 16
        %v2022 = vpack.i.b16 %v2021, %v2020
        %v2025 = vpack.i.b16 %v1977, %v1969
        %v2026 = vshrl.u32 %v1969, 16
        %v2027 = vshrl.u32 %v1977, 16
        %v2028 = vpack.i.b16 %v2027, %v2026
        %v2031 = vpack.i.b16 %v1993, %v1985
        %v2032 = vshrl.u32 %v1985, 16
        %v2033 = vshrl.u32 %v1993, 16
        %v2034 = vpack.i.b16 %v2033, %v2032
        %v2037 = vpack.i.b16 %v1978, %v1970
        %v2038 = vshrl.u32 %v1970, 16
        %v2039 = vshrl.u32 %v1978, 16
        %v2040 = vpack.i.b16 %v2039, %v2038
        %v2043 = vpack.i.b16 %v1994, %v1986
        %v2044 = vshrl.u32 %v1986, 16
        %v2045 = vshrl.u32 %v1994, 16
        %v2046 = vpack.i.b16 %v2045, %v2044
        %v2049 = vpack.i.b16 %v1979, %v1971
        %v2050 = vshrl.u32 %v1971, 16
        %v2051 = vshrl.u32 %v1979, 16
        %v2052 = vpack.i.b16 %v2051, %v2050
        %v2055 = vpack.i.b16 %v1995, %v1987
        %v2056 = vshrl.u32 %v1987, 16
        %v2057 = vshrl.u32 %v1995, 16
        %v2058 = vpack.i.b16 %v2057, %v2056
        %v2061 = vpack.i.b16 %v1980, %v1972
        %v2062 = vshrl.u32 %v1972, 16
        %v2063 = vshrl.u32 %v1980, 16
        %v2064 = vpack.i.b16 %v2063, %v2062
        %v2067 = vpack.i.b16 %v1996, %v1988
        %v2068 = vshrl.u32 %v1988, 16
        %v2069 = vshrl.u32 %v1996, 16
        %v2070 = vpack.i.b16 %v2069, %v2068
        %v2073 = vpack.i.b16 %v1981, %v1973
        %v2074 = vshrl.u32 %v1973, 16
        %v2075 = vshrl.u32 %v1981, 16
        %v2076 = vpack.i.b16 %v2075, %v2074
        %v2079 = vpack.i.b16 %v1997, %v1989
        %v2080 = vshrl.u32 %v1989, 16
        %v2081 = vshrl.u32 %v1997, 16
        %v2082 = vpack.i.b16 %v2081, %v2080
        %v2085 = vpack.i.b16 %v1982, %v1974
        %v2086 = vshrl.u32 %v1974, 16
        %v2087 = vshrl.u32 %v1982, 16
        %v2088 = vpack.i.b16 %v2087, %v2086
        %v2091 = vpack.i.b16 %v1998, %v1990
        %v2092 = vshrl.u32 %v1990, 16
        %v2093 = vshrl.u32 %v1998, 16
        %v2094 = vpack.i.b16 %v2093, %v2092
        %v2097 = vunpack.c.l.s4 1983009808
        %v2098 = vunpack.c.0.s8 %v2097
        %v2099 = vperm.slane %v2001, %v2098
        %v2102 = vunpack.c.l.s4 1983009808
        %v2103 = vunpack.c.0.s8 %v2102
        %v2104 = vperm.slane %v2007, %v2103
        %v2105 = vrot.slane %v2104, 4
        %v2106 = vsel %vm1161, %v2105, %v2099
        %v2107 = vrot.slane %v2099, 4
        %v2108 = vsel %vm1161, %v2104, %v2107
        %v2110 = vunpack.c.l.s4 1934713408
        %v2111 = vunpack.c.0.s8 %v2110
        %v2112 = vperm.slane %v2106, %v2111
        %v2114 = vunpack.c.l.s4 1934713408
        %v2115 = vunpack.c.0.s8 %v2114
        %v2116 = vperm.slane %v2108, %v2115
        %v2117 = vrot.slane %v2112, 4
        %v2118 = vsel %vm1161, 0, %v2117
        %v2119 = vrot.slane %v2116, 4
        %v2120 = vsel %vm1161, 0, %v2119
        %v2123 = vunpack.c.l.s4 1983009808
        %v2124 = vunpack.c.0.s8 %v2123
        %v2125 = vperm.slane %v2004, %v2124
        %v2128 = vunpack.c.l.s4 1983009808
        %v2129 = vunpack.c.0.s8 %v2128
        %v2130 = vperm.slane %v2010, %v2129
        %v2131 = vrot.slane %v2130, 4
        %v2132 = vsel %vm1161, %v2131, %v2125
        %v2133 = vrot.slane %v2125, 4
        %v2134 = vsel %vm1161, %v2130, %v2133
        %v2136 = vunpack.c.l.s4 1934713408
        %v2137 = vunpack.c.0.s8 %v2136
        %v2138 = vperm.slane %v2132, %v2137
        %v2140 = vunpack.c.l.s4 1934713408
        %v2141 = vunpack.c.0.s8 %v2140
        %v2142 = vperm.slane %v2134, %v2141
        %v2143 = vrot.slane %v2138, 4
        %v2144 = vsel %vm1161, 0, %v2143
        %v2145 = vrot.slane %v2142, 4
        %v2146 = vsel %vm1161, 0, %v2145
        %v2149 = vunpack.c.l.s4 1983009808
        %v2150 = vunpack.c.0.s8 %v2149
        %v2151 = vperm.slane %v2013, %v2150
        %v2154 = vunpack.c.l.s4 1983009808
        %v2155 = vunpack.c.0.s8 %v2154
        %v2156 = vperm.slane %v2019, %v2155
        %v2157 = vrot.slane %v2156, 4
        %v2158 = vsel %vm1161, %v2157, %v2151
        %v2159 = vrot.slane %v2151, 4
        %v2160 = vsel %vm1161, %v2156, %v2159
        %v2162 = vunpack.c.l.s4 1934713408
        %v2163 = vunpack.c.0.s8 %v2162
        %v2164 = vperm.slane %v2158, %v2163
        %v2166 = vunpack.c.l.s4 1934713408
        %v2167 = vunpack.c.0.s8 %v2166
        %v2168 = vperm.slane %v2160, %v2167
        %v2169 = vrot.slane %v2164, 4
        %v2170 = vsel %vm1161, 0, %v2169
        %v2171 = vrot.slane %v2168, 4
        %v2172 = vsel %vm1161, 0, %v2171
        %v2175 = vunpack.c.l.s4 1983009808
        %v2176 = vunpack.c.0.s8 %v2175
        %v2177 = vperm.slane %v2016, %v2176
        %v2180 = vunpack.c.l.s4 1983009808
        %v2181 = vunpack.c.0.s8 %v2180
        %v2182 = vperm.slane %v2022, %v2181
        %v2183 = vrot.slane %v2182, 4
        %v2184 = vsel %vm1161, %v2183, %v2177
        %v2185 = vrot.slane %v2177, 4
        %v2186 = vsel %vm1161, %v2182, %v2185
        %v2188 = vunpack.c.l.s4 1934713408
        %v2189 = vunpack.c.0.s8 %v2188
        %v2190 = vperm.slane %v2184, %v2189
        %v2192 = vunpack.c.l.s4 1934713408
        %v2193 = vunpack.c.0.s8 %v2192
        %v2194 = vperm.slane %v2186, %v2193
        %v2195 = vrot.slane %v2190, 4
        %v2196 = vsel %vm1161, 0, %v2195
        %v2197 = vrot.slane %v2194, 4
        %v2198 = vsel %vm1161, 0, %v2197
        %v2201 = vunpack.c.l.s4 1983009808
        %v2202 = vunpack.c.0.s8 %v2201
        %v2203 = vperm.slane %v2025, %v2202
        %v2206 = vunpack.c.l.s4 1983009808
        %v2207 = vunpack.c.0.s8 %v2206
        %v2208 = vperm.slane %v2031, %v2207
        %v2209 = vrot.slane %v2208, 4
        %v2210 = vsel %vm1161, %v2209, %v2203
        %v2211 = vrot.slane %v2203, 4
        %v2212 = vsel %vm1161, %v2208, %v2211
        %v2214 = vunpack.c.l.s4 1934713408
        %v2215 = vunpack.c.0.s8 %v2214
        %v2216 = vperm.slane %v2210, %v2215
        %v2218 = vunpack.c.l.s4 1934713408
        %v2219 = vunpack.c.0.s8 %v2218
        %v2220 = vperm.slane %v2212, %v2219
        %v2221 = vrot.slane %v2216, 4
        %v2222 = vsel %vm1161, 0, %v2221
        %v2223 = vrot.slane %v2220, 4
        %v2224 = vsel %vm1161, 0, %v2223
        %v2227 = vunpack.c.l.s4 1983009808
        %v2228 = vunpack.c.0.s8 %v2227
        %v2229 = vperm.slane %v2028, %v2228
        %v2232 = vunpack.c.l.s4 1983009808
        %v2233 = vunpack.c.0.s8 %v2232
        %v2234 = vperm.slane %v2034, %v2233
        %v2235 = vrot.slane %v2234, 4
        %v2236 = vsel %vm1161, %v2235, %v2229
        %v2237 = vrot.slane %v2229, 4
        %v2238 = vsel %vm1161, %v2234, %v2237
        %v2240 = vunpack.c.l.s4 1934713408
        %v2241 = vunpack.c.0.s8 %v2240
        %v2242 = vperm.slane %v2236, %v2241
        %v2244 = vunpack.c.l.s4 1934713408
        %v2245 = vunpack.c.0.s8 %v2244
        %v2246 = vperm.slane %v2238, %v2245
        %v2247 = vrot.slane %v2242, 4
        %v2248 = vsel %vm1161, 0, %v2247
        %v2249 = vrot.slane %v2246, 4
        %v2250 = vsel %vm1161, 0, %v2249
        %v2253 = vunpack.c.l.s4 1983009808
        %v2254 = vunpack.c.0.s8 %v2253
        %v2255 = vperm.slane %v2037, %v2254
        %v2258 = vunpack.c.l.s4 1983009808
        %v2259 = vunpack.c.0.s8 %v2258
        %v2260 = vperm.slane %v2043, %v2259
        %v2261 = vrot.slane %v2260, 4
        %v2262 = vsel %vm1161, %v2261, %v2255
        %v2263 = vrot.slane %v2255, 4
        %v2264 = vsel %vm1161, %v2260, %v2263
        %v2266 = vunpack.c.l.s4 1934713408
        %v2267 = vunpack.c.0.s8 %v2266
        %v2268 = vperm.slane %v2262, %v2267
        %v2270 = vunpack.c.l.s4 1934713408
        %v2271 = vunpack.c.0.s8 %v2270
        %v2272 = vperm.slane %v2264, %v2271
        %v2273 = vrot.slane %v2268, 4
        %v2274 = vsel %vm1161, 0, %v2273
        %v2275 = vrot.slane %v2272, 4
        %v2276 = vsel %vm1161, 0, %v2275
        %v2279 = vunpack.c.l.s4 1983009808
        %v2280 = vunpack.c.0.s8 %v2279
        %v2281 = vperm.slane %v2040, %v2280
        %v2284 = vunpack.c.l.s4 1983009808
        %v2285 = vunpack.c.0.s8 %v2284
        %v2286 = vperm.slane %v2046, %v2285
        %v2287 = vrot.slane %v2286, 4
        %v2288 = vsel %vm1161, %v2287, %v2281
        %v2289 = vrot.slane %v2281, 4
        %v2290 = vsel %vm1161, %v2286, %v2289
        %v2292 = vunpack.c.l.s4 1934713408
        %v2293 = vunpack.c.0.s8 %v2292
        %v2294 = vperm.slane %v2288, %v2293
        %v2296 = vunpack.c.l.s4 1934713408
        %v2297 = vunpack.c.0.s8 %v2296
        %v2298 = vperm.slane %v2290, %v2297
        %v2299 = vrot.slane %v2294, 4
        %v2300 = vsel %vm1161, 0, %v2299
        %v2301 = vrot.slane %v2298, 4
        %v2302 = vsel %vm1161, 0, %v2301
        %v2305 = vunpack.c.l.s4 1983009808
        %v2306 = vunpack.c.0.s8 %v2305
        %v2307 = vperm.slane %v2049, %v2306
        %v2310 = vunpack.c.l.s4 1983009808
        %v2311 = vunpack.c.0.s8 %v2310
        %v2312 = vperm.slane %v2055, %v2311
        %v2313 = vrot.slane %v2312, 4
        %v2314 = vsel %vm1161, %v2313, %v2307
        %v2315 = vrot.slane %v2307, 4
        %v2316 = vsel %vm1161, %v2312, %v2315
        %v2318 = vunpack.c.l.s4 1934713408
        %v2319 = vunpack.c.0.s8 %v2318
        %v2320 = vperm.slane %v2314, %v2319
        %v2322 = vunpack.c.l.s4 1934713408
        %v2323 = vunpack.c.0.s8 %v2322
        %v2324 = vperm.slane %v2316, %v2323
        %v2325 = vrot.slane %v2320, 4
        %v2326 = vsel %vm1161, 0, %v2325
        %v2327 = vrot.slane %v2324, 4
        %v2328 = vsel %vm1161, 0, %v2327
        %v2331 = vunpack.c.l.s4 1983009808
        %v2332 = vunpack.c.0.s8 %v2331
        %v2333 = vperm.slane %v2052, %v2332
        %v2336 = vunpack.c.l.s4 1983009808
        %v2337 = vunpack.c.0.s8 %v2336
        %v2338 = vperm.slane %v2058, %v2337
        %v2339 = vrot.slane %v2338, 4
        %v2340 = vsel %vm1161, %v2339, %v2333
        %v2341 = vrot.slane %v2333, 4
        %v2342 = vsel %vm1161, %v2338, %v2341
        %v2344 = vunpack.c.l.s4 1934713408
        %v2345 = vunpack.c.0.s8 %v2344
        %v2346 = vperm.slane %v2340, %v2345
        %v2348 = vunpack.c.l.s4 1934713408
        %v2349 = vunpack.c.0.s8 %v2348
        %v2350 = vperm.slane %v2342, %v2349
        %v2351 = vrot.slane %v2346, 4
        %v2352 = vsel %vm1161, 0, %v2351
        %v2353 = vrot.slane %v2350, 4
        %v2354 = vsel %vm1161, 0, %v2353
        %v2357 = vunpack.c.l.s4 1983009808
        %v2358 = vunpack.c.0.s8 %v2357
        %v2359 = vperm.slane %v2061, %v2358
        %v2362 = vunpack.c.l.s4 1983009808
        %v2363 = vunpack.c.0.s8 %v2362
        %v2364 = vperm.slane %v2067, %v2363
        %v2365 = vrot.slane %v2364, 4
        %v2366 = vsel %vm1161, %v2365, %v2359
        %v2367 = vrot.slane %v2359, 4
        %v2368 = vsel %vm1161, %v2364, %v2367
        %v2370 = vunpack.c.l.s4 1934713408
        %v2371 = vunpack.c.0.s8 %v2370
        %v2372 = vperm.slane %v2366, %v2371
        %v2374 = vunpack.c.l.s4 1934713408
        %v2375 = vunpack.c.0.s8 %v2374
        %v2376 = vperm.slane %v2368, %v2375
        %v2377 = vrot.slane %v2372, 4
        %v2378 = vsel %vm1161, 0, %v2377
        %v2379 = vrot.slane %v2376, 4
        %v2380 = vsel %vm1161, 0, %v2379
        %v2383 = vunpack.c.l.s4 1983009808
        %v2384 = vunpack.c.0.s8 %v2383
        %v2385 = vperm.slane %v2064, %v2384
        %v2388 = vunpack.c.l.s4 1983009808
        %v2389 = vunpack.c.0.s8 %v2388
        %v2390 = vperm.slane %v2070, %v2389
        %v2391 = vrot.slane %v2390, 4
        %v2392 = vsel %vm1161, %v2391, %v2385
        %v2393 = vrot.slane %v2385, 4
        %v2394 = vsel %vm1161, %v2390, %v2393
        %v2396 = vunpack.c.l.s4 1934713408
        %v2397 = vunpack.c.0.s8 %v2396
        %v2398 = vperm.slane %v2392, %v2397
        %v2400 = vunpack.c.l.s4 1934713408
        %v2401 = vunpack.c.0.s8 %v2400
        %v2402 = vperm.slane %v2394, %v2401
        %v2403 = vrot.slane %v2398, 4
        %v2404 = vsel %vm1161, 0, %v2403
        %v2405 = vrot.slane %v2402, 4
        %v2406 = vsel %vm1161, 0, %v2405
        %v2409 = vunpack.c.l.s4 1983009808
        %v2410 = vunpack.c.0.s8 %v2409
        %v2411 = vperm.slane %v2073, %v2410
        %v2414 = vunpack.c.l.s4 1983009808
        %v2415 = vunpack.c.0.s8 %v2414
        %v2416 = vperm.slane %v2079, %v2415
        %v2417 = vrot.slane %v2416, 4
        %v2418 = vsel %vm1161, %v2417, %v2411
        %v2419 = vrot.slane %v2411, 4
        %v2420 = vsel %vm1161, %v2416, %v2419
        %v2422 = vunpack.c.l.s4 1934713408
        %v2423 = vunpack.c.0.s8 %v2422
        %v2424 = vperm.slane %v2418, %v2423
        %v2426 = vunpack.c.l.s4 1934713408
        %v2427 = vunpack.c.0.s8 %v2426
        %v2428 = vperm.slane %v2420, %v2427
        %v2429 = vrot.slane %v2424, 4
        %v2430 = vsel %vm1161, 0, %v2429
        %v2431 = vrot.slane %v2428, 4
        %v2432 = vsel %vm1161, 0, %v2431
        %v2435 = vunpack.c.l.s4 1983009808
        %v2436 = vunpack.c.0.s8 %v2435
        %v2437 = vperm.slane %v2076, %v2436
        %v2440 = vunpack.c.l.s4 1983009808
        %v2441 = vunpack.c.0.s8 %v2440
        %v2442 = vperm.slane %v2082, %v2441
        %v2443 = vrot.slane %v2442, 4
        %v2444 = vsel %vm1161, %v2443, %v2437
        %v2445 = vrot.slane %v2437, 4
        %v2446 = vsel %vm1161, %v2442, %v2445
        %v2448 = vunpack.c.l.s4 1934713408
        %v2449 = vunpack.c.0.s8 %v2448
        %v2450 = vperm.slane %v2444, %v2449
        %v2452 = vunpack.c.l.s4 1934713408
        %v2453 = vunpack.c.0.s8 %v2452
        %v2454 = vperm.slane %v2446, %v2453
        %v2455 = vrot.slane %v2450, 4
        %v2456 = vsel %vm1161, 0, %v2455
        %v2457 = vrot.slane %v2454, 4
        %v2458 = vsel %vm1161, 0, %v2457
        %v2461 = vunpack.c.l.s4 1983009808
        %v2462 = vunpack.c.0.s8 %v2461
        %v2463 = vperm.slane %v2085, %v2462
        %v2466 = vunpack.c.l.s4 1983009808
        %v2467 = vunpack.c.0.s8 %v2466
        %v2468 = vperm.slane %v2091, %v2467
        %v2469 = vrot.slane %v2468, 4
        %v2470 = vsel %vm1161, %v2469, %v2463
        %v2471 = vrot.slane %v2463, 4
        %v2472 = vsel %vm1161, %v2468, %v2471
        %v2474 = vunpack.c.l.s4 1934713408
        %v2475 = vunpack.c.0.s8 %v2474
        %v2476 = vperm.slane %v2470, %v2475
        %v2478 = vunpack.c.l.s4 1934713408
        %v2479 = vunpack.c.0.s8 %v2478
        %v2480 = vperm.slane %v2472, %v2479
        %v2481 = vrot.slane %v2476, 4
        %v2482 = vsel %vm1161, 0, %v2481
        %v2483 = vrot.slane %v2480, 4
        %v2484 = vsel %vm1161, 0, %v2483
        %v2487 = vunpack.c.l.s4 1983009808
        %v2488 = vunpack.c.0.s8 %v2487
        %v2489 = vperm.slane %v2088, %v2488
        %v2492 = vunpack.c.l.s4 1983009808
        %v2493 = vunpack.c.0.s8 %v2492
        %v2494 = vperm.slane %v2094, %v2493
        %v2495 = vrot.slane %v2494, 4
        %v2496 = vsel %vm1161, %v2495, %v2489
        %v2497 = vrot.slane %v2489, 4
        %v2498 = vsel %vm1161, %v2494, %v2497
        %v2500 = vunpack.c.l.s4 1934713408
        %v2501 = vunpack.c.0.s8 %v2500
        %v2502 = vperm.slane %v2496, %v2501
        %v2504 = vunpack.c.l.s4 1934713408
        %v2505 = vunpack.c.0.s8 %v2504
        %v2506 = vperm.slane %v2498, %v2505
        %v2507 = vrot.slane %v2502, 4
        %v2508 = vsel %vm1161, 0, %v2507
        %v2509 = vrot.slane %v2506, 4
        %v2510 = vsel %vm1161, 0, %v2509
        %v2511 = vsel %vm1161, %v2119, %v2112
        %v2513 = vunpack.c.l.s4 1983009808
        %v2514 = vunpack.c.0.s8 %v2513
        %v2515 = vperm.slane %v2511, %v2514
        %v2516 = vrot.slane %v2120, 4
        %v2517 = vsel %vm1161, %v2516, %v2118
        %v2519 = vunpack.c.l.s4 1983009808
        %v2520 = vunpack.c.0.s8 %v2519
        %v2521 = vperm.slane %v2517, %v2520
        %v2522 = vrot.slane %v2521, 4
        %v2523 = vsel %vm1161, %v2522, %v2515
        %v2525 = vunpack.c.l.s4 1934713408
        %v2526 = vunpack.c.0.s8 %v2525
        %v2527 = vperm.slane %v2523, %v2526
        %v2528 = vrot.slane %v2527, 4
        %v2529 = vsel %vm1161, 0, %v2528
        %v2530 = vsel %vm1161, %v2145, %v2138
        %v2532 = vunpack.c.l.s4 1983009808
        %v2533 = vunpack.c.0.s8 %v2532
        %v2534 = vperm.slane %v2530, %v2533
        %v2535 = vrot.slane %v2146, 4
        %v2536 = vsel %vm1161, %v2535, %v2144
        %v2538 = vunpack.c.l.s4 1983009808
        %v2539 = vunpack.c.0.s8 %v2538
        %v2540 = vperm.slane %v2536, %v2539
        %v2541 = vrot.slane %v2540, 4
        %v2542 = vsel %vm1161, %v2541, %v2534
        %v2544 = vunpack.c.l.s4 1934713408
        %v2545 = vunpack.c.0.s8 %v2544
        %v2546 = vperm.slane %v2542, %v2545
        %v2547 = vrot.slane %v2546, 4
        %v2548 = vsel %vm1161, 0, %v2547
        %v2549 = vsel %vm1161, %v2171, %v2164
        %v2551 = vunpack.c.l.s4 1983009808
        %v2552 = vunpack.c.0.s8 %v2551
        %v2553 = vperm.slane %v2549, %v2552
        %v2554 = vrot.slane %v2172, 4
        %v2555 = vsel %vm1161, %v2554, %v2170
        %v2557 = vunpack.c.l.s4 1983009808
        %v2558 = vunpack.c.0.s8 %v2557
        %v2559 = vperm.slane %v2555, %v2558
        %v2560 = vrot.slane %v2559, 4
        %v2561 = vsel %vm1161, %v2560, %v2553
        %v2563 = vunpack.c.l.s4 1934713408
        %v2564 = vunpack.c.0.s8 %v2563
        %v2565 = vperm.slane %v2561, %v2564
        %v2566 = vrot.slane %v2565, 4
        %v2567 = vsel %vm1161, 0, %v2566
        %v2568 = vsel %vm1161, %v2197, %v2190
        %v2570 = vunpack.c.l.s4 1983009808
        %v2571 = vunpack.c.0.s8 %v2570
        %v2572 = vperm.slane %v2568, %v2571
        %v2573 = vrot.slane %v2198, 4
        %v2574 = vsel %vm1161, %v2573, %v2196
        %v2576 = vunpack.c.l.s4 1983009808
        %v2577 = vunpack.c.0.s8 %v2576
        %v2578 = vperm.slane %v2574, %v2577
        %v2579 = vrot.slane %v2578, 4
        %v2580 = vsel %vm1161, %v2579, %v2572
        %v2582 = vunpack.c.l.s4 1934713408
        %v2583 = vunpack.c.0.s8 %v2582
        %v2584 = vperm.slane %v2580, %v2583
        %v2585 = vrot.slane %v2584, 4
        %v2586 = vsel %vm1161, 0, %v2585
        %v2587 = vsel %vm1161, %v2223, %v2216
        %v2589 = vunpack.c.l.s4 1983009808
        %v2590 = vunpack.c.0.s8 %v2589
        %v2591 = vperm.slane %v2587, %v2590
        %v2592 = vrot.slane %v2224, 4
        %v2593 = vsel %vm1161, %v2592, %v2222
        %v2595 = vunpack.c.l.s4 1983009808
        %v2596 = vunpack.c.0.s8 %v2595
        %v2597 = vperm.slane %v2593, %v2596
        %v2598 = vrot.slane %v2597, 4
        %v2599 = vsel %vm1161, %v2598, %v2591
        %v2601 = vunpack.c.l.s4 1934713408
        %v2602 = vunpack.c.0.s8 %v2601
        %v2603 = vperm.slane %v2599, %v2602
        %v2604 = vrot.slane %v2603, 4
        %v2605 = vsel %vm1161, 0, %v2604
        %v2606 = vsel %vm1161, %v2249, %v2242
        %v2608 = vunpack.c.l.s4 1983009808
        %v2609 = vunpack.c.0.s8 %v2608
        %v2610 = vperm.slane %v2606, %v2609
        %v2611 = vrot.slane %v2250, 4
        %v2612 = vsel %vm1161, %v2611, %v2248
        %v2614 = vunpack.c.l.s4 1983009808
        %v2615 = vunpack.c.0.s8 %v2614
        %v2616 = vperm.slane %v2612, %v2615
        %v2617 = vrot.slane %v2616, 4
        %v2618 = vsel %vm1161, %v2617, %v2610
        %v2620 = vunpack.c.l.s4 1934713408
        %v2621 = vunpack.c.0.s8 %v2620
        %v2622 = vperm.slane %v2618, %v2621
        %v2623 = vrot.slane %v2622, 4
        %v2624 = vsel %vm1161, 0, %v2623
        %v2625 = vsel %vm1161, %v2275, %v2268
        %v2627 = vunpack.c.l.s4 1983009808
        %v2628 = vunpack.c.0.s8 %v2627
        %v2629 = vperm.slane %v2625, %v2628
        %v2630 = vrot.slane %v2276, 4
        %v2631 = vsel %vm1161, %v2630, %v2274
        %v2633 = vunpack.c.l.s4 1983009808
        %v2634 = vunpack.c.0.s8 %v2633
        %v2635 = vperm.slane %v2631, %v2634
        %v2636 = vrot.slane %v2635, 4
        %v2637 = vsel %vm1161, %v2636, %v2629
        %v2639 = vunpack.c.l.s4 1934713408
        %v2640 = vunpack.c.0.s8 %v2639
        %v2641 = vperm.slane %v2637, %v2640
        %v2642 = vrot.slane %v2641, 4
        %v2643 = vsel %vm1161, 0, %v2642
        %v2644 = vsel %vm1161, %v2301, %v2294
        %v2646 = vunpack.c.l.s4 1983009808
        %v2647 = vunpack.c.0.s8 %v2646
        %v2648 = vperm.slane %v2644, %v2647
        %v2649 = vrot.slane %v2302, 4
        %v2650 = vsel %vm1161, %v2649, %v2300
        %v2652 = vunpack.c.l.s4 1983009808
        %v2653 = vunpack.c.0.s8 %v2652
        %v2654 = vperm.slane %v2650, %v2653
        %v2655 = vrot.slane %v2654, 4
        %v2656 = vsel %vm1161, %v2655, %v2648
        %v2658 = vunpack.c.l.s4 1934713408
        %v2659 = vunpack.c.0.s8 %v2658
        %v2660 = vperm.slane %v2656, %v2659
        %v2661 = vrot.slane %v2660, 4
        %v2662 = vsel %vm1161, 0, %v2661
        %v2663 = vsel %vm1161, %v2327, %v2320
        %v2665 = vunpack.c.l.s4 1983009808
        %v2666 = vunpack.c.0.s8 %v2665
        %v2667 = vperm.slane %v2663, %v2666
        %v2668 = vrot.slane %v2328, 4
        %v2669 = vsel %vm1161, %v2668, %v2326
        %v2671 = vunpack.c.l.s4 1983009808
        %v2672 = vunpack.c.0.s8 %v2671
        %v2673 = vperm.slane %v2669, %v2672
        %v2674 = vrot.slane %v2673, 4
        %v2675 = vsel %vm1161, %v2674, %v2667
        %v2677 = vunpack.c.l.s4 1934713408
        %v2678 = vunpack.c.0.s8 %v2677
        %v2679 = vperm.slane %v2675, %v2678
        %v2680 = vrot.slane %v2679, 4
        %v2681 = vsel %vm1161, 0, %v2680
        %v2682 = vsel %vm1161, %v2353, %v2346
        %v2684 = vunpack.c.l.s4 1983009808
        %v2685 = vunpack.c.0.s8 %v2684
        %v2686 = vperm.slane %v2682, %v2685
        %v2687 = vrot.slane %v2354, 4
        %v2688 = vsel %vm1161, %v2687, %v2352
        %v2690 = vunpack.c.l.s4 1983009808
        %v2691 = vunpack.c.0.s8 %v2690
        %v2692 = vperm.slane %v2688, %v2691
        %v2693 = vrot.slane %v2692, 4
        %v2694 = vsel %vm1161, %v2693, %v2686
        %v2696 = vunpack.c.l.s4 1934713408
        %v2697 = vunpack.c.0.s8 %v2696
        %v2698 = vperm.slane %v2694, %v2697
        %v2699 = vrot.slane %v2698, 4
        %v2700 = vsel %vm1161, 0, %v2699
        %v2701 = vsel %vm1161, %v2379, %v2372
        %v2703 = vunpack.c.l.s4 1983009808
        %v2704 = vunpack.c.0.s8 %v2703
        %v2705 = vperm.slane %v2701, %v2704
        %v2706 = vrot.slane %v2380, 4
        %v2707 = vsel %vm1161, %v2706, %v2378
        %v2709 = vunpack.c.l.s4 1983009808
        %v2710 = vunpack.c.0.s8 %v2709
        %v2711 = vperm.slane %v2707, %v2710
        %v2712 = vrot.slane %v2711, 4
        %v2713 = vsel %vm1161, %v2712, %v2705
        %v2715 = vunpack.c.l.s4 1934713408
        %v2716 = vunpack.c.0.s8 %v2715
        %v2717 = vperm.slane %v2713, %v2716
        %v2718 = vrot.slane %v2717, 4
        %v2719 = vsel %vm1161, 0, %v2718
        %v2720 = vsel %vm1161, %v2405, %v2398
        %v2722 = vunpack.c.l.s4 1983009808
        %v2723 = vunpack.c.0.s8 %v2722
        %v2724 = vperm.slane %v2720, %v2723
        %v2725 = vrot.slane %v2406, 4
        %v2726 = vsel %vm1161, %v2725, %v2404
        %v2728 = vunpack.c.l.s4 1983009808
        %v2729 = vunpack.c.0.s8 %v2728
        %v2730 = vperm.slane %v2726, %v2729
        %v2731 = vrot.slane %v2730, 4
        %v2732 = vsel %vm1161, %v2731, %v2724
        %v2734 = vunpack.c.l.s4 1934713408
        %v2735 = vunpack.c.0.s8 %v2734
        %v2736 = vperm.slane %v2732, %v2735
        %v2737 = vrot.slane %v2736, 4
        %v2738 = vsel %vm1161, 0, %v2737
        %v2739 = vsel %vm1161, %v2431, %v2424
        %v2741 = vunpack.c.l.s4 1983009808
        %v2742 = vunpack.c.0.s8 %v2741
        %v2743 = vperm.slane %v2739, %v2742
        %v2744 = vrot.slane %v2432, 4
        %v2745 = vsel %vm1161, %v2744, %v2430
        %v2747 = vunpack.c.l.s4 1983009808
        %v2748 = vunpack.c.0.s8 %v2747
        %v2749 = vperm.slane %v2745, %v2748
        %v2750 = vrot.slane %v2749, 4
        %v2751 = vsel %vm1161, %v2750, %v2743
        %v2753 = vunpack.c.l.s4 1934713408
        %v2754 = vunpack.c.0.s8 %v2753
        %v2755 = vperm.slane %v2751, %v2754
        %v2756 = vrot.slane %v2755, 4
        %v2757 = vsel %vm1161, 0, %v2756
        %v2758 = vsel %vm1161, %v2457, %v2450
        %v2760 = vunpack.c.l.s4 1983009808
        %v2761 = vunpack.c.0.s8 %v2760
        %v2762 = vperm.slane %v2758, %v2761
        %v2763 = vrot.slane %v2458, 4
        %v2764 = vsel %vm1161, %v2763, %v2456
        %v2766 = vunpack.c.l.s4 1983009808
        %v2767 = vunpack.c.0.s8 %v2766
        %v2768 = vperm.slane %v2764, %v2767
        %v2769 = vrot.slane %v2768, 4
        %v2770 = vsel %vm1161, %v2769, %v2762
        %v2772 = vunpack.c.l.s4 1934713408
        %v2773 = vunpack.c.0.s8 %v2772
        %v2774 = vperm.slane %v2770, %v2773
        %v2775 = vrot.slane %v2774, 4
        %v2776 = vsel %vm1161, 0, %v2775
        %v2777 = vsel %vm1161, %v2483, %v2476
        %v2779 = vunpack.c.l.s4 1983009808
        %v2780 = vunpack.c.0.s8 %v2779
        %v2781 = vperm.slane %v2777, %v2780
        %v2782 = vrot.slane %v2484, 4
        %v2783 = vsel %vm1161, %v2782, %v2482
        %v2785 = vunpack.c.l.s4 1983009808
        %v2786 = vunpack.c.0.s8 %v2785
        %v2787 = vperm.slane %v2783, %v2786
        %v2788 = vrot.slane %v2787, 4
        %v2789 = vsel %vm1161, %v2788, %v2781
        %v2791 = vunpack.c.l.s4 1934713408
        %v2792 = vunpack.c.0.s8 %v2791
        %v2793 = vperm.slane %v2789, %v2792
        %v2794 = vrot.slane %v2793, 4
        %v2795 = vsel %vm1161, 0, %v2794
        %v2796 = vsel %vm1161, %v2509, %v2502
        %v2798 = vunpack.c.l.s4 1983009808
        %v2799 = vunpack.c.0.s8 %v2798
        %v2800 = vperm.slane %v2796, %v2799
        %v2801 = vrot.slane %v2510, 4
        %v2802 = vsel %vm1161, %v2801, %v2508
        %v2804 = vunpack.c.l.s4 1983009808
        %v2805 = vunpack.c.0.s8 %v2804
        %v2806 = vperm.slane %v2802, %v2805
        %v2807 = vrot.slane %v2806, 4
        %v2808 = vsel %vm1161, %v2807, %v2800
        %v2810 = vunpack.c.l.s4 1934713408
        %v2811 = vunpack.c.0.s8 %v2810
        %v2812 = vperm.slane %v2808, %v2811
        %v2813 = vrot.slane %v2812, 4
        %v2814 = vsel %vm1161, 0, %v2813
        %v2817 = vpack.i.b16 %v2546, %v2527
        %v2818 = vshrl.u32 %v2527, 16
        %v2819 = vshrl.u32 %v2546, 16
        %v2820 = vpack.i.b16 %v2819, %v2818
        %v2823 = vpack.i.b16 %v2548, %v2529
        %v2824 = vshrl.u32 %v2529, 16
        %v2825 = vshrl.u32 %v2548, 16
        %v2826 = vpack.i.b16 %v2825, %v2824
        %v2829 = vpack.i.b16 %v2584, %v2565
        %v2830 = vshrl.u32 %v2565, 16
        %v2831 = vshrl.u32 %v2584, 16
        %v2832 = vpack.i.b16 %v2831, %v2830
        %v2835 = vpack.i.b16 %v2586, %v2567
        %v2836 = vshrl.u32 %v2567, 16
        %v2837 = vshrl.u32 %v2586, 16
        %v2838 = vpack.i.b16 %v2837, %v2836
        %v2841 = vpack.i.b16 %v2622, %v2603
        %v2842 = vshrl.u32 %v2603, 16
        %v2843 = vshrl.u32 %v2622, 16
        %v2844 = vpack.i.b16 %v2843, %v2842
        %v2847 = vpack.i.b16 %v2624, %v2605
        %v2848 = vshrl.u32 %v2605, 16
        %v2849 = vshrl.u32 %v2624, 16
        %v2850 = vpack.i.b16 %v2849, %v2848
        %v2853 = vpack.i.b16 %v2660, %v2641
        %v2854 = vshrl.u32 %v2641, 16
        %v2855 = vshrl.u32 %v2660, 16
        %v2856 = vpack.i.b16 %v2855, %v2854
        %v2859 = vpack.i.b16 %v2662, %v2643
        %v2860 = vshrl.u32 %v2643, 16
        %v2861 = vshrl.u32 %v2662, 16
        %v2862 = vpack.i.b16 %v2861, %v2860
        %v2865 = vpack.i.b16 %v2698, %v2679
        %v2866 = vshrl.u32 %v2679, 16
        %v2867 = vshrl.u32 %v2698, 16
        %v2868 = vpack.i.b16 %v2867, %v2866
        %v2871 = vpack.i.b16 %v2700, %v2681
        %v2872 = vshrl.u32 %v2681, 16
        %v2873 = vshrl.u32 %v2700, 16
        %v2874 = vpack.i.b16 %v2873, %v2872
        %v2877 = vpack.i.b16 %v2736, %v2717
        %v2878 = vshrl.u32 %v2717, 16
        %v2879 = vshrl.u32 %v2736, 16
        %v2880 = vpack.i.b16 %v2879, %v2878
        %v2883 = vpack.i.b16 %v2738, %v2719
        %v2884 = vshrl.u32 %v2719, 16
        %v2885 = vshrl.u32 %v2738, 16
        %v2886 = vpack.i.b16 %v2885, %v2884
        %v2889 = vpack.i.b16 %v2774, %v2755
        %v2890 = vshrl.u32 %v2755, 16
        %v2891 = vshrl.u32 %v2774, 16
        %v2892 = vpack.i.b16 %v2891, %v2890
        %v2895 = vpack.i.b16 %v2776, %v2757
        %v2896 = vshrl.u32 %v2757, 16
        %v2897 = vshrl.u32 %v2776, 16
        %v2898 = vpack.i.b16 %v2897, %v2896
        %v2901 = vpack.i.b16 %v2812, %v2793
        %v2902 = vshrl.u32 %v2793, 16
        %v2903 = vshrl.u32 %v2812, 16
        %v2904 = vpack.i.b16 %v2903, %v2902
        %v2907 = vpack.i.b16 %v2814, %v2795
        %v2908 = vshrl.u32 %v2795, 16
        %v2909 = vshrl.u32 %v2814, 16
        %v2910 = vpack.i.b16 %v2909, %v2908
        %2919 = vrot.lane.b32.xlu0 %v983, 96
        %v2920 = vpop.permute.xlu0 %2919
        %2921 = vrot.lane.b32.xlu0 %v985, 96
        %v2922 = vpop.permute.xlu0 %2921
        %2923 = vrot.lane.b32.xlu0 %v987, 96
        %v2924 = vpop.permute.xlu0 %2923
        %2925 = vrot.lane.b32.xlu0 %v989, 96
        %v2926 = vpop.permute.xlu0 %2925
        %2927 = vrot.lane.b32.xlu0 %v991, 96
        %v2928 = vpop.permute.xlu0 %2927
        %2929 = vrot.lane.b32.xlu0 %v993, 96
        %v2930 = vpop.permute.xlu0 %2929
        %2931 = vrot.lane.b32.xlu0 %v995, 96
        %v2932 = vpop.permute.xlu0 %2931
        %2933 = vrot.lane.b32.xlu0 %v997, 96
        %v2934 = vpop.permute.xlu0 %2933
        %2935 = vrot.lane.b32.xlu0 %v983, 64
        %v2936 = vpop.permute.xlu0 %2935
        %2937 = vrot.lane.b32.xlu0 %v985, 64
        %v2938 = vpop.permute.xlu0 %2937
        %2939 = vrot.lane.b32.xlu0 %v987, 64
        %v2940 = vpop.permute.xlu0 %2939
        %2941 = vrot.lane.b32.xlu0 %v989, 64
        %v2942 = vpop.permute.xlu0 %2941
        %2943 = vrot.lane.b32.xlu0 %v991, 64
        %v2944 = vpop.permute.xlu0 %2943
        %2945 = vrot.lane.b32.xlu0 %v993, 64
        %v2946 = vpop.permute.xlu0 %2945
        %2947 = vrot.lane.b32.xlu0 %v995, 64
        %v2948 = vpop.permute.xlu0 %2947
        %2949 = vrot.lane.b32.xlu0 %v997, 64
        %v2950 = vpop.permute.xlu0 %2949
        %2951 = vrot.lane.b32.xlu0 %v983, 32
        %v2952 = vpop.permute.xlu0 %2951
        %2953 = vrot.lane.b32.xlu0 %v985, 32
        %v2954 = vpop.permute.xlu0 %2953
        %2955 = vrot.lane.b32.xlu0 %v987, 32
        %v2956 = vpop.permute.xlu0 %2955
        %2957 = vrot.lane.b32.xlu0 %v989, 32
        %v2958 = vpop.permute.xlu0 %2957
        %2959 = vrot.lane.b32.xlu0 %v991, 32
        %v2960 = vpop.permute.xlu0 %2959
        %2961 = vrot.lane.b32.xlu0 %v993, 32
        %v2962 = vpop.permute.xlu0 %2961
        %2963 = vrot.lane.b32.xlu0 %v995, 32
        %v2964 = vpop.permute.xlu0 %2963
        %2965 = vrot.lane.b32.xlu0 %v997, 32
        %v2966 = vpop.permute.xlu0 %2965
        %v2969 = vpack.i.b16 %v2920, %v983
        %v2970 = vshrl.u32 %v983, 16
        %v2971 = vshrl.u32 %v2920, 16
        %v2972 = vpack.i.b16 %v2971, %v2970
        %v2975 = vpack.i.b16 %v2952, %v2936
        %v2976 = vshrl.u32 %v2936, 16
        %v2977 = vshrl.u32 %v2952, 16
        %v2978 = vpack.i.b16 %v2977, %v2976
        %v2981 = vpack.i.b16 %v2922, %v985
        %v2982 = vshrl.u32 %v985, 16
        %v2983 = vshrl.u32 %v2922, 16
        %v2984 = vpack.i.b16 %v2983, %v2982
        %v2987 = vpack.i.b16 %v2954, %v2938
        %v2988 = vshrl.u32 %v2938, 16
        %v2989 = vshrl.u32 %v2954, 16
        %v2990 = vpack.i.b16 %v2989, %v2988
        %v2993 = vpack.i.b16 %v2924, %v987
        %v2994 = vshrl.u32 %v987, 16
        %v2995 = vshrl.u32 %v2924, 16
        %v2996 = vpack.i.b16 %v2995, %v2994
        %v2999 = vpack.i.b16 %v2956, %v2940
        %v3000 = vshrl.u32 %v2940, 16
        %v3001 = vshrl.u32 %v2956, 16
        %v3002 = vpack.i.b16 %v3001, %v3000
        %v3005 = vpack.i.b16 %v2926, %v989
        %v3006 = vshrl.u32 %v989, 16
        %v3007 = vshrl.u32 %v2926, 16
        %v3008 = vpack.i.b16 %v3007, %v3006
        %v3011 = vpack.i.b16 %v2958, %v2942
        %v3012 = vshrl.u32 %v2942, 16
        %v3013 = vshrl.u32 %v2958, 16
        %v3014 = vpack.i.b16 %v3013, %v3012
        %v3017 = vpack.i.b16 %v2928, %v991
        %v3018 = vshrl.u32 %v991, 16
        %v3019 = vshrl.u32 %v2928, 16
        %v3020 = vpack.i.b16 %v3019, %v3018
        %v3023 = vpack.i.b16 %v2960, %v2944
        %v3024 = vshrl.u32 %v2944, 16
        %v3025 = vshrl.u32 %v2960, 16
        %v3026 = vpack.i.b16 %v3025, %v3024
        %v3029 = vpack.i.b16 %v2930, %v993
        %v3030 = vshrl.u32 %v993, 16
        %v3031 = vshrl.u32 %v2930, 16
        %v3032 = vpack.i.b16 %v3031, %v3030
        %v3035 = vpack.i.b16 %v2962, %v2946
        %v3036 = vshrl.u32 %v2946, 16
        %v3037 = vshrl.u32 %v2962, 16
        %v3038 = vpack.i.b16 %v3037, %v3036
        %v3041 = vpack.i.b16 %v2932, %v995
        %v3042 = vshrl.u32 %v995, 16
        %v3043 = vshrl.u32 %v2932, 16
        %v3044 = vpack.i.b16 %v3043, %v3042
        %v3047 = vpack.i.b16 %v2964, %v2948
        %v3048 = vshrl.u32 %v2948, 16
        %v3049 = vshrl.u32 %v2964, 16
        %v3050 = vpack.i.b16 %v3049, %v3048
        %v3053 = vpack.i.b16 %v2934, %v997
        %v3054 = vshrl.u32 %v997, 16
        %v3055 = vshrl.u32 %v2934, 16
        %v3056 = vpack.i.b16 %v3055, %v3054
        %v3059 = vpack.i.b16 %v2966, %v2950
        %v3060 = vshrl.u32 %v2950, 16
        %v3061 = vshrl.u32 %v2966, 16
        %v3062 = vpack.i.b16 %v3061, %v3060
        %v3065 = vunpack.c.l.s4 1983009808
        %v3066 = vunpack.c.0.s8 %v3065
        %v3067 = vperm.slane %v2969, %v3066
        %v3070 = vunpack.c.l.s4 1983009808
        %v3071 = vunpack.c.0.s8 %v3070
        %v3072 = vperm.slane %v2975, %v3071
        %v3073 = vrot.slane %v3072, 4
        %v3074 = vsel %vm1161, %v3073, %v3067
        %v3075 = vrot.slane %v3067, 4
        %v3076 = vsel %vm1161, %v3072, %v3075
        %v3078 = vunpack.c.l.s4 1934713408
        %v3079 = vunpack.c.0.s8 %v3078
        %v3080 = vperm.slane %v3074, %v3079
        %v3082 = vunpack.c.l.s4 1934713408
        %v3083 = vunpack.c.0.s8 %v3082
        %v3084 = vperm.slane %v3076, %v3083
        %v3085 = vrot.slane %v3080, 4
        %v3086 = vsel %vm1161, 0, %v3085
        %v3087 = vrot.slane %v3084, 4
        %v3088 = vsel %vm1161, 0, %v3087
        %v3091 = vunpack.c.l.s4 1983009808
        %v3092 = vunpack.c.0.s8 %v3091
        %v3093 = vperm.slane %v2972, %v3092
        %v3096 = vunpack.c.l.s4 1983009808
        %v3097 = vunpack.c.0.s8 %v3096
        %v3098 = vperm.slane %v2978, %v3097
        %v3099 = vrot.slane %v3098, 4
        %v3100 = vsel %vm1161, %v3099, %v3093
        %v3101 = vrot.slane %v3093, 4
        %v3102 = vsel %vm1161, %v3098, %v3101
        %v3104 = vunpack.c.l.s4 1934713408
        %v3105 = vunpack.c.0.s8 %v3104
        %v3106 = vperm.slane %v3100, %v3105
        %v3108 = vunpack.c.l.s4 1934713408
        %v3109 = vunpack.c.0.s8 %v3108
        %v3110 = vperm.slane %v3102, %v3109
        %v3111 = vrot.slane %v3106, 4
        %v3112 = vsel %vm1161, 0, %v3111
        %v3113 = vrot.slane %v3110, 4
        %v3114 = vsel %vm1161, 0, %v3113
        %v3117 = vunpack.c.l.s4 1983009808
        %v3118 = vunpack.c.0.s8 %v3117
        %v3119 = vperm.slane %v2981, %v3118
        %v3122 = vunpack.c.l.s4 1983009808
        %v3123 = vunpack.c.0.s8 %v3122
        %v3124 = vperm.slane %v2987, %v3123
        %v3125 = vrot.slane %v3124, 4
        %v3126 = vsel %vm1161, %v3125, %v3119
        %v3127 = vrot.slane %v3119, 4
        %v3128 = vsel %vm1161, %v3124, %v3127
        %v3130 = vunpack.c.l.s4 1934713408
        %v3131 = vunpack.c.0.s8 %v3130
        %v3132 = vperm.slane %v3126, %v3131
        %v3134 = vunpack.c.l.s4 1934713408
        %v3135 = vunpack.c.0.s8 %v3134
        %v3136 = vperm.slane %v3128, %v3135
        %v3137 = vrot.slane %v3132, 4
        %v3138 = vsel %vm1161, 0, %v3137
        %v3139 = vrot.slane %v3136, 4
        %v3140 = vsel %vm1161, 0, %v3139
        %v3143 = vunpack.c.l.s4 1983009808
        %v3144 = vunpack.c.0.s8 %v3143
        %v3145 = vperm.slane %v2984, %v3144
        %v3148 = vunpack.c.l.s4 1983009808
        %v3149 = vunpack.c.0.s8 %v3148
        %v3150 = vperm.slane %v2990, %v3149
        %v3151 = vrot.slane %v3150, 4
        %v3152 = vsel %vm1161, %v3151, %v3145
        %v3153 = vrot.slane %v3145, 4
        %v3154 = vsel %vm1161, %v3150, %v3153
        %v3156 = vunpack.c.l.s4 1934713408
        %v3157 = vunpack.c.0.s8 %v3156
        %v3158 = vperm.slane %v3152, %v3157
        %v3160 = vunpack.c.l.s4 1934713408
        %v3161 = vunpack.c.0.s8 %v3160
        %v3162 = vperm.slane %v3154, %v3161
        %v3163 = vrot.slane %v3158, 4
        %v3164 = vsel %vm1161, 0, %v3163
        %v3165 = vrot.slane %v3162, 4
        %v3166 = vsel %vm1161, 0, %v3165
        %v3169 = vunpack.c.l.s4 1983009808
        %v3170 = vunpack.c.0.s8 %v3169
        %v3171 = vperm.slane %v2993, %v3170
        %v3174 = vunpack.c.l.s4 1983009808
        %v3175 = vunpack.c.0.s8 %v3174
        %v3176 = vperm.slane %v2999, %v3175
        %v3177 = vrot.slane %v3176, 4
        %v3178 = vsel %vm1161, %v3177, %v3171
        %v3179 = vrot.slane %v3171, 4
        %v3180 = vsel %vm1161, %v3176, %v3179
        %v3182 = vunpack.c.l.s4 1934713408
        %v3183 = vunpack.c.0.s8 %v3182
        %v3184 = vperm.slane %v3178, %v3183
        %v3186 = vunpack.c.l.s4 1934713408
        %v3187 = vunpack.c.0.s8 %v3186
        %v3188 = vperm.slane %v3180, %v3187
        %v3189 = vrot.slane %v3184, 4
        %v3190 = vsel %vm1161, 0, %v3189
        %v3191 = vrot.slane %v3188, 4
        %v3192 = vsel %vm1161, 0, %v3191
        %v3195 = vunpack.c.l.s4 1983009808
        %v3196 = vunpack.c.0.s8 %v3195
        %v3197 = vperm.slane %v2996, %v3196
        %v3200 = vunpack.c.l.s4 1983009808
        %v3201 = vunpack.c.0.s8 %v3200
        %v3202 = vperm.slane %v3002, %v3201
        %v3203 = vrot.slane %v3202, 4
        %v3204 = vsel %vm1161, %v3203, %v3197
        %v3205 = vrot.slane %v3197, 4
        %v3206 = vsel %vm1161, %v3202, %v3205
        %v3208 = vunpack.c.l.s4 1934713408
        %v3209 = vunpack.c.0.s8 %v3208
        %v3210 = vperm.slane %v3204, %v3209
        %v3212 = vunpack.c.l.s4 1934713408
        %v3213 = vunpack.c.0.s8 %v3212
        %v3214 = vperm.slane %v3206, %v3213
        %v3215 = vrot.slane %v3210, 4
        %v3216 = vsel %vm1161, 0, %v3215
        %v3217 = vrot.slane %v3214, 4
        %v3218 = vsel %vm1161, 0, %v3217
        %v3221 = vunpack.c.l.s4 1983009808
        %v3222 = vunpack.c.0.s8 %v3221
        %v3223 = vperm.slane %v3005, %v3222
        %v3226 = vunpack.c.l.s4 1983009808
        %v3227 = vunpack.c.0.s8 %v3226
        %v3228 = vperm.slane %v3011, %v3227
        %v3229 = vrot.slane %v3228, 4
        %v3230 = vsel %vm1161, %v3229, %v3223
        %v3231 = vrot.slane %v3223, 4
        %v3232 = vsel %vm1161, %v3228, %v3231
        %v3234 = vunpack.c.l.s4 1934713408
        %v3235 = vunpack.c.0.s8 %v3234
        %v3236 = vperm.slane %v3230, %v3235
        %v3238 = vunpack.c.l.s4 1934713408
        %v3239 = vunpack.c.0.s8 %v3238
        %v3240 = vperm.slane %v3232, %v3239
        %v3241 = vrot.slane %v3236, 4
        %v3242 = vsel %vm1161, 0, %v3241
        %v3243 = vrot.slane %v3240, 4
        %v3244 = vsel %vm1161, 0, %v3243
        %v3247 = vunpack.c.l.s4 1983009808
        %v3248 = vunpack.c.0.s8 %v3247
        %v3249 = vperm.slane %v3008, %v3248
        %v3252 = vunpack.c.l.s4 1983009808
        %v3253 = vunpack.c.0.s8 %v3252
        %v3254 = vperm.slane %v3014, %v3253
        %v3255 = vrot.slane %v3254, 4
        %v3256 = vsel %vm1161, %v3255, %v3249
        %v3257 = vrot.slane %v3249, 4
        %v3258 = vsel %vm1161, %v3254, %v3257
        %v3260 = vunpack.c.l.s4 1934713408
        %v3261 = vunpack.c.0.s8 %v3260
        %v3262 = vperm.slane %v3256, %v3261
        %v3264 = vunpack.c.l.s4 1934713408
        %v3265 = vunpack.c.0.s8 %v3264
        %v3266 = vperm.slane %v3258, %v3265
        %v3267 = vrot.slane %v3262, 4
        %v3268 = vsel %vm1161, 0, %v3267
        %v3269 = vrot.slane %v3266, 4
        %v3270 = vsel %vm1161, 0, %v3269
        %v3273 = vunpack.c.l.s4 1983009808
        %v3274 = vunpack.c.0.s8 %v3273
        %v3275 = vperm.slane %v3017, %v3274
        %v3278 = vunpack.c.l.s4 1983009808
        %v3279 = vunpack.c.0.s8 %v3278
        %v3280 = vperm.slane %v3023, %v3279
        %v3281 = vrot.slane %v3280, 4
        %v3282 = vsel %vm1161, %v3281, %v3275
        %v3283 = vrot.slane %v3275, 4
        %v3284 = vsel %vm1161, %v3280, %v3283
        %v3286 = vunpack.c.l.s4 1934713408
        %v3287 = vunpack.c.0.s8 %v3286
        %v3288 = vperm.slane %v3282, %v3287
        %v3290 = vunpack.c.l.s4 1934713408
        %v3291 = vunpack.c.0.s8 %v3290
        %v3292 = vperm.slane %v3284, %v3291
        %v3293 = vrot.slane %v3288, 4
        %v3294 = vsel %vm1161, 0, %v3293
        %v3295 = vrot.slane %v3292, 4
        %v3296 = vsel %vm1161, 0, %v3295
        %v3299 = vunpack.c.l.s4 1983009808
        %v3300 = vunpack.c.0.s8 %v3299
        %v3301 = vperm.slane %v3020, %v3300
        %v3304 = vunpack.c.l.s4 1983009808
        %v3305 = vunpack.c.0.s8 %v3304
        %v3306 = vperm.slane %v3026, %v3305
        %v3307 = vrot.slane %v3306, 4
        %v3308 = vsel %vm1161, %v3307, %v3301
        %v3309 = vrot.slane %v3301, 4
        %v3310 = vsel %vm1161, %v3306, %v3309
        %v3312 = vunpack.c.l.s4 1934713408
        %v3313 = vunpack.c.0.s8 %v3312
        %v3314 = vperm.slane %v3308, %v3313
        %v3316 = vunpack.c.l.s4 1934713408
        %v3317 = vunpack.c.0.s8 %v3316
        %v3318 = vperm.slane %v3310, %v3317
        %v3319 = vrot.slane %v3314, 4
        %v3320 = vsel %vm1161, 0, %v3319
        %v3321 = vrot.slane %v3318, 4
        %v3322 = vsel %vm1161, 0, %v3321
        %v3325 = vunpack.c.l.s4 1983009808
        %v3326 = vunpack.c.0.s8 %v3325
        %v3327 = vperm.slane %v3029, %v3326
        %v3330 = vunpack.c.l.s4 1983009808
        %v3331 = vunpack.c.0.s8 %v3330
        %v3332 = vperm.slane %v3035, %v3331
        %v3333 = vrot.slane %v3332, 4
        %v3334 = vsel %vm1161, %v3333, %v3327
        %v3335 = vrot.slane %v3327, 4
        %v3336 = vsel %vm1161, %v3332, %v3335
        %v3338 = vunpack.c.l.s4 1934713408
        %v3339 = vunpack.c.0.s8 %v3338
        %v3340 = vperm.slane %v3334, %v3339
        %v3342 = vunpack.c.l.s4 1934713408
        %v3343 = vunpack.c.0.s8 %v3342
        %v3344 = vperm.slane %v3336, %v3343
        %v3345 = vrot.slane %v3340, 4
        %v3346 = vsel %vm1161, 0, %v3345
        %v3347 = vrot.slane %v3344, 4
        %v3348 = vsel %vm1161, 0, %v3347
        %v3351 = vunpack.c.l.s4 1983009808
        %v3352 = vunpack.c.0.s8 %v3351
        %v3353 = vperm.slane %v3032, %v3352
        %v3356 = vunpack.c.l.s4 1983009808
        %v3357 = vunpack.c.0.s8 %v3356
        %v3358 = vperm.slane %v3038, %v3357
        %v3359 = vrot.slane %v3358, 4
        %v3360 = vsel %vm1161, %v3359, %v3353
        %v3361 = vrot.slane %v3353, 4
        %v3362 = vsel %vm1161, %v3358, %v3361
        %v3364 = vunpack.c.l.s4 1934713408
        %v3365 = vunpack.c.0.s8 %v3364
        %v3366 = vperm.slane %v3360, %v3365
        %v3368 = vunpack.c.l.s4 1934713408
        %v3369 = vunpack.c.0.s8 %v3368
        %v3370 = vperm.slane %v3362, %v3369
        %v3371 = vrot.slane %v3366, 4
        %v3372 = vsel %vm1161, 0, %v3371
        %v3373 = vrot.slane %v3370, 4
        %v3374 = vsel %vm1161, 0, %v3373
        %v3377 = vunpack.c.l.s4 1983009808
        %v3378 = vunpack.c.0.s8 %v3377
        %v3379 = vperm.slane %v3041, %v3378
        %v3382 = vunpack.c.l.s4 1983009808
        %v3383 = vunpack.c.0.s8 %v3382
        %v3384 = vperm.slane %v3047, %v3383
        %v3385 = vrot.slane %v3384, 4
        %v3386 = vsel %vm1161, %v3385, %v3379
        %v3387 = vrot.slane %v3379, 4
        %v3388 = vsel %vm1161, %v3384, %v3387
        %v3390 = vunpack.c.l.s4 1934713408
        %v3391 = vunpack.c.0.s8 %v3390
        %v3392 = vperm.slane %v3386, %v3391
        %v3394 = vunpack.c.l.s4 1934713408
        %v3395 = vunpack.c.0.s8 %v3394
        %v3396 = vperm.slane %v3388, %v3395
        %v3397 = vrot.slane %v3392, 4
        %v3398 = vsel %vm1161, 0, %v3397
        %v3399 = vrot.slane %v3396, 4
        %v3400 = vsel %vm1161, 0, %v3399
        %v3403 = vunpack.c.l.s4 1983009808
        %v3404 = vunpack.c.0.s8 %v3403
        %v3405 = vperm.slane %v3044, %v3404
        %v3408 = vunpack.c.l.s4 1983009808
        %v3409 = vunpack.c.0.s8 %v3408
        %v3410 = vperm.slane %v3050, %v3409
        %v3411 = vrot.slane %v3410, 4
        %v3412 = vsel %vm1161, %v3411, %v3405
        %v3413 = vrot.slane %v3405, 4
        %v3414 = vsel %vm1161, %v3410, %v3413
        %v3416 = vunpack.c.l.s4 1934713408
        %v3417 = vunpack.c.0.s8 %v3416
        %v3418 = vperm.slane %v3412, %v3417
        %v3420 = vunpack.c.l.s4 1934713408
        %v3421 = vunpack.c.0.s8 %v3420
        %v3422 = vperm.slane %v3414, %v3421
        %v3423 = vrot.slane %v3418, 4
        %v3424 = vsel %vm1161, 0, %v3423
        %v3425 = vrot.slane %v3422, 4
        %v3426 = vsel %vm1161, 0, %v3425
        %v3429 = vunpack.c.l.s4 1983009808
        %v3430 = vunpack.c.0.s8 %v3429
        %v3431 = vperm.slane %v3053, %v3430
        %v3434 = vunpack.c.l.s4 1983009808
        %v3435 = vunpack.c.0.s8 %v3434
        %v3436 = vperm.slane %v3059, %v3435
        %v3437 = vrot.slane %v3436, 4
        %v3438 = vsel %vm1161, %v3437, %v3431
        %v3439 = vrot.slane %v3431, 4
        %v3440 = vsel %vm1161, %v3436, %v3439
        %v3442 = vunpack.c.l.s4 1934713408
        %v3443 = vunpack.c.0.s8 %v3442
        %v3444 = vperm.slane %v3438, %v3443
        %v3446 = vunpack.c.l.s4 1934713408
        %v3447 = vunpack.c.0.s8 %v3446
        %v3448 = vperm.slane %v3440, %v3447
        %v3449 = vrot.slane %v3444, 4
        %v3450 = vsel %vm1161, 0, %v3449
        %v3451 = vrot.slane %v3448, 4
        %v3452 = vsel %vm1161, 0, %v3451
        %v3455 = vunpack.c.l.s4 1983009808
        %v3456 = vunpack.c.0.s8 %v3455
        %v3457 = vperm.slane %v3056, %v3456
        %v3460 = vunpack.c.l.s4 1983009808
        %v3461 = vunpack.c.0.s8 %v3460
        %v3462 = vperm.slane %v3062, %v3461
        %v3463 = vrot.slane %v3462, 4
        %v3464 = vsel %vm1161, %v3463, %v3457
        %v3465 = vrot.slane %v3457, 4
        %v3466 = vsel %vm1161, %v3462, %v3465
        %v3468 = vunpack.c.l.s4 1934713408
        %v3469 = vunpack.c.0.s8 %v3468
        %v3470 = vperm.slane %v3464, %v3469
        %v3472 = vunpack.c.l.s4 1934713408
        %v3473 = vunpack.c.0.s8 %v3472
        %v3474 = vperm.slane %v3466, %v3473
        %v3475 = vrot.slane %v3470, 4
        %v3476 = vsel %vm1161, 0, %v3475
        %v3477 = vrot.slane %v3474, 4
        %v3478 = vsel %vm1161, 0, %v3477
        %v3479 = vsel %vm1161, %v3087, %v3080
        %v3481 = vunpack.c.l.s4 1983009808
        %v3482 = vunpack.c.0.s8 %v3481
        %v3483 = vperm.slane %v3479, %v3482
        %v3484 = vrot.slane %v3088, 4
        %v3485 = vsel %vm1161, %v3484, %v3086
        %v3487 = vunpack.c.l.s4 1983009808
        %v3488 = vunpack.c.0.s8 %v3487
        %v3489 = vperm.slane %v3485, %v3488
        %v3490 = vrot.slane %v3489, 4
        %v3491 = vsel %vm1161, %v3490, %v3483
        %v3493 = vunpack.c.l.s4 1934713408
        %v3494 = vunpack.c.0.s8 %v3493
        %v3495 = vperm.slane %v3491, %v3494
        %v3496 = vrot.slane %v3495, 4
        %v3497 = vsel %vm1161, 0, %v3496
        %v3498 = vsel %vm1161, %v3113, %v3106
        %v3500 = vunpack.c.l.s4 1983009808
        %v3501 = vunpack.c.0.s8 %v3500
        %v3502 = vperm.slane %v3498, %v3501
        %v3503 = vrot.slane %v3114, 4
        %v3504 = vsel %vm1161, %v3503, %v3112
        %v3506 = vunpack.c.l.s4 1983009808
        %v3507 = vunpack.c.0.s8 %v3506
        %v3508 = vperm.slane %v3504, %v3507
        %v3509 = vrot.slane %v3508, 4
        %v3510 = vsel %vm1161, %v3509, %v3502
        %v3512 = vunpack.c.l.s4 1934713408
        %v3513 = vunpack.c.0.s8 %v3512
        %v3514 = vperm.slane %v3510, %v3513
        %v3515 = vrot.slane %v3514, 4
        %v3516 = vsel %vm1161, 0, %v3515
        %v3517 = vsel %vm1161, %v3139, %v3132
        %v3519 = vunpack.c.l.s4 1983009808
        %v3520 = vunpack.c.0.s8 %v3519
        %v3521 = vperm.slane %v3517, %v3520
        %v3522 = vrot.slane %v3140, 4
        %v3523 = vsel %vm1161, %v3522, %v3138
        %v3525 = vunpack.c.l.s4 1983009808
        %v3526 = vunpack.c.0.s8 %v3525
        %v3527 = vperm.slane %v3523, %v3526
        %v3528 = vrot.slane %v3527, 4
        %v3529 = vsel %vm1161, %v3528, %v3521
        %v3531 = vunpack.c.l.s4 1934713408
        %v3532 = vunpack.c.0.s8 %v3531
        %v3533 = vperm.slane %v3529, %v3532
        %v3534 = vrot.slane %v3533, 4
        %v3535 = vsel %vm1161, 0, %v3534
        %v3536 = vsel %vm1161, %v3165, %v3158
        %v3538 = vunpack.c.l.s4 1983009808
        %v3539 = vunpack.c.0.s8 %v3538
        %v3540 = vperm.slane %v3536, %v3539
        %v3541 = vrot.slane %v3166, 4
        %v3542 = vsel %vm1161, %v3541, %v3164
        %v3544 = vunpack.c.l.s4 1983009808
        %v3545 = vunpack.c.0.s8 %v3544
        %v3546 = vperm.slane %v3542, %v3545
        %v3547 = vrot.slane %v3546, 4
        %v3548 = vsel %vm1161, %v3547, %v3540
        %v3550 = vunpack.c.l.s4 1934713408
        %v3551 = vunpack.c.0.s8 %v3550
        %v3552 = vperm.slane %v3548, %v3551
        %v3553 = vrot.slane %v3552, 4
        %v3554 = vsel %vm1161, 0, %v3553
        %v3555 = vsel %vm1161, %v3191, %v3184
        %v3557 = vunpack.c.l.s4 1983009808
        %v3558 = vunpack.c.0.s8 %v3557
        %v3559 = vperm.slane %v3555, %v3558
        %v3560 = vrot.slane %v3192, 4
        %v3561 = vsel %vm1161, %v3560, %v3190
        %v3563 = vunpack.c.l.s4 1983009808
        %v3564 = vunpack.c.0.s8 %v3563
        %v3565 = vperm.slane %v3561, %v3564
        %v3566 = vrot.slane %v3565, 4
        %v3567 = vsel %vm1161, %v3566, %v3559
        %v3569 = vunpack.c.l.s4 1934713408
        %v3570 = vunpack.c.0.s8 %v3569
        %v3571 = vperm.slane %v3567, %v3570
        %v3572 = vrot.slane %v3571, 4
        %v3573 = vsel %vm1161, 0, %v3572
        %v3574 = vsel %vm1161, %v3217, %v3210
        %v3576 = vunpack.c.l.s4 1983009808
        %v3577 = vunpack.c.0.s8 %v3576
        %v3578 = vperm.slane %v3574, %v3577
        %v3579 = vrot.slane %v3218, 4
        %v3580 = vsel %vm1161, %v3579, %v3216
        %v3582 = vunpack.c.l.s4 1983009808
        %v3583 = vunpack.c.0.s8 %v3582
        %v3584 = vperm.slane %v3580, %v3583
        %v3585 = vrot.slane %v3584, 4
        %v3586 = vsel %vm1161, %v3585, %v3578
        %v3588 = vunpack.c.l.s4 1934713408
        %v3589 = vunpack.c.0.s8 %v3588
        %v3590 = vperm.slane %v3586, %v3589
        %v3591 = vrot.slane %v3590, 4
        %v3592 = vsel %vm1161, 0, %v3591
        %v3593 = vsel %vm1161, %v3243, %v3236
        %v3595 = vunpack.c.l.s4 1983009808
        %v3596 = vunpack.c.0.s8 %v3595
        %v3597 = vperm.slane %v3593, %v3596
        %v3598 = vrot.slane %v3244, 4
        %v3599 = vsel %vm1161, %v3598, %v3242
        %v3601 = vunpack.c.l.s4 1983009808
        %v3602 = vunpack.c.0.s8 %v3601
        %v3603 = vperm.slane %v3599, %v3602
        %v3604 = vrot.slane %v3603, 4
        %v3605 = vsel %vm1161, %v3604, %v3597
        %v3607 = vunpack.c.l.s4 1934713408
        %v3608 = vunpack.c.0.s8 %v3607
        %v3609 = vperm.slane %v3605, %v3608
        %v3610 = vrot.slane %v3609, 4
        %v3611 = vsel %vm1161, 0, %v3610
        %v3612 = vsel %vm1161, %v3269, %v3262
        %v3614 = vunpack.c.l.s4 1983009808
        %v3615 = vunpack.c.0.s8 %v3614
        %v3616 = vperm.slane %v3612, %v3615
        %v3617 = vrot.slane %v3270, 4
        %v3618 = vsel %vm1161, %v3617, %v3268
        %v3620 = vunpack.c.l.s4 1983009808
        %v3621 = vunpack.c.0.s8 %v3620
        %v3622 = vperm.slane %v3618, %v3621
        %v3623 = vrot.slane %v3622, 4
        %v3624 = vsel %vm1161, %v3623, %v3616
        %v3626 = vunpack.c.l.s4 1934713408
        %v3627 = vunpack.c.0.s8 %v3626
        %v3628 = vperm.slane %v3624, %v3627
        %v3629 = vrot.slane %v3628, 4
        %v3630 = vsel %vm1161, 0, %v3629
        %v3631 = vsel %vm1161, %v3295, %v3288
        %v3633 = vunpack.c.l.s4 1983009808
        %v3634 = vunpack.c.0.s8 %v3633
        %v3635 = vperm.slane %v3631, %v3634
        %v3636 = vrot.slane %v3296, 4
        %v3637 = vsel %vm1161, %v3636, %v3294
        %v3639 = vunpack.c.l.s4 1983009808
        %v3640 = vunpack.c.0.s8 %v3639
        %v3641 = vperm.slane %v3637, %v3640
        %v3642 = vrot.slane %v3641, 4
        %v3643 = vsel %vm1161, %v3642, %v3635
        %v3645 = vunpack.c.l.s4 1934713408
        %v3646 = vunpack.c.0.s8 %v3645
        %v3647 = vperm.slane %v3643, %v3646
        %v3648 = vrot.slane %v3647, 4
        %v3649 = vsel %vm1161, 0, %v3648
        %v3650 = vsel %vm1161, %v3321, %v3314
        %v3652 = vunpack.c.l.s4 1983009808
        %v3653 = vunpack.c.0.s8 %v3652
        %v3654 = vperm.slane %v3650, %v3653
        %v3655 = vrot.slane %v3322, 4
        %v3656 = vsel %vm1161, %v3655, %v3320
        %v3658 = vunpack.c.l.s4 1983009808
        %v3659 = vunpack.c.0.s8 %v3658
        %v3660 = vperm.slane %v3656, %v3659
        %v3661 = vrot.slane %v3660, 4
        %v3662 = vsel %vm1161, %v3661, %v3654
        %v3664 = vunpack.c.l.s4 1934713408
        %v3665 = vunpack.c.0.s8 %v3664
        %v3666 = vperm.slane %v3662, %v3665
        %v3667 = vrot.slane %v3666, 4
        %v3668 = vsel %vm1161, 0, %v3667
        %v3669 = vsel %vm1161, %v3347, %v3340
        %v3671 = vunpack.c.l.s4 1983009808
        %v3672 = vunpack.c.0.s8 %v3671
        %v3673 = vperm.slane %v3669, %v3672
        %v3674 = vrot.slane %v3348, 4
        %v3675 = vsel %vm1161, %v3674, %v3346
        %v3677 = vunpack.c.l.s4 1983009808
        %v3678 = vunpack.c.0.s8 %v3677
        %v3679 = vperm.slane %v3675, %v3678
        %v3680 = vrot.slane %v3679, 4
        %v3681 = vsel %vm1161, %v3680, %v3673
        %v3683 = vunpack.c.l.s4 1934713408
        %v3684 = vunpack.c.0.s8 %v3683
        %v3685 = vperm.slane %v3681, %v3684
        %v3686 = vrot.slane %v3685, 4
        %v3687 = vsel %vm1161, 0, %v3686
        %v3688 = vsel %vm1161, %v3373, %v3366
        %v3690 = vunpack.c.l.s4 1983009808
        %v3691 = vunpack.c.0.s8 %v3690
        %v3692 = vperm.slane %v3688, %v3691
        %v3693 = vrot.slane %v3374, 4
        %v3694 = vsel %vm1161, %v3693, %v3372
        %v3696 = vunpack.c.l.s4 1983009808
        %v3697 = vunpack.c.0.s8 %v3696
        %v3698 = vperm.slane %v3694, %v3697
        %v3699 = vrot.slane %v3698, 4
        %v3700 = vsel %vm1161, %v3699, %v3692
        %v3702 = vunpack.c.l.s4 1934713408
        %v3703 = vunpack.c.0.s8 %v3702
        %v3704 = vperm.slane %v3700, %v3703
        %v3705 = vrot.slane %v3704, 4
        %v3706 = vsel %vm1161, 0, %v3705
        %v3707 = vsel %vm1161, %v3399, %v3392
        %v3709 = vunpack.c.l.s4 1983009808
        %v3710 = vunpack.c.0.s8 %v3709
        %v3711 = vperm.slane %v3707, %v3710
        %v3712 = vrot.slane %v3400, 4
        %v3713 = vsel %vm1161, %v3712, %v3398
        %v3715 = vunpack.c.l.s4 1983009808
        %v3716 = vunpack.c.0.s8 %v3715
        %v3717 = vperm.slane %v3713, %v3716
        %v3718 = vrot.slane %v3717, 4
        %v3719 = vsel %vm1161, %v3718, %v3711
        %v3721 = vunpack.c.l.s4 1934713408
        %v3722 = vunpack.c.0.s8 %v3721
        %v3723 = vperm.slane %v3719, %v3722
        %v3724 = vrot.slane %v3723, 4
        %v3725 = vsel %vm1161, 0, %v3724
        %v3726 = vsel %vm1161, %v3425, %v3418
        %v3728 = vunpack.c.l.s4 1983009808
        %v3729 = vunpack.c.0.s8 %v3728
        %v3730 = vperm.slane %v3726, %v3729
        %v3731 = vrot.slane %v3426, 4
        %v3732 = vsel %vm1161, %v3731, %v3424
        %v3734 = vunpack.c.l.s4 1983009808
        %v3735 = vunpack.c.0.s8 %v3734
        %v3736 = vperm.slane %v3732, %v3735
        %v3737 = vrot.slane %v3736, 4
        %v3738 = vsel %vm1161, %v3737, %v3730
        %v3740 = vunpack.c.l.s4 1934713408
        %v3741 = vunpack.c.0.s8 %v3740
        %v3742 = vperm.slane %v3738, %v3741
        %v3743 = vrot.slane %v3742, 4
        %v3744 = vsel %vm1161, 0, %v3743
        %v3745 = vsel %vm1161, %v3451, %v3444
        %v3747 = vunpack.c.l.s4 1983009808
        %v3748 = vunpack.c.0.s8 %v3747
        %v3749 = vperm.slane %v3745, %v3748
        %v3750 = vrot.slane %v3452, 4
        %v3751 = vsel %vm1161, %v3750, %v3450
        %v3753 = vunpack.c.l.s4 1983009808
        %v3754 = vunpack.c.0.s8 %v3753
        %v3755 = vperm.slane %v3751, %v3754
        %v3756 = vrot.slane %v3755, 4
        %v3757 = vsel %vm1161, %v3756, %v3749
        %v3759 = vunpack.c.l.s4 1934713408
        %v3760 = vunpack.c.0.s8 %v3759
        %v3761 = vperm.slane %v3757, %v3760
        %v3762 = vrot.slane %v3761, 4
        %v3763 = vsel %vm1161, 0, %v3762
        %v3764 = vsel %vm1161, %v3477, %v3470
        %v3766 = vunpack.c.l.s4 1983009808
        %v3767 = vunpack.c.0.s8 %v3766
        %v3768 = vperm.slane %v3764, %v3767
        %v3769 = vrot.slane %v3478, 4
        %v3770 = vsel %vm1161, %v3769, %v3476
        %v3772 = vunpack.c.l.s4 1983009808
        %v3773 = vunpack.c.0.s8 %v3772
        %v3774 = vperm.slane %v3770, %v3773
        %v3775 = vrot.slane %v3774, 4
        %v3776 = vsel %vm1161, %v3775, %v3768
        %v3778 = vunpack.c.l.s4 1934713408
        %v3779 = vunpack.c.0.s8 %v3778
        %v3780 = vperm.slane %v3776, %v3779
        %v3781 = vrot.slane %v3780, 4
        %v3782 = vsel %vm1161, 0, %v3781
        %v3785 = vpack.i.b16 %v3514, %v3495
        %v3786 = vshrl.u32 %v3495, 16
        %v3787 = vshrl.u32 %v3514, 16
        %v3788 = vpack.i.b16 %v3787, %v3786
        %v3791 = vpack.i.b16 %v3516, %v3497
        %v3792 = vshrl.u32 %v3497, 16
        %v3793 = vshrl.u32 %v3516, 16
        %v3794 = vpack.i.b16 %v3793, %v3792
        %v3797 = vpack.i.b16 %v3552, %v3533
        %v3798 = vshrl.u32 %v3533, 16
        %v3799 = vshrl.u32 %v3552, 16
        %v3800 = vpack.i.b16 %v3799, %v3798
        %v3803 = vpack.i.b16 %v3554, %v3535
        %v3804 = vshrl.u32 %v3535, 16
        %v3805 = vshrl.u32 %v3554, 16
        %v3806 = vpack.i.b16 %v3805, %v3804
        %v3809 = vpack.i.b16 %v3590, %v3571
        %v3810 = vshrl.u32 %v3571, 16
        %v3811 = vshrl.u32 %v3590, 16
        %v3812 = vpack.i.b16 %v3811, %v3810
        %v3815 = vpack.i.b16 %v3592, %v3573
        %v3816 = vshrl.u32 %v3573, 16
        %v3817 = vshrl.u32 %v3592, 16
        %v3818 = vpack.i.b16 %v3817, %v3816
        %v3821 = vpack.i.b16 %v3628, %v3609
        %v3822 = vshrl.u32 %v3609, 16
        %v3823 = vshrl.u32 %v3628, 16
        %v3824 = vpack.i.b16 %v3823, %v3822
        %v3827 = vpack.i.b16 %v3630, %v3611
        %v3828 = vshrl.u32 %v3611, 16
        %v3829 = vshrl.u32 %v3630, 16
        %v3830 = vpack.i.b16 %v3829, %v3828
        %v3833 = vpack.i.b16 %v3666, %v3647
        %v3834 = vshrl.u32 %v3647, 16
        %v3835 = vshrl.u32 %v3666, 16
        %v3836 = vpack.i.b16 %v3835, %v3834
        %v3839 = vpack.i.b16 %v3668, %v3649
        %v3840 = vshrl.u32 %v3649, 16
        %v3841 = vshrl.u32 %v3668, 16
        %v3842 = vpack.i.b16 %v3841, %v3840
        %v3845 = vpack.i.b16 %v3704, %v3685
        %v3846 = vshrl.u32 %v3685, 16
        %v3847 = vshrl.u32 %v3704, 16
        %v3848 = vpack.i.b16 %v3847, %v3846
        %v3851 = vpack.i.b16 %v3706, %v3687
        %v3852 = vshrl.u32 %v3687, 16
        %v3853 = vshrl.u32 %v3706, 16
        %v3854 = vpack.i.b16 %v3853, %v3852
        %v3857 = vpack.i.b16 %v3742, %v3723
        %v3858 = vshrl.u32 %v3723, 16
        %v3859 = vshrl.u32 %v3742, 16
        %v3860 = vpack.i.b16 %v3859, %v3858
        %v3863 = vpack.i.b16 %v3744, %v3725
        %v3864 = vshrl.u32 %v3725, 16
        %v3865 = vshrl.u32 %v3744, 16
        %v3866 = vpack.i.b16 %v3865, %v3864
        %v3869 = vpack.i.b16 %v3780, %v3761
        %v3870 = vshrl.u32 %v3761, 16
        %v3871 = vshrl.u32 %v3780, 16
        %v3872 = vpack.i.b16 %v3871, %v3870
        %v3875 = vpack.i.b16 %v3782, %v3763
        %v3876 = vshrl.u32 %v3763, 16
        %v3877 = vshrl.u32 %v3782, 16
        %v3878 = vpack.i.b16 %v3877, %v3876
        %v3879 = vunpack.c.l.b16 %v1873
        %v3880 = vunpack.c.l.b16 %v1885
        %v3881 = vunpack.c.l.b16 %v1897
        %v3882 = vunpack.c.l.b16 %v1909
        %v3883 = vunpack.c.l.b16 %v1921
        %v3884 = vunpack.c.l.b16 %v1933
        %v3885 = vunpack.c.l.b16 %v1945
        %v3886 = vunpack.c.l.b16 %v1957
        %v3887 = vpack.c.b16 %v3880, %v3879
        %v3888 = vpack.c.b16 %v3882, %v3881
        %v3889 = vpack.c.b16 %v3884, %v3883
        %v3890 = vpack.c.b16 %v3886, %v3885
        %v3891 = vunpack.c.l.b16 %v2817
        %v3892 = vunpack.c.l.b16 %v2829
        %v3893 = vunpack.c.l.b16 %v2841
        %v3894 = vunpack.c.l.b16 %v2853
        %v3895 = vunpack.c.l.b16 %v2865
        %v3896 = vunpack.c.l.b16 %v2877
        %v3897 = vunpack.c.l.b16 %v2889
        %v3898 = vunpack.c.l.b16 %v2901
        %v3899 = vpack.c.b16 %v3892, %v3891
        %v3900 = vpack.c.b16 %v3894, %v3893
        %v3901 = vpack.c.b16 %v3896, %v3895
        %v3902 = vpack.c.b16 %v3898, %v3897
        %vm3903 = vcmask 261120
        %v3905 = vsel %vm3903, %v3887, 0
        %v3908 = vsel %vm3903, %v3888, 0
        %v3911 = vsel %vm3903, %v3889, 0
        %v3914 = vsel %vm3903, %v3890, 0
        %v3917 = vsel %vm3903, %v3899, 0
        %v3920 = vsel %vm3903, %v3900, 0
        %v3923 = vsel %vm3903, %v3901, 0
        %v3926 = vsel %vm3903, %v3902, 0
        %3928 = vmatpush.bf16.xpose.msra.mxu0 0
        %3929 = vmatpush.bf16.xpose.msra.mxu0 0
        %3930 = vmatpush.bf16.xpose.msra.mxu0 0
        %3931 = vmatpush.bf16.xpose.msra.mxu0 0
        %3932 = vmatpush.bf16.xpose.msra.mxu0 %v3926
        %3933 = vmatpush.bf16.xpose.msra.mxu0 %v3923
        %3934 = vmatpush.bf16.xpose.msra.mxu0 %v3920
        %3935 = vmatpush.bf16.xpose.msra.mxu0 %v3917
        %3936 = vmatmul.bf16.gmra.mxu0 %v3905
        %v3937 = vpop.f32.mrf.mxu0
        %v3938 = vadd.f32 0.0, %v3937
        %v3939 = vpop.f32.mrf.mxu0
        %v3940 = vadd.f32 0.0, %v3939
        %3941 = vmatmul.bf16.gmra.mxu0 %v3908
        %v3942 = vpop.f32.mrf.mxu0
        %v3943 = vadd.f32 0.0, %v3942
        %v3944 = vpop.f32.mrf.mxu0
        %v3945 = vadd.f32 0.0, %v3944
        %3946 = vmatmul.bf16.gmra.mxu0 %v3911
        %v3947 = vpop.f32.mrf.mxu0
        %v3948 = vadd.f32 0.0, %v3947
        %v3949 = vpop.f32.mrf.mxu0
        %v3950 = vadd.f32 0.0, %v3949
        %3951 = vmatmul.bf16.gmra.mxu0 %v3914
        %v3952 = vpop.f32.mrf.mxu0
        %v3953 = vadd.f32 0.0, %v3952
        %v3954 = vpop.f32.mrf.mxu0
        %v3955 = vadd.f32 0.0, %v3954
        %3956 = vdwg.mxu0
        %v3957 = vunpack.c.l.b16 %v1876
        %v3958 = vunpack.c.l.b16 %v1888
        %v3959 = vunpack.c.l.b16 %v1900
        %v3960 = vunpack.c.l.b16 %v1912
        %v3961 = vunpack.c.l.b16 %v1924
        %v3962 = vunpack.c.l.b16 %v1936
        %v3963 = vunpack.c.l.b16 %v1948
        %v3964 = vunpack.c.l.b16 %v1960
        %v3965 = vpack.c.b16 %v3958, %v3957
        %v3966 = vpack.c.b16 %v3960, %v3959
        %v3967 = vpack.c.b16 %v3962, %v3961
        %v3968 = vpack.c.b16 %v3964, %v3963
        %v3969 = vunpack.c.l.b16 %v2820
        %v3970 = vunpack.c.l.b16 %v2832
        %v3971 = vunpack.c.l.b16 %v2844
        %v3972 = vunpack.c.l.b16 %v2856
        %v3973 = vunpack.c.l.b16 %v2868
        %v3974 = vunpack.c.l.b16 %v2880
        %v3975 = vunpack.c.l.b16 %v2892
        %v3976 = vunpack.c.l.b16 %v2904
        %v3977 = vpack.c.b16 %v3970, %v3969
        %v3978 = vpack.c.b16 %v3972, %v3971
        %v3979 = vpack.c.b16 %v3974, %v3973
        %v3980 = vpack.c.b16 %v3976, %v3975
        %v3982 = vsel %vm3903, %v3965, 0
        %v3985 = vsel %vm3903, %v3966, 0
        %v3988 = vsel %vm3903, %v3967, 0
        %v3991 = vsel %vm3903, %v3968, 0
        %v3994 = vsel %vm3903, %v3977, 0
        %v3997 = vsel %vm3903, %v3978, 0
        %v4000 = vsel %vm3903, %v3979, 0
        %v4003 = vsel %vm3903, %v3980, 0
        %4005 = vmatpush.bf16.xpose.msra.mxu0 0
        %4006 = vmatpush.bf16.xpose.msra.mxu0 0
        %4007 = vmatpush.bf16.xpose.msra.mxu0 0
        %4008 = vmatpush.bf16.xpose.msra.mxu0 0
        %4009 = vmatpush.bf16.xpose.msra.mxu0 %v4003
        %4010 = vmatpush.bf16.xpose.msra.mxu0 %v4000
        %4011 = vmatpush.bf16.xpose.msra.mxu0 %v3997
        %4012 = vmatpush.bf16.xpose.msra.mxu0 %v3994
        %4013 = vmatmul.bf16.gmra.mxu0 %v3982
        %v4014 = vpop.f32.mrf.mxu0
        %v4015 = vadd.f32 0.0, %v4014
        %v4016 = vpop.f32.mrf.mxu0
        %v4017 = vadd.f32 0.0, %v4016
        %4018 = vmatmul.bf16.gmra.mxu0 %v3985
        %v4019 = vpop.f32.mrf.mxu0
        %v4020 = vadd.f32 0.0, %v4019
        %v4021 = vpop.f32.mrf.mxu0
        %v4022 = vadd.f32 0.0, %v4021
        %4023 = vmatmul.bf16.gmra.mxu0 %v3988
        %v4024 = vpop.f32.mrf.mxu0
        %v4025 = vadd.f32 0.0, %v4024
        %v4026 = vpop.f32.mrf.mxu0
        %v4027 = vadd.f32 0.0, %v4026
        %4028 = vmatmul.bf16.gmra.mxu0 %v3991
        %v4029 = vpop.f32.mrf.mxu0
        %v4030 = vadd.f32 0.0, %v4029
        %v4031 = vpop.f32.mrf.mxu0
        %v4032 = vadd.f32 0.0, %v4031
        %4033 = vdwg.mxu0
        %v4034 = vunpack.c.l.b16 %v1879
        %v4035 = vunpack.c.l.b16 %v1891
        %v4036 = vunpack.c.l.b16 %v1903
        %v4037 = vunpack.c.l.b16 %v1915
        %v4038 = vunpack.c.l.b16 %v1927
        %v4039 = vunpack.c.l.b16 %v1939
        %v4040 = vunpack.c.l.b16 %v1951
        %v4041 = vunpack.c.l.b16 %v1963
        %v4042 = vpack.c.b16 %v4035, %v4034
        %v4043 = vpack.c.b16 %v4037, %v4036
        %v4044 = vpack.c.b16 %v4039, %v4038
        %v4045 = vpack.c.b16 %v4041, %v4040
        %v4046 = vunpack.c.l.b16 %v2823
        %v4047 = vunpack.c.l.b16 %v2835
        %v4048 = vunpack.c.l.b16 %v2847
        %v4049 = vunpack.c.l.b16 %v2859
        %v4050 = vunpack.c.l.b16 %v2871
        %v4051 = vunpack.c.l.b16 %v2883
        %v4052 = vunpack.c.l.b16 %v2895
        %v4053 = vunpack.c.l.b16 %v2907
        %v4054 = vpack.c.b16 %v4047, %v4046
        %v4055 = vpack.c.b16 %v4049, %v4048
        %v4056 = vpack.c.b16 %v4051, %v4050
        %v4057 = vpack.c.b16 %v4053, %v4052
        %v4059 = vsel %vm3903, %v4042, 0
        %v4062 = vsel %vm3903, %v4043, 0
        %v4065 = vsel %vm3903, %v4044, 0
        %v4068 = vsel %vm3903, %v4045, 0
        %v4071 = vsel %vm3903, %v4054, 0
        %v4074 = vsel %vm3903, %v4055, 0
        %v4077 = vsel %vm3903, %v4056, 0
        %v4080 = vsel %vm3903, %v4057, 0
        %4082 = vmatpush.bf16.xpose.msra.mxu0 0
        %4083 = vmatpush.bf16.xpose.msra.mxu0 0
        %4084 = vmatpush.bf16.xpose.msra.mxu0 0
        %4085 = vmatpush.bf16.xpose.msra.mxu0 0
        %4086 = vmatpush.bf16.xpose.msra.mxu0 %v4080
        %4087 = vmatpush.bf16.xpose.msra.mxu0 %v4077
        %4088 = vmatpush.bf16.xpose.msra.mxu0 %v4074
        %4089 = vmatpush.bf16.xpose.msra.mxu0 %v4071
        %4090 = vmatmul.bf16.gmra.mxu0 %v4059
        %v4091 = vpop.f32.mrf.mxu0
        %v4092 = vadd.f32 0.0, %v4091
        %v4093 = vpop.f32.mrf.mxu0
        %v4094 = vadd.f32 0.0, %v4093
        %4095 = vmatmul.bf16.gmra.mxu0 %v4062
        %v4096 = vpop.f32.mrf.mxu0
        %v4097 = vadd.f32 0.0, %v4096
        %v4098 = vpop.f32.mrf.mxu0
        %v4099 = vadd.f32 0.0, %v4098
        %4100 = vmatmul.bf16.gmra.mxu0 %v4065
        %v4101 = vpop.f32.mrf.mxu0
        %v4102 = vadd.f32 0.0, %v4101
        %v4103 = vpop.f32.mrf.mxu0
        %v4104 = vadd.f32 0.0, %v4103
        %4105 = vmatmul.bf16.gmra.mxu0 %v4068
        %v4106 = vpop.f32.mrf.mxu0
        %v4107 = vadd.f32 0.0, %v4106
        %v4108 = vpop.f32.mrf.mxu0
        %v4109 = vadd.f32 0.0, %v4108
        %4110 = vdwg.mxu0
        %v4111 = vunpack.c.l.b16 %v1882
        %v4112 = vunpack.c.l.b16 %v1894
        %v4113 = vunpack.c.l.b16 %v1906
        %v4114 = vunpack.c.l.b16 %v1918
        %v4115 = vunpack.c.l.b16 %v1930
        %v4116 = vunpack.c.l.b16 %v1942
        %v4117 = vunpack.c.l.b16 %v1954
        %v4118 = vunpack.c.l.b16 %v1966
        %v4119 = vpack.c.b16 %v4112, %v4111
        %v4120 = vpack.c.b16 %v4114, %v4113
        %v4121 = vpack.c.b16 %v4116, %v4115
        %v4122 = vpack.c.b16 %v4118, %v4117
        %v4123 = vunpack.c.l.b16 %v2826
        %v4124 = vunpack.c.l.b16 %v2838
        %v4125 = vunpack.c.l.b16 %v2850
        %v4126 = vunpack.c.l.b16 %v2862
        %v4127 = vunpack.c.l.b16 %v2874
        %v4128 = vunpack.c.l.b16 %v2886
        %v4129 = vunpack.c.l.b16 %v2898
        %v4130 = vunpack.c.l.b16 %v2910
        %v4131 = vpack.c.b16 %v4124, %v4123
        %v4132 = vpack.c.b16 %v4126, %v4125
        %v4133 = vpack.c.b16 %v4128, %v4127
        %v4134 = vpack.c.b16 %v4130, %v4129
        %v4136 = vsel %vm3903, %v4119, 0
        %v4139 = vsel %vm3903, %v4120, 0
        %v4142 = vsel %vm3903, %v4121, 0
        %v4145 = vsel %vm3903, %v4122, 0
        %v4148 = vsel %vm3903, %v4131, 0
        %v4151 = vsel %vm3903, %v4132, 0
        %v4154 = vsel %vm3903, %v4133, 0
        %v4157 = vsel %vm3903, %v4134, 0
        %4159 = vmatpush.bf16.xpose.msra.mxu0 0
        %4160 = vmatpush.bf16.xpose.msra.mxu0 0
        %4161 = vmatpush.bf16.xpose.msra.mxu0 0
        %4162 = vmatpush.bf16.xpose.msra.mxu0 0
        %4163 = vmatpush.bf16.xpose.msra.mxu0 %v4157
        %4164 = vmatpush.bf16.xpose.msra.mxu0 %v4154
        %4165 = vmatpush.bf16.xpose.msra.mxu0 %v4151
        %4166 = vmatpush.bf16.xpose.msra.mxu0 %v4148
        %4167 = vmatmul.bf16.gmra.mxu0 %v4136
        %v4168 = vpop.f32.mrf.mxu0
        %v4169 = vadd.f32 0.0, %v4168
        %v4170 = vpop.f32.mrf.mxu0
        %v4171 = vadd.f32 0.0, %v4170
        %4172 = vmatmul.bf16.gmra.mxu0 %v4139
        %v4173 = vpop.f32.mrf.mxu0
        %v4174 = vadd.f32 0.0, %v4173
        %v4175 = vpop.f32.mrf.mxu0
        %v4176 = vadd.f32 0.0, %v4175
        %4177 = vmatmul.bf16.gmra.mxu0 %v4142
        %v4178 = vpop.f32.mrf.mxu0
        %v4179 = vadd.f32 0.0, %v4178
        %v4180 = vpop.f32.mrf.mxu0
        %v4181 = vadd.f32 0.0, %v4180
        %4182 = vmatmul.bf16.gmra.mxu0 %v4145
        %v4183 = vpop.f32.mrf.mxu0
        %v4184 = vadd.f32 0.0, %v4183
        %v4185 = vpop.f32.mrf.mxu0
        %v4186 = vadd.f32 0.0, %v4185
        %4187 = vdwg.mxu0
        %v4188 = vmul.f32 %v3938, 0.088388346
        %v4189 = vmul.f32 %v3940, 0.088388346
        %v4190 = vmul.f32 %v3943, 0.088388346
        %v4191 = vmul.f32 %v3945, 0.088388346
        %v4192 = vmul.f32 %v3948, 0.088388346
        %v4193 = vmul.f32 %v3950, 0.088388346
        %v4194 = vmul.f32 %v3953, 0.088388346
        %v4195 = vmul.f32 %v3955, 0.088388346
        %v4196 = vmul.f32 %v4015, 0.088388346
        %v4197 = vmul.f32 %v4017, 0.088388346
        %v4198 = vmul.f32 %v4020, 0.088388346
        %v4199 = vmul.f32 %v4022, 0.088388346
        %v4200 = vmul.f32 %v4025, 0.088388346
        %v4201 = vmul.f32 %v4027, 0.088388346
        %v4202 = vmul.f32 %v4030, 0.088388346
        %v4203 = vmul.f32 %v4032, 0.088388346
        %v4204 = vmul.f32 %v4092, 0.088388346
        %v4205 = vmul.f32 %v4094, 0.088388346
        %v4206 = vmul.f32 %v4097, 0.088388346
        %v4207 = vmul.f32 %v4099, 0.088388346
        %v4208 = vmul.f32 %v4102, 0.088388346
        %v4209 = vmul.f32 %v4104, 0.088388346
        %v4210 = vmul.f32 %v4107, 0.088388346
        %v4211 = vmul.f32 %v4109, 0.088388346
        %v4212 = vmul.f32 %v4169, 0.088388346
        %v4213 = vmul.f32 %v4171, 0.088388346
        %v4214 = vmul.f32 %v4174, 0.088388346
        %v4215 = vmul.f32 %v4176, 0.088388346
        %v4216 = vmul.f32 %v4179, 0.088388346
        %v4217 = vmul.f32 %v4181, 0.088388346
        %v4218 = vmul.f32 %v4184, 0.088388346
        %v4219 = vmul.f32 %v4186, 0.088388346
        %v4220 = vlaneseq
        %v4221 = vshrl.u32 %v4220, 7
        %v4222 = vadd.s32 %v4221, 8
        %v4223 = vadd.s32 %v4221, 16
        %v4224 = vadd.s32 %v4221, 24
        %v4225 = vadd.s32 %v4221, 32
        %v4226 = vadd.s32 %v4221, 40
        %v4227 = vadd.s32 %v4221, 48
        %v4228 = vadd.s32 %v4221, 56
        %v4229 = vlaneseq
        %v4230 = vand.u32 %v4229, 127
        %vm4231 = vcmp.ge.s32.totalorder %v4221, %v4230
        %vm4232 = vcmp.ge.s32.totalorder %v4222, %v4230
        %vm4233 = vcmp.ge.s32.totalorder %v4223, %v4230
        %vm4234 = vcmp.ge.s32.totalorder %v4224, %v4230
        %vm4235 = vcmp.ge.s32.totalorder %v4225, %v4230
        %vm4236 = vcmp.ge.s32.totalorder %v4226, %v4230
        %vm4237 = vcmp.ge.s32.totalorder %v4227, %v4230
        %vm4238 = vcmp.ge.s32.totalorder %v4228, %v4230
        %v4239 = vsel %vm4231, 1, 0
        %v4240 = vsel %vm4232, 1, 0
        %v4241 = vsel %vm4233, 1, 0
        %v4242 = vsel %vm4234, 1, 0
        %v4243 = vsel %vm4235, 1, 0
        %v4244 = vsel %vm4236, 1, 0
        %v4245 = vsel %vm4237, 1, 0
        %v4246 = vsel %vm4238, 1, 0
        %vm4247 = vcmp.eq.s32.totalorder %v4239, 1
        %vm4248 = vcmp.eq.s32.totalorder %v4240, 1
        %vm4249 = vcmp.eq.s32.totalorder %v4241, 1
        %vm4250 = vcmp.eq.s32.totalorder %v4242, 1
        %vm4251 = vcmp.eq.s32.totalorder %v4243, 1
        %vm4252 = vcmp.eq.s32.totalorder %v4244, 1
        %vm4253 = vcmp.eq.s32.totalorder %v4245, 1
        %vm4254 = vcmp.eq.s32.totalorder %v4246, 1
        %v4255 = vsel %vm4247, %v4188, -inf
        %v4256 = vsel %vm4248, %v4189, -inf
        %v4257 = vsel %vm4249, %v4190, -inf
        %v4258 = vsel %vm4250, %v4191, -inf
        %v4259 = vsel %vm4251, %v4192, -inf
        %v4260 = vsel %vm4252, %v4193, -inf
        %v4261 = vsel %vm4253, %v4194, -inf
        %v4262 = vsel %vm4254, %v4195, -inf
        %v4263 = vsel %vm4247, %v4196, -inf
        %v4264 = vsel %vm4248, %v4197, -inf
        %v4265 = vsel %vm4249, %v4198, -inf
        %v4266 = vsel %vm4250, %v4199, -inf
        %v4267 = vsel %vm4251, %v4200, -inf
        %v4268 = vsel %vm4252, %v4201, -inf
        %v4269 = vsel %vm4253, %v4202, -inf
        %v4270 = vsel %vm4254, %v4203, -inf
        %v4271 = vsel %vm4247, %v4204, -inf
        %v4272 = vsel %vm4248, %v4205, -inf
        %v4273 = vsel %vm4249, %v4206, -inf
        %v4274 = vsel %vm4250, %v4207, -inf
        %v4275 = vsel %vm4251, %v4208, -inf
        %v4276 = vsel %vm4252, %v4209, -inf
        %v4277 = vsel %vm4253, %v4210, -inf
        %v4278 = vsel %vm4254, %v4211, -inf
        %v4279 = vsel %vm4247, %v4212, -inf
        %v4280 = vsel %vm4248, %v4213, -inf
        %v4281 = vsel %vm4249, %v4214, -inf
        %v4282 = vsel %vm4250, %v4215, -inf
        %v4283 = vsel %vm4251, %v4216, -inf
        %v4284 = vsel %vm4252, %v4217, -inf
        %v4285 = vsel %vm4253, %v4218, -inf
        %v4286 = vsel %vm4254, %v4219, -inf
        %vm4287 = vcmask 523264
        %v4288 = vsel %vm4287, %v4255, -inf
        %4289 = vmax.xlane.f32.xlu0 %v4288
        %v4290 = vpop.xlane.xlu0 %4289
        %v4291 = vsel %vm4287, %v4256, -inf
        %4292 = vmax.xlane.f32.xlu0 %v4291
        %v4293 = vpop.xlane.xlu0 %4292
        %v4294 = vsel %vm4287, %v4257, -inf
        %4295 = vmax.xlane.f32.xlu0 %v4294
        %v4296 = vpop.xlane.xlu0 %4295
        %v4297 = vsel %vm4287, %v4258, -inf
        %4298 = vmax.xlane.f32.xlu0 %v4297
        %v4299 = vpop.xlane.xlu0 %4298
        %v4300 = vsel %vm4287, %v4259, -inf
        %4301 = vmax.xlane.f32.xlu0 %v4300
        %v4302 = vpop.xlane.xlu0 %4301
        %v4303 = vsel %vm4287, %v4260, -inf
        %4304 = vmax.xlane.f32.xlu0 %v4303
        %v4305 = vpop.xlane.xlu0 %4304
        %v4306 = vsel %vm4287, %v4261, -inf
        %4307 = vmax.xlane.f32.xlu0 %v4306
        %v4308 = vpop.xlane.xlu0 %4307
        %v4309 = vsel %vm4287, %v4262, -inf
        %4310 = vmax.xlane.f32.xlu0 %v4309
        %v4311 = vpop.xlane.xlu0 %4310
        %v4312 = vsel %vm4287, %v4263, -inf
        %4313 = vmax.xlane.f32.xlu0 %v4312
        %v4314 = vpop.xlane.xlu0 %4313
        %v4315 = vsel %vm4287, %v4264, -inf
        %4316 = vmax.xlane.f32.xlu0 %v4315
        %v4317 = vpop.xlane.xlu0 %4316
        %v4318 = vsel %vm4287, %v4265, -inf
        %4319 = vmax.xlane.f32.xlu0 %v4318
        %v4320 = vpop.xlane.xlu0 %4319
        %v4321 = vsel %vm4287, %v4266, -inf
        %4322 = vmax.xlane.f32.xlu0 %v4321
        %v4323 = vpop.xlane.xlu0 %4322
        %v4324 = vsel %vm4287, %v4267, -inf
        %4325 = vmax.xlane.f32.xlu0 %v4324
        %v4326 = vpop.xlane.xlu0 %4325
        %v4327 = vsel %vm4287, %v4268, -inf
        %4328 = vmax.xlane.f32.xlu0 %v4327
        %v4329 = vpop.xlane.xlu0 %4328
        %v4330 = vsel %vm4287, %v4269, -inf
        %4331 = vmax.xlane.f32.xlu0 %v4330
        %v4332 = vpop.xlane.xlu0 %4331
        %v4333 = vsel %vm4287, %v4270, -inf
        %4334 = vmax.xlane.f32.xlu0 %v4333
        %v4335 = vpop.xlane.xlu0 %4334
        %v4336 = vsel %vm4287, %v4271, -inf
        %4337 = vmax.xlane.f32.xlu0 %v4336
        %v4338 = vpop.xlane.xlu0 %4337
        %v4339 = vsel %vm4287, %v4272, -inf
        %4340 = vmax.xlane.f32.xlu0 %v4339
        %v4341 = vpop.xlane.xlu0 %4340
        %v4342 = vsel %vm4287, %v4273, -inf
        %4343 = vmax.xlane.f32.xlu0 %v4342
        %v4344 = vpop.xlane.xlu0 %4343
        %v4345 = vsel %vm4287, %v4274, -inf
        %4346 = vmax.xlane.f32.xlu0 %v4345
        %v4347 = vpop.xlane.xlu0 %4346
        %v4348 = vsel %vm4287, %v4275, -inf
        %4349 = vmax.xlane.f32.xlu0 %v4348
        %v4350 = vpop.xlane.xlu0 %4349
        %v4351 = vsel %vm4287, %v4276, -inf
        %4352 = vmax.xlane.f32.xlu0 %v4351
        %v4353 = vpop.xlane.xlu0 %4352
        %v4354 = vsel %vm4287, %v4277, -inf
        %4355 = vmax.xlane.f32.xlu0 %v4354
        %v4356 = vpop.xlane.xlu0 %4355
        %v4357 = vsel %vm4287, %v4278, -inf
        %4358 = vmax.xlane.f32.xlu0 %v4357
        %v4359 = vpop.xlane.xlu0 %4358
        %v4360 = vsel %vm4287, %v4279, -inf
        %4361 = vmax.xlane.f32.xlu0 %v4360
        %v4362 = vpop.xlane.xlu0 %4361
        %v4363 = vsel %vm4287, %v4280, -inf
        %4364 = vmax.xlane.f32.xlu0 %v4363
        %v4365 = vpop.xlane.xlu0 %4364
        %v4366 = vsel %vm4287, %v4281, -inf
        %4367 = vmax.xlane.f32.xlu0 %v4366
        %v4368 = vpop.xlane.xlu0 %4367
        %v4369 = vsel %vm4287, %v4282, -inf
        %4370 = vmax.xlane.f32.xlu0 %v4369
        %v4371 = vpop.xlane.xlu0 %4370
        %v4372 = vsel %vm4287, %v4283, -inf
        %4373 = vmax.xlane.f32.xlu0 %v4372
        %v4374 = vpop.xlane.xlu0 %4373
        %v4375 = vsel %vm4287, %v4284, -inf
        %4376 = vmax.xlane.f32.xlu0 %v4375
        %v4377 = vpop.xlane.xlu0 %4376
        %v4378 = vsel %vm4287, %v4285, -inf
        %4379 = vmax.xlane.f32.xlu0 %v4378
        %v4380 = vpop.xlane.xlu0 %4379
        %v4381 = vsel %vm4287, %v4286, -inf
        %4382 = vmax.xlane.f32.xlu0 %v4381
        %v4383 = vpop.xlane.xlu0 %4382
        %v4384 = vsub.f32 %v4255, %v4290
        %v4385 = vsub.f32 %v4256, %v4293
        %v4386 = vsub.f32 %v4257, %v4296
        %v4387 = vsub.f32 %v4258, %v4299
        %v4388 = vsub.f32 %v4259, %v4302
        %v4389 = vsub.f32 %v4260, %v4305
        %v4390 = vsub.f32 %v4261, %v4308
        %v4391 = vsub.f32 %v4262, %v4311
        %v4392 = vsub.f32 %v4263, %v4314
        %v4393 = vsub.f32 %v4264, %v4317
        %v4394 = vsub.f32 %v4265, %v4320
        %v4395 = vsub.f32 %v4266, %v4323
        %v4396 = vsub.f32 %v4267, %v4326
        %v4397 = vsub.f32 %v4268, %v4329
        %v4398 = vsub.f32 %v4269, %v4332
        %v4399 = vsub.f32 %v4270, %v4335
        %v4400 = vsub.f32 %v4271, %v4338
        %v4401 = vsub.f32 %v4272, %v4341
        %v4402 = vsub.f32 %v4273, %v4344
        %v4403 = vsub.f32 %v4274, %v4347
        %v4404 = vsub.f32 %v4275, %v4350
        %v4405 = vsub.f32 %v4276, %v4353
        %v4406 = vsub.f32 %v4277, %v4356
        %v4407 = vsub.f32 %v4278, %v4359
        %v4408 = vsub.f32 %v4279, %v4362
        %v4409 = vsub.f32 %v4280, %v4365
        %v4410 = vsub.f32 %v4281, %v4368
        %v4411 = vsub.f32 %v4282, %v4371
        %v4412 = vsub.f32 %v4283, %v4374
        %v4413 = vsub.f32 %v4284, %v4377
        %v4414 = vsub.f32 %v4285, %v4380
        %v4415 = vsub.f32 %v4286, %v4383
        %v4416 = vmul.f32 %v4384, 1.442695
        %v4417 = vpow.pop %v4416
        %v4418 = vmul.f32 %v4385, 1.442695
        %v4419 = vpow.pop %v4418
        %v4420 = vmul.f32 %v4386, 1.442695
        %v4421 = vpow.pop %v4420
        %v4422 = vmul.f32 %v4387, 1.442695
        %v4423 = vpow.pop %v4422
        %v4424 = vmul.f32 %v4388, 1.442695
        %v4425 = vpow.pop %v4424
        %v4426 = vmul.f32 %v4389, 1.442695
        %v4427 = vpow.pop %v4426
        %v4428 = vmul.f32 %v4390, 1.442695
        %v4429 = vpow.pop %v4428
        %v4430 = vmul.f32 %v4391, 1.442695
        %v4431 = vpow.pop %v4430
        %v4432 = vmul.f32 %v4392, 1.442695
        %v4433 = vpow.pop %v4432
        %v4434 = vmul.f32 %v4393, 1.442695
        %v4435 = vpow.pop %v4434
        %v4436 = vmul.f32 %v4394, 1.442695
        %v4437 = vpow.pop %v4436
        %v4438 = vmul.f32 %v4395, 1.442695
        %v4439 = vpow.pop %v4438
        %v4440 = vmul.f32 %v4396, 1.442695
        %v4441 = vpow.pop %v4440
        %v4442 = vmul.f32 %v4397, 1.442695
        %v4443 = vpow.pop %v4442
        %v4444 = vmul.f32 %v4398, 1.442695
        %v4445 = vpow.pop %v4444
        %v4446 = vmul.f32 %v4399, 1.442695
        %v4447 = vpow.pop %v4446
        %v4448 = vmul.f32 %v4400, 1.442695
        %v4449 = vpow.pop %v4448
        %v4450 = vmul.f32 %v4401, 1.442695
        %v4451 = vpow.pop %v4450
        %v4452 = vmul.f32 %v4402, 1.442695
        %v4453 = vpow.pop %v4452
        %v4454 = vmul.f32 %v4403, 1.442695
        %v4455 = vpow.pop %v4454
        %v4456 = vmul.f32 %v4404, 1.442695
        %v4457 = vpow.pop %v4456
        %v4458 = vmul.f32 %v4405, 1.442695
        %v4459 = vpow.pop %v4458
        %v4460 = vmul.f32 %v4406, 1.442695
        %v4461 = vpow.pop %v4460
        %v4462 = vmul.f32 %v4407, 1.442695
        %v4463 = vpow.pop %v4462
        %v4464 = vmul.f32 %v4408, 1.442695
        %v4465 = vpow.pop %v4464
        %v4466 = vmul.f32 %v4409, 1.442695
        %v4467 = vpow.pop %v4466
        %v4468 = vmul.f32 %v4410, 1.442695
        %v4469 = vpow.pop %v4468
        %v4470 = vmul.f32 %v4411, 1.442695
        %v4471 = vpow.pop %v4470
        %v4472 = vmul.f32 %v4412, 1.442695
        %v4473 = vpow.pop %v4472
        %v4474 = vmul.f32 %v4413, 1.442695
        %v4475 = vpow.pop %v4474
        %v4476 = vmul.f32 %v4414, 1.442695
        %v4477 = vpow.pop %v4476
        %v4478 = vmul.f32 %v4415, 1.442695
        %v4479 = vpow.pop %v4478
        %v4480 = vsel %vm4287, %v4417, 0.0
        %4481 = vadd.xlane.f32.xlu0 %v4480
        %v4482 = vpop.xlane.xlu0 %4481
        %v4483 = vsel %vm4287, %v4419, 0.0
        %4484 = vadd.xlane.f32.xlu0 %v4483
        %v4485 = vpop.xlane.xlu0 %4484
        %v4486 = vsel %vm4287, %v4421, 0.0
        %4487 = vadd.xlane.f32.xlu0 %v4486
        %v4488 = vpop.xlane.xlu0 %4487
        %v4489 = vsel %vm4287, %v4423, 0.0
        %4490 = vadd.xlane.f32.xlu0 %v4489
        %v4491 = vpop.xlane.xlu0 %4490
        %v4492 = vsel %vm4287, %v4425, 0.0
        %4493 = vadd.xlane.f32.xlu0 %v4492
        %v4494 = vpop.xlane.xlu0 %4493
        %v4495 = vsel %vm4287, %v4427, 0.0
        %4496 = vadd.xlane.f32.xlu0 %v4495
        %v4497 = vpop.xlane.xlu0 %4496
        %v4498 = vsel %vm4287, %v4429, 0.0
        %4499 = vadd.xlane.f32.xlu0 %v4498
        %v4500 = vpop.xlane.xlu0 %4499
        %v4501 = vsel %vm4287, %v4431, 0.0
        %4502 = vadd.xlane.f32.xlu0 %v4501
        %v4503 = vpop.xlane.xlu0 %4502
        %v4504 = vsel %vm4287, %v4433, 0.0
        %4505 = vadd.xlane.f32.xlu0 %v4504
        %v4506 = vpop.xlane.xlu0 %4505
        %v4507 = vsel %vm4287, %v4435, 0.0
        %4508 = vadd.xlane.f32.xlu0 %v4507
        %v4509 = vpop.xlane.xlu0 %4508
        %v4510 = vsel %vm4287, %v4437, 0.0
        %4511 = vadd.xlane.f32.xlu0 %v4510
        %v4512 = vpop.xlane.xlu0 %4511
        %v4513 = vsel %vm4287, %v4439, 0.0
        %4514 = vadd.xlane.f32.xlu0 %v4513
        %v4515 = vpop.xlane.xlu0 %4514
        %v4516 = vsel %vm4287, %v4441, 0.0
        %4517 = vadd.xlane.f32.xlu0 %v4516
        %v4518 = vpop.xlane.xlu0 %4517
        %v4519 = vsel %vm4287, %v4443, 0.0
        %4520 = vadd.xlane.f32.xlu0 %v4519
        %v4521 = vpop.xlane.xlu0 %4520
        %v4522 = vsel %vm4287, %v4445, 0.0
        %4523 = vadd.xlane.f32.xlu0 %v4522
        %v4524 = vpop.xlane.xlu0 %4523
        %v4525 = vsel %vm4287, %v4447, 0.0
        %4526 = vadd.xlane.f32.xlu0 %v4525
        %v4527 = vpop.xlane.xlu0 %4526
        %v4528 = vsel %vm4287, %v4449, 0.0
        %4529 = vadd.xlane.f32.xlu0 %v4528
        %v4530 = vpop.xlane.xlu0 %4529
        %v4531 = vsel %vm4287, %v4451, 0.0
        %4532 = vadd.xlane.f32.xlu0 %v4531
        %v4533 = vpop.xlane.xlu0 %4532
        %v4534 = vsel %vm4287, %v4453, 0.0
        %4535 = vadd.xlane.f32.xlu0 %v4534
        %v4536 = vpop.xlane.xlu0 %4535
        %v4537 = vsel %vm4287, %v4455, 0.0
        %4538 = vadd.xlane.f32.xlu0 %v4537
        %v4539 = vpop.xlane.xlu0 %4538
        %v4540 = vsel %vm4287, %v4457, 0.0
        %4541 = vadd.xlane.f32.xlu0 %v4540
        %v4542 = vpop.xlane.xlu0 %4541
        %v4543 = vsel %vm4287, %v4459, 0.0
        %4544 = vadd.xlane.f32.xlu0 %v4543
        %v4545 = vpop.xlane.xlu0 %4544
        %v4546 = vsel %vm4287, %v4461, 0.0
        %4547 = vadd.xlane.f32.xlu0 %v4546
        %v4548 = vpop.xlane.xlu0 %4547
        %v4549 = vsel %vm4287, %v4463, 0.0
        %4550 = vadd.xlane.f32.xlu0 %v4549
        %v4551 = vpop.xlane.xlu0 %4550
        %v4552 = vsel %vm4287, %v4465, 0.0
        %4553 = vadd.xlane.f32.xlu0 %v4552
        %v4554 = vpop.xlane.xlu0 %4553
        %v4555 = vsel %vm4287, %v4467, 0.0
        %4556 = vadd.xlane.f32.xlu0 %v4555
        %v4557 = vpop.xlane.xlu0 %4556
        %v4558 = vsel %vm4287, %v4469, 0.0
        %4559 = vadd.xlane.f32.xlu0 %v4558
        %v4560 = vpop.xlane.xlu0 %4559
        %v4561 = vsel %vm4287, %v4471, 0.0
        %4562 = vadd.xlane.f32.xlu0 %v4561
        %v4563 = vpop.xlane.xlu0 %4562
        %v4564 = vsel %vm4287, %v4473, 0.0
        %4565 = vadd.xlane.f32.xlu0 %v4564
        %v4566 = vpop.xlane.xlu0 %4565
        %v4567 = vsel %vm4287, %v4475, 0.0
        %4568 = vadd.xlane.f32.xlu0 %v4567
        %v4569 = vpop.xlane.xlu0 %4568
        %v4570 = vsel %vm4287, %v4477, 0.0
        %4571 = vadd.xlane.f32.xlu0 %v4570
        %v4572 = vpop.xlane.xlu0 %4571
        %v4573 = vsel %vm4287, %v4479, 0.0
        %4574 = vadd.xlane.f32.xlu0 %v4573
        %v4575 = vpop.xlane.xlu0 %4574
        %v4576 = vrcp.pop %v4482
        %v4577 = vrcp.pop %v4485
        %v4578 = vrcp.pop %v4488
        %v4579 = vrcp.pop %v4491
        %v4580 = vrcp.pop %v4494
        %v4581 = vrcp.pop %v4497
        %v4582 = vrcp.pop %v4500
        %v4583 = vrcp.pop %v4503
        %v4584 = vrcp.pop %v4506
        %v4585 = vrcp.pop %v4509
        %v4586 = vrcp.pop %v4512
        %v4587 = vrcp.pop %v4515
        %v4588 = vrcp.pop %v4518
        %v4589 = vrcp.pop %v4521
        %v4590 = vrcp.pop %v4524
        %v4591 = vrcp.pop %v4527
        %v4592 = vrcp.pop %v4530
        %v4593 = vrcp.pop %v4533
        %v4594 = vrcp.pop %v4536
        %v4595 = vrcp.pop %v4539
        %v4596 = vrcp.pop %v4542
        %v4597 = vrcp.pop %v4545
        %v4598 = vrcp.pop %v4548
        %v4599 = vrcp.pop %v4551
        %v4600 = vrcp.pop %v4554
        %v4601 = vrcp.pop %v4557
        %v4602 = vrcp.pop %v4560
        %v4603 = vrcp.pop %v4563
        %v4604 = vrcp.pop %v4566
        %v4605 = vrcp.pop %v4569
        %v4606 = vrcp.pop %v4572
        %v4607 = vrcp.pop %v4575
        %v4608 = vmul.f32 %v4417, %v4576
        %v4609 = vmul.f32 %v4419, %v4577
        %v4610 = vmul.f32 %v4421, %v4578
        %v4611 = vmul.f32 %v4423, %v4579
        %v4612 = vmul.f32 %v4425, %v4580
        %v4613 = vmul.f32 %v4427, %v4581
        %v4614 = vmul.f32 %v4429, %v4582
        %v4615 = vmul.f32 %v4431, %v4583
        %v4616 = vmul.f32 %v4433, %v4584
        %v4617 = vmul.f32 %v4435, %v4585
        %v4618 = vmul.f32 %v4437, %v4586
        %v4619 = vmul.f32 %v4439, %v4587
        %v4620 = vmul.f32 %v4441, %v4588
        %v4621 = vmul.f32 %v4443, %v4589
        %v4622 = vmul.f32 %v4445, %v4590
        %v4623 = vmul.f32 %v4447, %v4591
        %v4624 = vmul.f32 %v4449, %v4592
        %v4625 = vmul.f32 %v4451, %v4593
        %v4626 = vmul.f32 %v4453, %v4594
        %v4627 = vmul.f32 %v4455, %v4595
        %v4628 = vmul.f32 %v4457, %v4596
        %v4629 = vmul.f32 %v4459, %v4597
        %v4630 = vmul.f32 %v4461, %v4598
        %v4631 = vmul.f32 %v4463, %v4599
        %v4632 = vmul.f32 %v4465, %v4600
        %v4633 = vmul.f32 %v4467, %v4601
        %v4634 = vmul.f32 %v4469, %v4602
        %v4635 = vmul.f32 %v4471, %v4603
        %v4636 = vmul.f32 %v4473, %v4604
        %v4637 = vmul.f32 %v4475, %v4605
        %v4638 = vmul.f32 %v4477, %v4606
        %v4639 = vmul.f32 %v4479, %v4607
        %v4640 = vpack.c.bf16 %v4608, %v4608
        %v4641 = vpack.c.bf16 %v4609, %v4609
        %v4642 = vpack.c.bf16 %v4610, %v4610
        %v4643 = vpack.c.bf16 %v4611, %v4611
        %v4644 = vpack.c.bf16 %v4612, %v4612
        %v4645 = vpack.c.bf16 %v4613, %v4613
        %v4646 = vpack.c.bf16 %v4614, %v4614
        %v4647 = vpack.c.bf16 %v4615, %v4615
        %v4648 = vpack.c.bf16 %v4616, %v4616
        %v4649 = vpack.c.bf16 %v4617, %v4617
        %v4650 = vpack.c.bf16 %v4618, %v4618
        %v4651 = vpack.c.bf16 %v4619, %v4619
        %v4652 = vpack.c.bf16 %v4620, %v4620
        %v4653 = vpack.c.bf16 %v4621, %v4621
        %v4654 = vpack.c.bf16 %v4622, %v4622
        %v4655 = vpack.c.bf16 %v4623, %v4623
        %v4656 = vpack.c.bf16 %v4624, %v4624
        %v4657 = vpack.c.bf16 %v4625, %v4625
        %v4658 = vpack.c.bf16 %v4626, %v4626
        %v4659 = vpack.c.bf16 %v4627, %v4627
        %v4660 = vpack.c.bf16 %v4628, %v4628
        %v4661 = vpack.c.bf16 %v4629, %v4629
        %v4662 = vpack.c.bf16 %v4630, %v4630
        %v4663 = vpack.c.bf16 %v4631, %v4631
        %v4664 = vpack.c.bf16 %v4632, %v4632
        %v4665 = vpack.c.bf16 %v4633, %v4633
        %v4666 = vpack.c.bf16 %v4634, %v4634
        %v4667 = vpack.c.bf16 %v4635, %v4635
        %v4668 = vpack.c.bf16 %v4636, %v4636
        %v4669 = vpack.c.bf16 %v4637, %v4637
        %v4670 = vpack.c.bf16 %v4638, %v4638
        %v4671 = vpack.c.bf16 %v4639, %v4639
        %v4680 = vunpack.c.l.b16 %v4640
        %v4681 = vunpack.c.l.b16 %v4641
        %v4682 = vunpack.c.l.b16 %v4642
        %v4683 = vunpack.c.l.b16 %v4643
        %v4684 = vunpack.c.l.b16 %v4644
        %v4685 = vunpack.c.l.b16 %v4645
        %v4686 = vunpack.c.l.b16 %v4646
        %v4687 = vunpack.c.l.b16 %v4647
        %v4688 = vpack.c.b16 %v4681, %v4680
        %v4689 = vpack.c.b16 %v4683, %v4682
        %v4690 = vpack.c.b16 %v4685, %v4684
        %v4691 = vpack.c.b16 %v4687, %v4686
        %v4692 = vunpack.c.l.b16 %v3785
        %v4693 = vunpack.c.l.b16 %v3797
        %v4694 = vunpack.c.l.b16 %v3809
        %v4695 = vunpack.c.l.b16 %v3821
        %v4696 = vunpack.c.l.b16 %v3833
        %v4697 = vunpack.c.l.b16 %v3845
        %v4698 = vunpack.c.l.b16 %v3857
        %v4699 = vunpack.c.l.b16 %v3869
        %v4700 = vpack.c.b16 %v4693, %v4692
        %v4701 = vpack.c.b16 %v4695, %v4694
        %v4702 = vpack.c.b16 %v4697, %v4696
        %v4703 = vpack.c.b16 %v4699, %v4698
        %v4709 = vsel %vm4287, %v4688, 0
        %v4712 = vsel %vm4287, %v4689, 0
        %v4715 = vsel %vm4287, %v4690, 0
        %v4718 = vsel %vm4287, %v4691, 0
        %4720 = vmatpush.bf16.msra.mxu0 0
        %4721 = vmatpush.bf16.msra.mxu0 0
        %4722 = vmatpush.bf16.msra.mxu0 0
        %4723 = vmatpush.bf16.msra.mxu0 0
        %4724 = vmatpush.bf16.msra.mxu0 %v4703
        %4725 = vmatpush.bf16.msra.mxu0 %v4702
        %4726 = vmatpush.bf16.msra.mxu0 %v4701
        %4727 = vmatpush.bf16.msra.mxu0 %v4700
        %4728 = vmatmul.bf16.gmra.mxu0 %v4709
        %v4729 = vpop.f32.mrf.mxu0
        %v4730 = vadd.f32 0.0, %v4729
        %v4731 = vpop.f32.mrf.mxu0
        %v4732 = vadd.f32 0.0, %v4731
        %4733 = vmatmul.bf16.gmra.mxu0 %v4712
        %v4734 = vpop.f32.mrf.mxu0
        %v4735 = vadd.f32 0.0, %v4734
        %v4736 = vpop.f32.mrf.mxu0
        %v4737 = vadd.f32 0.0, %v4736
        %4738 = vmatmul.bf16.gmra.mxu0 %v4715
        %v4739 = vpop.f32.mrf.mxu0
        %v4740 = vadd.f32 0.0, %v4739
        %v4741 = vpop.f32.mrf.mxu0
        %v4742 = vadd.f32 0.0, %v4741
        %4743 = vmatmul.bf16.gmra.mxu0 %v4718
        %v4744 = vpop.f32.mrf.mxu0
        %v4745 = vadd.f32 0.0, %v4744
        %v4746 = vpop.f32.mrf.mxu0
        %v4747 = vadd.f32 0.0, %v4746
        %4748 = vdwg.mxu0
        %v4757 = vunpack.c.l.b16 %v4648
        %v4758 = vunpack.c.l.b16 %v4649
        %v4759 = vunpack.c.l.b16 %v4650
        %v4760 = vunpack.c.l.b16 %v4651
        %v4761 = vunpack.c.l.b16 %v4652
        %v4762 = vunpack.c.l.b16 %v4653
        %v4763 = vunpack.c.l.b16 %v4654
        %v4764 = vunpack.c.l.b16 %v4655
        %v4765 = vpack.c.b16 %v4758, %v4757
        %v4766 = vpack.c.b16 %v4760, %v4759
        %v4767 = vpack.c.b16 %v4762, %v4761
        %v4768 = vpack.c.b16 %v4764, %v4763
        %v4769 = vunpack.c.l.b16 %v3788
        %v4770 = vunpack.c.l.b16 %v3800
        %v4771 = vunpack.c.l.b16 %v3812
        %v4772 = vunpack.c.l.b16 %v3824
        %v4773 = vunpack.c.l.b16 %v3836
        %v4774 = vunpack.c.l.b16 %v3848
        %v4775 = vunpack.c.l.b16 %v3860
        %v4776 = vunpack.c.l.b16 %v3872
        %v4777 = vpack.c.b16 %v4770, %v4769
        %v4778 = vpack.c.b16 %v4772, %v4771
        %v4779 = vpack.c.b16 %v4774, %v4773
        %v4780 = vpack.c.b16 %v4776, %v4775
        %v4786 = vsel %vm4287, %v4765, 0
        %v4789 = vsel %vm4287, %v4766, 0
        %v4792 = vsel %vm4287, %v4767, 0
        %v4795 = vsel %vm4287, %v4768, 0
        %4797 = vmatpush.bf16.msra.mxu0 0
        %4798 = vmatpush.bf16.msra.mxu0 0
        %4799 = vmatpush.bf16.msra.mxu0 0
        %4800 = vmatpush.bf16.msra.mxu0 0
        %4801 = vmatpush.bf16.msra.mxu0 %v4780
        %4802 = vmatpush.bf16.msra.mxu0 %v4779
        %4803 = vmatpush.bf16.msra.mxu0 %v4778
        %4804 = vmatpush.bf16.msra.mxu0 %v4777
        %4805 = vmatmul.bf16.gmra.mxu0 %v4786
        %v4806 = vpop.f32.mrf.mxu0
        %v4807 = vadd.f32 0.0, %v4806
        %v4808 = vpop.f32.mrf.mxu0
        %v4809 = vadd.f32 0.0, %v4808
        %4810 = vmatmul.bf16.gmra.mxu0 %v4789
        %v4811 = vpop.f32.mrf.mxu0
        %v4812 = vadd.f32 0.0, %v4811
        %v4813 = vpop.f32.mrf.mxu0
        %v4814 = vadd.f32 0.0, %v4813
        %4815 = vmatmul.bf16.gmra.mxu0 %v4792
        %v4816 = vpop.f32.mrf.mxu0
        %v4817 = vadd.f32 0.0, %v4816
        %v4818 = vpop.f32.mrf.mxu0
        %v4819 = vadd.f32 0.0, %v4818
        %4820 = vmatmul.bf16.gmra.mxu0 %v4795
        %v4821 = vpop.f32.mrf.mxu0
        %v4822 = vadd.f32 0.0, %v4821
        %v4823 = vpop.f32.mrf.mxu0
        %v4824 = vadd.f32 0.0, %v4823
        %4825 = vdwg.mxu0
        %v4834 = vunpack.c.l.b16 %v4656
        %v4835 = vunpack.c.l.b16 %v4657
        %v4836 = vunpack.c.l.b16 %v4658
        %v4837 = vunpack.c.l.b16 %v4659
        %v4838 = vunpack.c.l.b16 %v4660
        %v4839 = vunpack.c.l.b16 %v4661
        %v4840 = vunpack.c.l.b16 %v4662
        %v4841 = vunpack.c.l.b16 %v4663
        %v4842 = vpack.c.b16 %v4835, %v4834
        %v4843 = vpack.c.b16 %v4837, %v4836
        %v4844 = vpack.c.b16 %v4839, %v4838
        %v4845 = vpack.c.b16 %v4841, %v4840
        %v4846 = vunpack.c.l.b16 %v3791
        %v4847 = vunpack.c.l.b16 %v3803
        %v4848 = vunpack.c.l.b16 %v3815
        %v4849 = vunpack.c.l.b16 %v3827
        %v4850 = vunpack.c.l.b16 %v3839
        %v4851 = vunpack.c.l.b16 %v3851
        %v4852 = vunpack.c.l.b16 %v3863
        %v4853 = vunpack.c.l.b16 %v3875
        %v4854 = vpack.c.b16 %v4847, %v4846
        %v4855 = vpack.c.b16 %v4849, %v4848
        %v4856 = vpack.c.b16 %v4851, %v4850
        %v4857 = vpack.c.b16 %v4853, %v4852
        %v4863 = vsel %vm4287, %v4842, 0
        %v4866 = vsel %vm4287, %v4843, 0
        %v4869 = vsel %vm4287, %v4844, 0
        %v4872 = vsel %vm4287, %v4845, 0
        %4874 = vmatpush.bf16.msra.mxu0 0
        %4875 = vmatpush.bf16.msra.mxu0 0
        %4876 = vmatpush.bf16.msra.mxu0 0
        %4877 = vmatpush.bf16.msra.mxu0 0
        %4878 = vmatpush.bf16.msra.mxu0 %v4857
        %4879 = vmatpush.bf16.msra.mxu0 %v4856
        %4880 = vmatpush.bf16.msra.mxu0 %v4855
        %4881 = vmatpush.bf16.msra.mxu0 %v4854
        %4882 = vmatmul.bf16.gmra.mxu0 %v4863
        %v4883 = vpop.f32.mrf.mxu0
        %v4884 = vadd.f32 0.0, %v4883
        %v4885 = vpop.f32.mrf.mxu0
        %v4886 = vadd.f32 0.0, %v4885
        %4887 = vmatmul.bf16.gmra.mxu0 %v4866
        %v4888 = vpop.f32.mrf.mxu0
        %v4889 = vadd.f32 0.0, %v4888
        %v4890 = vpop.f32.mrf.mxu0
        %v4891 = vadd.f32 0.0, %v4890
        %4892 = vmatmul.bf16.gmra.mxu0 %v4869
        %v4893 = vpop.f32.mrf.mxu0
        %v4894 = vadd.f32 0.0, %v4893
        %v4895 = vpop.f32.mrf.mxu0
        %v4896 = vadd.f32 0.0, %v4895
        %4897 = vmatmul.bf16.gmra.mxu0 %v4872
        %v4898 = vpop.f32.mrf.mxu0
        %v4899 = vadd.f32 0.0, %v4898
        %v4900 = vpop.f32.mrf.mxu0
        %v4901 = vadd.f32 0.0, %v4900
        %4902 = vdwg.mxu0
        %v4911 = vunpack.c.l.b16 %v4664
        %v4912 = vunpack.c.l.b16 %v4665
        %v4913 = vunpack.c.l.b16 %v4666
        %v4914 = vunpack.c.l.b16 %v4667
        %v4915 = vunpack.c.l.b16 %v4668
        %v4916 = vunpack.c.l.b16 %v4669
        %v4917 = vunpack.c.l.b16 %v4670
        %v4918 = vunpack.c.l.b16 %v4671
        %v4919 = vpack.c.b16 %v4912, %v4911
        %v4920 = vpack.c.b16 %v4914, %v4913
        %v4921 = vpack.c.b16 %v4916, %v4915
        %v4922 = vpack.c.b16 %v4918, %v4917
        %v4923 = vunpack.c.l.b16 %v3794
        %v4924 = vunpack.c.l.b16 %v3806
        %v4925 = vunpack.c.l.b16 %v3818
        %v4926 = vunpack.c.l.b16 %v3830
        %v4927 = vunpack.c.l.b16 %v3842
        %v4928 = vunpack.c.l.b16 %v3854
        %v4929 = vunpack.c.l.b16 %v3866
        %v4930 = vunpack.c.l.b16 %v3878
        %v4931 = vpack.c.b16 %v4924, %v4923
        %v4932 = vpack.c.b16 %v4926, %v4925
        %v4933 = vpack.c.b16 %v4928, %v4927
        %v4934 = vpack.c.b16 %v4930, %v4929
        %v4940 = vsel %vm4287, %v4919, 0
        %v4943 = vsel %vm4287, %v4920, 0
        %v4946 = vsel %vm4287, %v4921, 0
        %v4949 = vsel %vm4287, %v4922, 0
        %4951 = vmatpush.bf16.msra.mxu0 0
        %4952 = vmatpush.bf16.msra.mxu0 0
        %4953 = vmatpush.bf16.msra.mxu0 0
        %4954 = vmatpush.bf16.msra.mxu0 0
        %4955 = vmatpush.bf16.msra.mxu0 %v4934
        %4956 = vmatpush.bf16.msra.mxu0 %v4933
        %4957 = vmatpush.bf16.msra.mxu0 %v4932
        %4958 = vmatpush.bf16.msra.mxu0 %v4931
        %4959 = vmatmul.bf16.gmra.mxu0 %v4940
        %v4960 = vpop.f32.mrf.mxu0
        %v4961 = vadd.f32 0.0, %v4960
        %v4962 = vpop.f32.mrf.mxu0
        %v4963 = vadd.f32 0.0, %v4962
        %4964 = vmatmul.bf16.gmra.mxu0 %v4943
        %v4965 = vpop.f32.mrf.mxu0
        %v4966 = vadd.f32 0.0, %v4965
        %v4967 = vpop.f32.mrf.mxu0
        %v4968 = vadd.f32 0.0, %v4967
        %4969 = vmatmul.bf16.gmra.mxu0 %v4946
        %v4970 = vpop.f32.mrf.mxu0
        %v4971 = vadd.f32 0.0, %v4970
        %v4972 = vpop.f32.mrf.mxu0
        %v4973 = vadd.f32 0.0, %v4972
        %4974 = vmatmul.bf16.gmra.mxu0 %v4949
        %v4975 = vpop.f32.mrf.mxu0
        %v4976 = vadd.f32 0.0, %v4975
        %v4977 = vpop.f32.mrf.mxu0
        %v4978 = vadd.f32 0.0, %v4977
        %4979 = vdwg.mxu0
        %v4980 = vpack.c.bf16 %v4730, %v4730
        %v4981 = vpack.c.bf16 %v4732, %v4732
        %v4982 = vpack.c.bf16 %v4735, %v4735
        %v4983 = vpack.c.bf16 %v4737, %v4737
        %v4984 = vpack.c.bf16 %v4740, %v4740
        %v4985 = vpack.c.bf16 %v4742, %v4742
        %v4986 = vpack.c.bf16 %v4745, %v4745
        %v4987 = vpack.c.bf16 %v4747, %v4747
        %v4988 = vpack.c.bf16 %v4807, %v4807
        %v4989 = vpack.c.bf16 %v4809, %v4809
        %v4990 = vpack.c.bf16 %v4812, %v4812
        %v4991 = vpack.c.bf16 %v4814, %v4814
        %v4992 = vpack.c.bf16 %v4817, %v4817
        %v4993 = vpack.c.bf16 %v4819, %v4819
        %v4994 = vpack.c.bf16 %v4822, %v4822
        %v4995 = vpack.c.bf16 %v4824, %v4824
        %v4996 = vpack.c.bf16 %v4884, %v4884
        %v4997 = vpack.c.bf16 %v4886, %v4886
        %v4998 = vpack.c.bf16 %v4889, %v4889
        %v4999 = vpack.c.bf16 %v4891, %v4891
        %v5000 = vpack.c.bf16 %v4894, %v4894
        %v5001 = vpack.c.bf16 %v4896, %v4896
        %v5002 = vpack.c.bf16 %v4899, %v4899
        %v5003 = vpack.c.bf16 %v4901, %v4901
        %v5004 = vpack.c.bf16 %v4961, %v4961
        %v5005 = vpack.c.bf16 %v4963, %v4963
        %v5006 = vpack.c.bf16 %v4966, %v4966
        %v5007 = vpack.c.bf16 %v4968, %v4968
        %v5008 = vpack.c.bf16 %v4971, %v4971
        %v5009 = vpack.c.bf16 %v4973, %v4973
        %v5010 = vpack.c.bf16 %v4976, %v4976
        %v5011 = vpack.c.bf16 %v4978, %v4978
        %v5014 = vpack.i.b16 %v4988, %v4980
        %v5015 = vshrl.u32 %v4980, 16
        %v5016 = vshrl.u32 %v4988, 16
        %v5017 = vpack.i.b16 %v5016, %v5015
        %v5020 = vpack.i.b16 %v5004, %v4996
        %v5021 = vshrl.u32 %v4996, 16
        %v5022 = vshrl.u32 %v5004, 16
        %v5023 = vpack.i.b16 %v5022, %v5021
        %v5026 = vpack.i.b16 %v4989, %v4981
        %v5027 = vshrl.u32 %v4981, 16
        %v5028 = vshrl.u32 %v4989, 16
        %v5029 = vpack.i.b16 %v5028, %v5027
        %v5032 = vpack.i.b16 %v5005, %v4997
        %v5033 = vshrl.u32 %v4997, 16
        %v5034 = vshrl.u32 %v5005, 16
        %v5035 = vpack.i.b16 %v5034, %v5033
        %v5038 = vpack.i.b16 %v4990, %v4982
        %v5039 = vshrl.u32 %v4982, 16
        %v5040 = vshrl.u32 %v4990, 16
        %v5041 = vpack.i.b16 %v5040, %v5039
        %v5044 = vpack.i.b16 %v5006, %v4998
        %v5045 = vshrl.u32 %v4998, 16
        %v5046 = vshrl.u32 %v5006, 16
        %v5047 = vpack.i.b16 %v5046, %v5045
        %v5050 = vpack.i.b16 %v4991, %v4983
        %v5051 = vshrl.u32 %v4983, 16
        %v5052 = vshrl.u32 %v4991, 16
        %v5053 = vpack.i.b16 %v5052, %v5051
        %v5056 = vpack.i.b16 %v5007, %v4999
        %v5057 = vshrl.u32 %v4999, 16
        %v5058 = vshrl.u32 %v5007, 16
        %v5059 = vpack.i.b16 %v5058, %v5057
        %v5062 = vpack.i.b16 %v4992, %v4984
        %v5063 = vshrl.u32 %v4984, 16
        %v5064 = vshrl.u32 %v4992, 16
        %v5065 = vpack.i.b16 %v5064, %v5063
        %v5068 = vpack.i.b16 %v5008, %v5000
        %v5069 = vshrl.u32 %v5000, 16
        %v5070 = vshrl.u32 %v5008, 16
        %v5071 = vpack.i.b16 %v5070, %v5069
        %v5074 = vpack.i.b16 %v4993, %v4985
        %v5075 = vshrl.u32 %v4985, 16
        %v5076 = vshrl.u32 %v4993, 16
        %v5077 = vpack.i.b16 %v5076, %v5075
        %v5080 = vpack.i.b16 %v5009, %v5001
        %v5081 = vshrl.u32 %v5001, 16
        %v5082 = vshrl.u32 %v5009, 16
        %v5083 = vpack.i.b16 %v5082, %v5081
        %v5086 = vpack.i.b16 %v4994, %v4986
        %v5087 = vshrl.u32 %v4986, 16
        %v5088 = vshrl.u32 %v4994, 16
        %v5089 = vpack.i.b16 %v5088, %v5087
        %v5092 = vpack.i.b16 %v5010, %v5002
        %v5093 = vshrl.u32 %v5002, 16
        %v5094 = vshrl.u32 %v5010, 16
        %v5095 = vpack.i.b16 %v5094, %v5093
        %v5098 = vpack.i.b16 %v4995, %v4987
        %v5099 = vshrl.u32 %v4987, 16
        %v5100 = vshrl.u32 %v4995, 16
        %v5101 = vpack.i.b16 %v5100, %v5099
        %v5104 = vpack.i.b16 %v5011, %v5003
        %v5105 = vshrl.u32 %v5003, 16
        %v5106 = vshrl.u32 %v5011, 16
        %v5107 = vpack.i.b16 %v5106, %v5105
        %v5110 = vunpack.c.l.s4 1983009808
        %v5111 = vunpack.c.0.s8 %v5110
        %v5112 = vperm.slane %v5014, %v5111
        %v5115 = vunpack.c.l.s4 1983009808
        %v5116 = vunpack.c.0.s8 %v5115
        %v5117 = vperm.slane %v5020, %v5116
        %v5118 = vrot.slane %v5117, 4
        %v5119 = vsel %vm1161, %v5118, %v5112
        %v5120 = vrot.slane %v5112, 4
        %v5121 = vsel %vm1161, %v5117, %v5120
        %v5123 = vunpack.c.l.s4 1934713408
        %v5124 = vunpack.c.0.s8 %v5123
        %v5125 = vperm.slane %v5119, %v5124
        %v5127 = vunpack.c.l.s4 1934713408
        %v5128 = vunpack.c.0.s8 %v5127
        %v5129 = vperm.slane %v5121, %v5128
        %v5130 = vrot.slane %v5125, 4
        %v5131 = vsel %vm1161, 0, %v5130
        %v5132 = vrot.slane %v5129, 4
        %v5133 = vsel %vm1161, 0, %v5132
        %v5136 = vunpack.c.l.s4 1983009808
        %v5137 = vunpack.c.0.s8 %v5136
        %v5138 = vperm.slane %v5017, %v5137
        %v5141 = vunpack.c.l.s4 1983009808
        %v5142 = vunpack.c.0.s8 %v5141
        %v5143 = vperm.slane %v5023, %v5142
        %v5144 = vrot.slane %v5143, 4
        %v5145 = vsel %vm1161, %v5144, %v5138
        %v5146 = vrot.slane %v5138, 4
        %v5147 = vsel %vm1161, %v5143, %v5146
        %v5149 = vunpack.c.l.s4 1934713408
        %v5150 = vunpack.c.0.s8 %v5149
        %v5151 = vperm.slane %v5145, %v5150
        %v5153 = vunpack.c.l.s4 1934713408
        %v5154 = vunpack.c.0.s8 %v5153
        %v5155 = vperm.slane %v5147, %v5154
        %v5156 = vrot.slane %v5151, 4
        %v5157 = vsel %vm1161, 0, %v5156
        %v5158 = vrot.slane %v5155, 4
        %v5159 = vsel %vm1161, 0, %v5158
        %v5162 = vunpack.c.l.s4 1983009808
        %v5163 = vunpack.c.0.s8 %v5162
        %v5164 = vperm.slane %v5026, %v5163
        %v5167 = vunpack.c.l.s4 1983009808
        %v5168 = vunpack.c.0.s8 %v5167
        %v5169 = vperm.slane %v5032, %v5168
        %v5170 = vrot.slane %v5169, 4
        %v5171 = vsel %vm1161, %v5170, %v5164
        %v5172 = vrot.slane %v5164, 4
        %v5173 = vsel %vm1161, %v5169, %v5172
        %v5175 = vunpack.c.l.s4 1934713408
        %v5176 = vunpack.c.0.s8 %v5175
        %v5177 = vperm.slane %v5171, %v5176
        %v5179 = vunpack.c.l.s4 1934713408
        %v5180 = vunpack.c.0.s8 %v5179
        %v5181 = vperm.slane %v5173, %v5180
        %v5182 = vrot.slane %v5177, 4
        %v5183 = vsel %vm1161, 0, %v5182
        %v5184 = vrot.slane %v5181, 4
        %v5185 = vsel %vm1161, 0, %v5184
        %v5188 = vunpack.c.l.s4 1983009808
        %v5189 = vunpack.c.0.s8 %v5188
        %v5190 = vperm.slane %v5029, %v5189
        %v5193 = vunpack.c.l.s4 1983009808
        %v5194 = vunpack.c.0.s8 %v5193
        %v5195 = vperm.slane %v5035, %v5194
        %v5196 = vrot.slane %v5195, 4
        %v5197 = vsel %vm1161, %v5196, %v5190
        %v5198 = vrot.slane %v5190, 4
        %v5199 = vsel %vm1161, %v5195, %v5198
        %v5201 = vunpack.c.l.s4 1934713408
        %v5202 = vunpack.c.0.s8 %v5201
        %v5203 = vperm.slane %v5197, %v5202
        %v5205 = vunpack.c.l.s4 1934713408
        %v5206 = vunpack.c.0.s8 %v5205
        %v5207 = vperm.slane %v5199, %v5206
        %v5208 = vrot.slane %v5203, 4
        %v5209 = vsel %vm1161, 0, %v5208
        %v5210 = vrot.slane %v5207, 4
        %v5211 = vsel %vm1161, 0, %v5210
        %v5214 = vunpack.c.l.s4 1983009808
        %v5215 = vunpack.c.0.s8 %v5214
        %v5216 = vperm.slane %v5038, %v5215
        %v5219 = vunpack.c.l.s4 1983009808
        %v5220 = vunpack.c.0.s8 %v5219
        %v5221 = vperm.slane %v5044, %v5220
        %v5222 = vrot.slane %v5221, 4
        %v5223 = vsel %vm1161, %v5222, %v5216
        %v5224 = vrot.slane %v5216, 4
        %v5225 = vsel %vm1161, %v5221, %v5224
        %v5227 = vunpack.c.l.s4 1934713408
        %v5228 = vunpack.c.0.s8 %v5227
        %v5229 = vperm.slane %v5223, %v5228
        %v5231 = vunpack.c.l.s4 1934713408
        %v5232 = vunpack.c.0.s8 %v5231
        %v5233 = vperm.slane %v5225, %v5232
        %v5234 = vrot.slane %v5229, 4
        %v5235 = vsel %vm1161, 0, %v5234
        %v5236 = vrot.slane %v5233, 4
        %v5237 = vsel %vm1161, 0, %v5236
        %v5240 = vunpack.c.l.s4 1983009808
        %v5241 = vunpack.c.0.s8 %v5240
        %v5242 = vperm.slane %v5041, %v5241
        %v5245 = vunpack.c.l.s4 1983009808
        %v5246 = vunpack.c.0.s8 %v5245
        %v5247 = vperm.slane %v5047, %v5246
        %v5248 = vrot.slane %v5247, 4
        %v5249 = vsel %vm1161, %v5248, %v5242
        %v5250 = vrot.slane %v5242, 4
        %v5251 = vsel %vm1161, %v5247, %v5250
        %v5253 = vunpack.c.l.s4 1934713408
        %v5254 = vunpack.c.0.s8 %v5253
        %v5255 = vperm.slane %v5249, %v5254
        %v5257 = vunpack.c.l.s4 1934713408
        %v5258 = vunpack.c.0.s8 %v5257
        %v5259 = vperm.slane %v5251, %v5258
        %v5260 = vrot.slane %v5255, 4
        %v5261 = vsel %vm1161, 0, %v5260
        %v5262 = vrot.slane %v5259, 4
        %v5263 = vsel %vm1161, 0, %v5262
        %v5266 = vunpack.c.l.s4 1983009808
        %v5267 = vunpack.c.0.s8 %v5266
        %v5268 = vperm.slane %v5050, %v5267
        %v5271 = vunpack.c.l.s4 1983009808
        %v5272 = vunpack.c.0.s8 %v5271
        %v5273 = vperm.slane %v5056, %v5272
        %v5274 = vrot.slane %v5273, 4
        %v5275 = vsel %vm1161, %v5274, %v5268
        %v5276 = vrot.slane %v5268, 4
        %v5277 = vsel %vm1161, %v5273, %v5276
        %v5279 = vunpack.c.l.s4 1934713408
        %v5280 = vunpack.c.0.s8 %v5279
        %v5281 = vperm.slane %v5275, %v5280
        %v5283 = vunpack.c.l.s4 1934713408
        %v5284 = vunpack.c.0.s8 %v5283
        %v5285 = vperm.slane %v5277, %v5284
        %v5286 = vrot.slane %v5281, 4
        %v5287 = vsel %vm1161, 0, %v5286
        %v5288 = vrot.slane %v5285, 4
        %v5289 = vsel %vm1161, 0, %v5288
        %v5292 = vunpack.c.l.s4 1983009808
        %v5293 = vunpack.c.0.s8 %v5292
        %v5294 = vperm.slane %v5053, %v5293
        %v5297 = vunpack.c.l.s4 1983009808
        %v5298 = vunpack.c.0.s8 %v5297
        %v5299 = vperm.slane %v5059, %v5298
        %v5300 = vrot.slane %v5299, 4
        %v5301 = vsel %vm1161, %v5300, %v5294
        %v5302 = vrot.slane %v5294, 4
        %v5303 = vsel %vm1161, %v5299, %v5302
        %v5305 = vunpack.c.l.s4 1934713408
        %v5306 = vunpack.c.0.s8 %v5305
        %v5307 = vperm.slane %v5301, %v5306
        %v5309 = vunpack.c.l.s4 1934713408
        %v5310 = vunpack.c.0.s8 %v5309
        %v5311 = vperm.slane %v5303, %v5310
        %v5312 = vrot.slane %v5307, 4
        %v5313 = vsel %vm1161, 0, %v5312
        %v5314 = vrot.slane %v5311, 4
        %v5315 = vsel %vm1161, 0, %v5314
        %v5318 = vunpack.c.l.s4 1983009808
        %v5319 = vunpack.c.0.s8 %v5318
        %v5320 = vperm.slane %v5062, %v5319
        %v5323 = vunpack.c.l.s4 1983009808
        %v5324 = vunpack.c.0.s8 %v5323
        %v5325 = vperm.slane %v5068, %v5324
        %v5326 = vrot.slane %v5325, 4
        %v5327 = vsel %vm1161, %v5326, %v5320
        %v5328 = vrot.slane %v5320, 4
        %v5329 = vsel %vm1161, %v5325, %v5328
        %v5331 = vunpack.c.l.s4 1934713408
        %v5332 = vunpack.c.0.s8 %v5331
        %v5333 = vperm.slane %v5327, %v5332
        %v5335 = vunpack.c.l.s4 1934713408
        %v5336 = vunpack.c.0.s8 %v5335
        %v5337 = vperm.slane %v5329, %v5336
        %v5338 = vrot.slane %v5333, 4
        %v5339 = vsel %vm1161, 0, %v5338
        %v5340 = vrot.slane %v5337, 4
        %v5341 = vsel %vm1161, 0, %v5340
        %v5344 = vunpack.c.l.s4 1983009808
        %v5345 = vunpack.c.0.s8 %v5344
        %v5346 = vperm.slane %v5065, %v5345
        %v5349 = vunpack.c.l.s4 1983009808
        %v5350 = vunpack.c.0.s8 %v5349
        %v5351 = vperm.slane %v5071, %v5350
        %v5352 = vrot.slane %v5351, 4
        %v5353 = vsel %vm1161, %v5352, %v5346
        %v5354 = vrot.slane %v5346, 4
        %v5355 = vsel %vm1161, %v5351, %v5354
        %v5357 = vunpack.c.l.s4 1934713408
        %v5358 = vunpack.c.0.s8 %v5357
        %v5359 = vperm.slane %v5353, %v5358
        %v5361 = vunpack.c.l.s4 1934713408
        %v5362 = vunpack.c.0.s8 %v5361
        %v5363 = vperm.slane %v5355, %v5362
        %v5364 = vrot.slane %v5359, 4
        %v5365 = vsel %vm1161, 0, %v5364
        %v5366 = vrot.slane %v5363, 4
        %v5367 = vsel %vm1161, 0, %v5366
        %v5370 = vunpack.c.l.s4 1983009808
        %v5371 = vunpack.c.0.s8 %v5370
        %v5372 = vperm.slane %v5074, %v5371
        %v5375 = vunpack.c.l.s4 1983009808
        %v5376 = vunpack.c.0.s8 %v5375
        %v5377 = vperm.slane %v5080, %v5376
        %v5378 = vrot.slane %v5377, 4
        %v5379 = vsel %vm1161, %v5378, %v5372
        %v5380 = vrot.slane %v5372, 4
        %v5381 = vsel %vm1161, %v5377, %v5380
        %v5383 = vunpack.c.l.s4 1934713408
        %v5384 = vunpack.c.0.s8 %v5383
        %v5385 = vperm.slane %v5379, %v5384
        %v5387 = vunpack.c.l.s4 1934713408
        %v5388 = vunpack.c.0.s8 %v5387
        %v5389 = vperm.slane %v5381, %v5388
        %v5390 = vrot.slane %v5385, 4
        %v5391 = vsel %vm1161, 0, %v5390
        %v5392 = vrot.slane %v5389, 4
        %v5393 = vsel %vm1161, 0, %v5392
        %v5396 = vunpack.c.l.s4 1983009808
        %v5397 = vunpack.c.0.s8 %v5396
        %v5398 = vperm.slane %v5077, %v5397
        %v5401 = vunpack.c.l.s4 1983009808
        %v5402 = vunpack.c.0.s8 %v5401
        %v5403 = vperm.slane %v5083, %v5402
        %v5404 = vrot.slane %v5403, 4
        %v5405 = vsel %vm1161, %v5404, %v5398
        %v5406 = vrot.slane %v5398, 4
        %v5407 = vsel %vm1161, %v5403, %v5406
        %v5409 = vunpack.c.l.s4 1934713408
        %v5410 = vunpack.c.0.s8 %v5409
        %v5411 = vperm.slane %v5405, %v5410
        %v5413 = vunpack.c.l.s4 1934713408
        %v5414 = vunpack.c.0.s8 %v5413
        %v5415 = vperm.slane %v5407, %v5414
        %v5416 = vrot.slane %v5411, 4
        %v5417 = vsel %vm1161, 0, %v5416
        %v5418 = vrot.slane %v5415, 4
        %v5419 = vsel %vm1161, 0, %v5418
        %v5422 = vunpack.c.l.s4 1983009808
        %v5423 = vunpack.c.0.s8 %v5422
        %v5424 = vperm.slane %v5086, %v5423
        %v5427 = vunpack.c.l.s4 1983009808
        %v5428 = vunpack.c.0.s8 %v5427
        %v5429 = vperm.slane %v5092, %v5428
        %v5430 = vrot.slane %v5429, 4
        %v5431 = vsel %vm1161, %v5430, %v5424
        %v5432 = vrot.slane %v5424, 4
        %v5433 = vsel %vm1161, %v5429, %v5432
        %v5435 = vunpack.c.l.s4 1934713408
        %v5436 = vunpack.c.0.s8 %v5435
        %v5437 = vperm.slane %v5431, %v5436
        %v5439 = vunpack.c.l.s4 1934713408
        %v5440 = vunpack.c.0.s8 %v5439
        %v5441 = vperm.slane %v5433, %v5440
        %v5442 = vrot.slane %v5437, 4
        %v5443 = vsel %vm1161, 0, %v5442
        %v5444 = vrot.slane %v5441, 4
        %v5445 = vsel %vm1161, 0, %v5444
        %v5448 = vunpack.c.l.s4 1983009808
        %v5449 = vunpack.c.0.s8 %v5448
        %v5450 = vperm.slane %v5089, %v5449
        %v5453 = vunpack.c.l.s4 1983009808
        %v5454 = vunpack.c.0.s8 %v5453
        %v5455 = vperm.slane %v5095, %v5454
        %v5456 = vrot.slane %v5455, 4
        %v5457 = vsel %vm1161, %v5456, %v5450
        %v5458 = vrot.slane %v5450, 4
        %v5459 = vsel %vm1161, %v5455, %v5458
        %v5461 = vunpack.c.l.s4 1934713408
        %v5462 = vunpack.c.0.s8 %v5461
        %v5463 = vperm.slane %v5457, %v5462
        %v5465 = vunpack.c.l.s4 1934713408
        %v5466 = vunpack.c.0.s8 %v5465
        %v5467 = vperm.slane %v5459, %v5466
        %v5468 = vrot.slane %v5463, 4
        %v5469 = vsel %vm1161, 0, %v5468
        %v5470 = vrot.slane %v5467, 4
        %v5471 = vsel %vm1161, 0, %v5470
        %v5474 = vunpack.c.l.s4 1983009808
        %v5475 = vunpack.c.0.s8 %v5474
        %v5476 = vperm.slane %v5098, %v5475
        %v5479 = vunpack.c.l.s4 1983009808
        %v5480 = vunpack.c.0.s8 %v5479
        %v5481 = vperm.slane %v5104, %v5480
        %v5482 = vrot.slane %v5481, 4
        %v5483 = vsel %vm1161, %v5482, %v5476
        %v5484 = vrot.slane %v5476, 4
        %v5485 = vsel %vm1161, %v5481, %v5484
        %v5487 = vunpack.c.l.s4 1934713408
        %v5488 = vunpack.c.0.s8 %v5487
        %v5489 = vperm.slane %v5483, %v5488
        %v5491 = vunpack.c.l.s4 1934713408
        %v5492 = vunpack.c.0.s8 %v5491
        %v5493 = vperm.slane %v5485, %v5492
        %v5494 = vrot.slane %v5489, 4
        %v5495 = vsel %vm1161, 0, %v5494
        %v5496 = vrot.slane %v5493, 4
        %v5497 = vsel %vm1161, 0, %v5496
        %v5500 = vunpack.c.l.s4 1983009808
        %v5501 = vunpack.c.0.s8 %v5500
        %v5502 = vperm.slane %v5101, %v5501
        %v5505 = vunpack.c.l.s4 1983009808
        %v5506 = vunpack.c.0.s8 %v5505
        %v5507 = vperm.slane %v5107, %v5506
        %v5508 = vrot.slane %v5507, 4
        %v5509 = vsel %vm1161, %v5508, %v5502
        %v5510 = vrot.slane %v5502, 4
        %v5511 = vsel %vm1161, %v5507, %v5510
        %v5513 = vunpack.c.l.s4 1934713408
        %v5514 = vunpack.c.0.s8 %v5513
        %v5515 = vperm.slane %v5509, %v5514
        %v5517 = vunpack.c.l.s4 1934713408
        %v5518 = vunpack.c.0.s8 %v5517
        %v5519 = vperm.slane %v5511, %v5518
        %v5520 = vrot.slane %v5515, 4
        %v5521 = vsel %vm1161, 0, %v5520
        %v5522 = vrot.slane %v5519, 4
        %v5523 = vsel %vm1161, 0, %v5522
        %v5524 = vsel %vm1161, %v5132, %v5125
        %v5526 = vunpack.c.l.s4 1983009808
        %v5527 = vunpack.c.0.s8 %v5526
        %v5528 = vperm.slane %v5524, %v5527
        %v5529 = vrot.slane %v5133, 4
        %v5530 = vsel %vm1161, %v5529, %v5131
        %v5532 = vunpack.c.l.s4 1983009808
        %v5533 = vunpack.c.0.s8 %v5532
        %v5534 = vperm.slane %v5530, %v5533
        %v5535 = vrot.slane %v5534, 4
        %v5536 = vsel %vm1161, %v5535, %v5528
        %v5538 = vunpack.c.l.s4 1934713408
        %v5539 = vunpack.c.0.s8 %v5538
        %v5540 = vperm.slane %v5536, %v5539
        %v5541 = vrot.slane %v5540, 4
        %v5542 = vsel %vm1161, 0, %v5541
        %v5543 = vsel %vm1161, %v5158, %v5151
        %v5545 = vunpack.c.l.s4 1983009808
        %v5546 = vunpack.c.0.s8 %v5545
        %v5547 = vperm.slane %v5543, %v5546
        %v5548 = vrot.slane %v5159, 4
        %v5549 = vsel %vm1161, %v5548, %v5157
        %v5551 = vunpack.c.l.s4 1983009808
        %v5552 = vunpack.c.0.s8 %v5551
        %v5553 = vperm.slane %v5549, %v5552
        %v5554 = vrot.slane %v5553, 4
        %v5555 = vsel %vm1161, %v5554, %v5547
        %v5557 = vunpack.c.l.s4 1934713408
        %v5558 = vunpack.c.0.s8 %v5557
        %v5559 = vperm.slane %v5555, %v5558
        %v5560 = vrot.slane %v5559, 4
        %v5561 = vsel %vm1161, 0, %v5560
        %v5562 = vsel %vm1161, %v5184, %v5177
        %v5564 = vunpack.c.l.s4 1983009808
        %v5565 = vunpack.c.0.s8 %v5564
        %v5566 = vperm.slane %v5562, %v5565
        %v5567 = vrot.slane %v5185, 4
        %v5568 = vsel %vm1161, %v5567, %v5183
        %v5570 = vunpack.c.l.s4 1983009808
        %v5571 = vunpack.c.0.s8 %v5570
        %v5572 = vperm.slane %v5568, %v5571
        %v5573 = vrot.slane %v5572, 4
        %v5574 = vsel %vm1161, %v5573, %v5566
        %v5576 = vunpack.c.l.s4 1934713408
        %v5577 = vunpack.c.0.s8 %v5576
        %v5578 = vperm.slane %v5574, %v5577
        %v5579 = vrot.slane %v5578, 4
        %v5580 = vsel %vm1161, 0, %v5579
        %v5581 = vsel %vm1161, %v5210, %v5203
        %v5583 = vunpack.c.l.s4 1983009808
        %v5584 = vunpack.c.0.s8 %v5583
        %v5585 = vperm.slane %v5581, %v5584
        %v5586 = vrot.slane %v5211, 4
        %v5587 = vsel %vm1161, %v5586, %v5209
        %v5589 = vunpack.c.l.s4 1983009808
        %v5590 = vunpack.c.0.s8 %v5589
        %v5591 = vperm.slane %v5587, %v5590
        %v5592 = vrot.slane %v5591, 4
        %v5593 = vsel %vm1161, %v5592, %v5585
        %v5595 = vunpack.c.l.s4 1934713408
        %v5596 = vunpack.c.0.s8 %v5595
        %v5597 = vperm.slane %v5593, %v5596
        %v5598 = vrot.slane %v5597, 4
        %v5599 = vsel %vm1161, 0, %v5598
        %v5600 = vsel %vm1161, %v5236, %v5229
        %v5602 = vunpack.c.l.s4 1983009808
        %v5603 = vunpack.c.0.s8 %v5602
        %v5604 = vperm.slane %v5600, %v5603
        %v5605 = vrot.slane %v5237, 4
        %v5606 = vsel %vm1161, %v5605, %v5235
        %v5608 = vunpack.c.l.s4 1983009808
        %v5609 = vunpack.c.0.s8 %v5608
        %v5610 = vperm.slane %v5606, %v5609
        %v5611 = vrot.slane %v5610, 4
        %v5612 = vsel %vm1161, %v5611, %v5604
        %v5614 = vunpack.c.l.s4 1934713408
        %v5615 = vunpack.c.0.s8 %v5614
        %v5616 = vperm.slane %v5612, %v5615
        %v5617 = vrot.slane %v5616, 4
        %v5618 = vsel %vm1161, 0, %v5617
        %v5619 = vsel %vm1161, %v5262, %v5255
        %v5621 = vunpack.c.l.s4 1983009808
        %v5622 = vunpack.c.0.s8 %v5621
        %v5623 = vperm.slane %v5619, %v5622
        %v5624 = vrot.slane %v5263, 4
        %v5625 = vsel %vm1161, %v5624, %v5261
        %v5627 = vunpack.c.l.s4 1983009808
        %v5628 = vunpack.c.0.s8 %v5627
        %v5629 = vperm.slane %v5625, %v5628
        %v5630 = vrot.slane %v5629, 4
        %v5631 = vsel %vm1161, %v5630, %v5623
        %v5633 = vunpack.c.l.s4 1934713408
        %v5634 = vunpack.c.0.s8 %v5633
        %v5635 = vperm.slane %v5631, %v5634
        %v5636 = vrot.slane %v5635, 4
        %v5637 = vsel %vm1161, 0, %v5636
        %v5638 = vsel %vm1161, %v5288, %v5281
        %v5640 = vunpack.c.l.s4 1983009808
        %v5641 = vunpack.c.0.s8 %v5640
        %v5642 = vperm.slane %v5638, %v5641
        %v5643 = vrot.slane %v5289, 4
        %v5644 = vsel %vm1161, %v5643, %v5287
        %v5646 = vunpack.c.l.s4 1983009808
        %v5647 = vunpack.c.0.s8 %v5646
        %v5648 = vperm.slane %v5644, %v5647
        %v5649 = vrot.slane %v5648, 4
        %v5650 = vsel %vm1161, %v5649, %v5642
        %v5652 = vunpack.c.l.s4 1934713408
        %v5653 = vunpack.c.0.s8 %v5652
        %v5654 = vperm.slane %v5650, %v5653
        %v5655 = vrot.slane %v5654, 4
        %v5656 = vsel %vm1161, 0, %v5655
        %v5657 = vsel %vm1161, %v5314, %v5307
        %v5659 = vunpack.c.l.s4 1983009808
        %v5660 = vunpack.c.0.s8 %v5659
        %v5661 = vperm.slane %v5657, %v5660
        %v5662 = vrot.slane %v5315, 4
        %v5663 = vsel %vm1161, %v5662, %v5313
        %v5665 = vunpack.c.l.s4 1983009808
        %v5666 = vunpack.c.0.s8 %v5665
        %v5667 = vperm.slane %v5663, %v5666
        %v5668 = vrot.slane %v5667, 4
        %v5669 = vsel %vm1161, %v5668, %v5661
        %v5671 = vunpack.c.l.s4 1934713408
        %v5672 = vunpack.c.0.s8 %v5671
        %v5673 = vperm.slane %v5669, %v5672
        %v5674 = vrot.slane %v5673, 4
        %v5675 = vsel %vm1161, 0, %v5674
        %v5676 = vsel %vm1161, %v5340, %v5333
        %v5678 = vunpack.c.l.s4 1983009808
        %v5679 = vunpack.c.0.s8 %v5678
        %v5680 = vperm.slane %v5676, %v5679
        %v5681 = vrot.slane %v5341, 4
        %v5682 = vsel %vm1161, %v5681, %v5339
        %v5684 = vunpack.c.l.s4 1983009808
        %v5685 = vunpack.c.0.s8 %v5684
        %v5686 = vperm.slane %v5682, %v5685
        %v5687 = vrot.slane %v5686, 4
        %v5688 = vsel %vm1161, %v5687, %v5680
        %v5690 = vunpack.c.l.s4 1934713408
        %v5691 = vunpack.c.0.s8 %v5690
        %v5692 = vperm.slane %v5688, %v5691
        %v5693 = vrot.slane %v5692, 4
        %v5694 = vsel %vm1161, 0, %v5693
        %v5695 = vsel %vm1161, %v5366, %v5359
        %v5697 = vunpack.c.l.s4 1983009808
        %v5698 = vunpack.c.0.s8 %v5697
        %v5699 = vperm.slane %v5695, %v5698
        %v5700 = vrot.slane %v5367, 4
        %v5701 = vsel %vm1161, %v5700, %v5365
        %v5703 = vunpack.c.l.s4 1983009808
        %v5704 = vunpack.c.0.s8 %v5703
        %v5705 = vperm.slane %v5701, %v5704
        %v5706 = vrot.slane %v5705, 4
        %v5707 = vsel %vm1161, %v5706, %v5699
        %v5709 = vunpack.c.l.s4 1934713408
        %v5710 = vunpack.c.0.s8 %v5709
        %v5711 = vperm.slane %v5707, %v5710
        %v5712 = vrot.slane %v5711, 4
        %v5713 = vsel %vm1161, 0, %v5712
        %v5714 = vsel %vm1161, %v5392, %v5385
        %v5716 = vunpack.c.l.s4 1983009808
        %v5717 = vunpack.c.0.s8 %v5716
        %v5718 = vperm.slane %v5714, %v5717
        %v5719 = vrot.slane %v5393, 4
        %v5720 = vsel %vm1161, %v5719, %v5391
        %v5722 = vunpack.c.l.s4 1983009808
        %v5723 = vunpack.c.0.s8 %v5722
        %v5724 = vperm.slane %v5720, %v5723
        %v5725 = vrot.slane %v5724, 4
        %v5726 = vsel %vm1161, %v5725, %v5718
        %v5728 = vunpack.c.l.s4 1934713408
        %v5729 = vunpack.c.0.s8 %v5728
        %v5730 = vperm.slane %v5726, %v5729
        %v5731 = vrot.slane %v5730, 4
        %v5732 = vsel %vm1161, 0, %v5731
        %v5733 = vsel %vm1161, %v5418, %v5411
        %v5735 = vunpack.c.l.s4 1983009808
        %v5736 = vunpack.c.0.s8 %v5735
        %v5737 = vperm.slane %v5733, %v5736
        %v5738 = vrot.slane %v5419, 4
        %v5739 = vsel %vm1161, %v5738, %v5417
        %v5741 = vunpack.c.l.s4 1983009808
        %v5742 = vunpack.c.0.s8 %v5741
        %v5743 = vperm.slane %v5739, %v5742
        %v5744 = vrot.slane %v5743, 4
        %v5745 = vsel %vm1161, %v5744, %v5737
        %v5747 = vunpack.c.l.s4 1934713408
        %v5748 = vunpack.c.0.s8 %v5747
        %v5749 = vperm.slane %v5745, %v5748
        %v5750 = vrot.slane %v5749, 4
        %v5751 = vsel %vm1161, 0, %v5750
        %v5752 = vsel %vm1161, %v5444, %v5437
        %v5754 = vunpack.c.l.s4 1983009808
        %v5755 = vunpack.c.0.s8 %v5754
        %v5756 = vperm.slane %v5752, %v5755
        %v5757 = vrot.slane %v5445, 4
        %v5758 = vsel %vm1161, %v5757, %v5443
        %v5760 = vunpack.c.l.s4 1983009808
        %v5761 = vunpack.c.0.s8 %v5760
        %v5762 = vperm.slane %v5758, %v5761
        %v5763 = vrot.slane %v5762, 4
        %v5764 = vsel %vm1161, %v5763, %v5756
        %v5766 = vunpack.c.l.s4 1934713408
        %v5767 = vunpack.c.0.s8 %v5766
        %v5768 = vperm.slane %v5764, %v5767
        %v5769 = vrot.slane %v5768, 4
        %v5770 = vsel %vm1161, 0, %v5769
        %v5771 = vsel %vm1161, %v5470, %v5463
        %v5773 = vunpack.c.l.s4 1983009808
        %v5774 = vunpack.c.0.s8 %v5773
        %v5775 = vperm.slane %v5771, %v5774
        %v5776 = vrot.slane %v5471, 4
        %v5777 = vsel %vm1161, %v5776, %v5469
        %v5779 = vunpack.c.l.s4 1983009808
        %v5780 = vunpack.c.0.s8 %v5779
        %v5781 = vperm.slane %v5777, %v5780
        %v5782 = vrot.slane %v5781, 4
        %v5783 = vsel %vm1161, %v5782, %v5775
        %v5785 = vunpack.c.l.s4 1934713408
        %v5786 = vunpack.c.0.s8 %v5785
        %v5787 = vperm.slane %v5783, %v5786
        %v5788 = vrot.slane %v5787, 4
        %v5789 = vsel %vm1161, 0, %v5788
        %v5790 = vsel %vm1161, %v5496, %v5489
        %v5792 = vunpack.c.l.s4 1983009808
        %v5793 = vunpack.c.0.s8 %v5792
        %v5794 = vperm.slane %v5790, %v5793
        %v5795 = vrot.slane %v5497, 4
        %v5796 = vsel %vm1161, %v5795, %v5495
        %v5798 = vunpack.c.l.s4 1983009808
        %v5799 = vunpack.c.0.s8 %v5798
        %v5800 = vperm.slane %v5796, %v5799
        %v5801 = vrot.slane %v5800, 4
        %v5802 = vsel %vm1161, %v5801, %v5794
        %v5804 = vunpack.c.l.s4 1934713408
        %v5805 = vunpack.c.0.s8 %v5804
        %v5806 = vperm.slane %v5802, %v5805
        %v5807 = vrot.slane %v5806, 4
        %v5808 = vsel %vm1161, 0, %v5807
        %v5809 = vsel %vm1161, %v5522, %v5515
        %v5811 = vunpack.c.l.s4 1983009808
        %v5812 = vunpack.c.0.s8 %v5811
        %v5813 = vperm.slane %v5809, %v5812
        %v5814 = vrot.slane %v5523, 4
        %v5815 = vsel %vm1161, %v5814, %v5521
        %v5817 = vunpack.c.l.s4 1983009808
        %v5818 = vunpack.c.0.s8 %v5817
        %v5819 = vperm.slane %v5815, %v5818
        %v5820 = vrot.slane %v5819, 4
        %v5821 = vsel %vm1161, %v5820, %v5813
        %v5823 = vunpack.c.l.s4 1934713408
        %v5824 = vunpack.c.0.s8 %v5823
        %v5825 = vperm.slane %v5821, %v5824
        %v5826 = vrot.slane %v5825, 4
        %v5827 = vsel %vm1161, 0, %v5826
        %v5830 = vpack.i.b16 %v5559, %v5540
        %v5831 = vshrl.u32 %v5540, 16
        %v5832 = vshrl.u32 %v5559, 16
        %v5833 = vpack.i.b16 %v5832, %v5831
        %v5836 = vpack.i.b16 %v5561, %v5542
        %v5837 = vshrl.u32 %v5542, 16
        %v5838 = vshrl.u32 %v5561, 16
        %v5839 = vpack.i.b16 %v5838, %v5837
        %v5842 = vpack.i.b16 %v5597, %v5578
        %v5843 = vshrl.u32 %v5578, 16
        %v5844 = vshrl.u32 %v5597, 16
        %v5845 = vpack.i.b16 %v5844, %v5843
        %v5848 = vpack.i.b16 %v5599, %v5580
        %v5849 = vshrl.u32 %v5580, 16
        %v5850 = vshrl.u32 %v5599, 16
        %v5851 = vpack.i.b16 %v5850, %v5849
        %v5854 = vpack.i.b16 %v5635, %v5616
        %v5855 = vshrl.u32 %v5616, 16
        %v5856 = vshrl.u32 %v5635, 16
        %v5857 = vpack.i.b16 %v5856, %v5855
        %v5860 = vpack.i.b16 %v5637, %v5618
        %v5861 = vshrl.u32 %v5618, 16
        %v5862 = vshrl.u32 %v5637, 16
        %v5863 = vpack.i.b16 %v5862, %v5861
        %v5866 = vpack.i.b16 %v5673, %v5654
        %v5867 = vshrl.u32 %v5654, 16
        %v5868 = vshrl.u32 %v5673, 16
        %v5869 = vpack.i.b16 %v5868, %v5867
        %v5872 = vpack.i.b16 %v5675, %v5656
        %v5873 = vshrl.u32 %v5656, 16
        %v5874 = vshrl.u32 %v5675, 16
        %v5875 = vpack.i.b16 %v5874, %v5873
        %v5878 = vpack.i.b16 %v5711, %v5692
        %v5879 = vshrl.u32 %v5692, 16
        %v5880 = vshrl.u32 %v5711, 16
        %v5881 = vpack.i.b16 %v5880, %v5879
        %v5884 = vpack.i.b16 %v5713, %v5694
        %v5885 = vshrl.u32 %v5694, 16
        %v5886 = vshrl.u32 %v5713, 16
        %v5887 = vpack.i.b16 %v5886, %v5885
        %v5890 = vpack.i.b16 %v5749, %v5730
        %v5891 = vshrl.u32 %v5730, 16
        %v5892 = vshrl.u32 %v5749, 16
        %v5893 = vpack.i.b16 %v5892, %v5891
        %v5896 = vpack.i.b16 %v5751, %v5732
        %v5897 = vshrl.u32 %v5732, 16
        %v5898 = vshrl.u32 %v5751, 16
        %v5899 = vpack.i.b16 %v5898, %v5897
        %v5902 = vpack.i.b16 %v5787, %v5768
        %v5903 = vshrl.u32 %v5768, 16
        %v5904 = vshrl.u32 %v5787, 16
        %v5905 = vpack.i.b16 %v5904, %v5903
        %v5908 = vpack.i.b16 %v5789, %v5770
        %v5909 = vshrl.u32 %v5770, 16
        %v5910 = vshrl.u32 %v5789, 16
        %v5911 = vpack.i.b16 %v5910, %v5909
        %v5914 = vpack.i.b16 %v5825, %v5806
        %v5915 = vshrl.u32 %v5806, 16
        %v5916 = vshrl.u32 %v5825, 16
        %v5917 = vpack.i.b16 %v5916, %v5915
        %v5920 = vpack.i.b16 %v5827, %v5808
        %v5921 = vshrl.u32 %v5808, 16
        %v5922 = vshrl.u32 %v5827, 16
        %v5923 = vpack.i.b16 %v5922, %v5921
        %v5924 = vunpack.c.l.b16 %v5830
        %v5925 = vunpack.c.l.b16 %v5842
        %v5926 = vunpack.c.l.b16 %v5854
        %v5927 = vunpack.c.l.b16 %v5866
        %v5928 = vunpack.c.l.b16 %v5878
        %v5929 = vunpack.c.l.b16 %v5890
        %v5930 = vunpack.c.l.b16 %v5902
        %v5931 = vunpack.c.l.b16 %v5914
        %v5932 = vpack.c.b16 %v5925, %v5924
        %v5933 = vpack.c.b16 %v5927, %v5926
        %v5934 = vpack.c.b16 %v5929, %v5928
        %v5935 = vpack.c.b16 %v5931, %v5930
        %v5936 = vunpack.c.l.b16 %v5833
        %v5937 = vunpack.c.l.b16 %v5845
        %v5938 = vunpack.c.l.b16 %v5857
        %v5939 = vunpack.c.l.b16 %v5869
        %v5940 = vunpack.c.l.b16 %v5881
        %v5941 = vunpack.c.l.b16 %v5893
        %v5942 = vunpack.c.l.b16 %v5905
        %v5943 = vunpack.c.l.b16 %v5917
        %v5944 = vpack.c.b16 %v5937, %v5936
        %v5945 = vpack.c.b16 %v5939, %v5938
        %v5946 = vpack.c.b16 %v5941, %v5940
        %v5947 = vpack.c.b16 %v5943, %v5942
        %5948 = vrot.lane.b32.xlu0 %v5944, 32
        %v5949 = vpop.permute.xlu0 %5948
        %5950 = vrot.lane.b32.xlu0 %v5945, 32
        %v5951 = vpop.permute.xlu0 %5950
        %5952 = vrot.lane.b32.xlu0 %v5946, 32
        %v5953 = vpop.permute.xlu0 %5952
        %5954 = vrot.lane.b32.xlu0 %v5947, 32
        %v5955 = vpop.permute.xlu0 %5954
        %v5956 = vunpack.c.l.b16 %v5836
        %v5957 = vunpack.c.l.b16 %v5848
        %v5958 = vunpack.c.l.b16 %v5860
        %v5959 = vunpack.c.l.b16 %v5872
        %v5960 = vunpack.c.l.b16 %v5884
        %v5961 = vunpack.c.l.b16 %v5896
        %v5962 = vunpack.c.l.b16 %v5908
        %v5963 = vunpack.c.l.b16 %v5920
        %v5964 = vpack.c.b16 %v5957, %v5956
        %v5965 = vpack.c.b16 %v5959, %v5958
        %v5966 = vpack.c.b16 %v5961, %v5960
        %v5967 = vpack.c.b16 %v5963, %v5962
        %5968 = vrot.lane.b32.xlu0 %v5964, 64
        %v5969 = vpop.permute.xlu0 %5968
        %5970 = vrot.lane.b32.xlu0 %v5965, 64
        %v5971 = vpop.permute.xlu0 %5970
        %5972 = vrot.lane.b32.xlu0 %v5966, 64
        %v5973 = vpop.permute.xlu0 %5972
        %5974 = vrot.lane.b32.xlu0 %v5967, 64
        %v5975 = vpop.permute.xlu0 %5974
        %v5976 = vunpack.c.l.b16 %v5839
        %v5977 = vunpack.c.l.b16 %v5851
        %v5978 = vunpack.c.l.b16 %v5863
        %v5979 = vunpack.c.l.b16 %v5875
        %v5980 = vunpack.c.l.b16 %v5887
        %v5981 = vunpack.c.l.b16 %v5899
        %v5982 = vunpack.c.l.b16 %v5911
        %v5983 = vunpack.c.l.b16 %v5923
        %v5984 = vpack.c.b16 %v5977, %v5976
        %v5985 = vpack.c.b16 %v5979, %v5978
        %v5986 = vpack.c.b16 %v5981, %v5980
        %v5987 = vpack.c.b16 %v5983, %v5982
        %5988 = vrot.lane.b32.xlu0 %v5984, 96
        %v5989 = vpop.permute.xlu0 %5988
        %5990 = vrot.lane.b32.xlu0 %v5985, 96
        %v5991 = vpop.permute.xlu0 %5990
        %5992 = vrot.lane.b32.xlu0 %v5986, 96
        %v5993 = vpop.permute.xlu0 %5992
        %5994 = vrot.lane.b32.xlu0 %v5987, 96
        %v5995 = vpop.permute.xlu0 %5994
        %v5998 = vsel %vm3903, %v5932, %v5949
        %v6001 = vsel %vm3903, %v5933, %v5951
        %v6004 = vsel %vm3903, %v5934, %v5953
        %v6007 = vsel %vm3903, %v5935, %v5955
        %v6009 = vsel %vm4287, %v5998, %v5969
        %v6011 = vsel %vm4287, %v6001, %v5971
        %v6013 = vsel %vm4287, %v6004, %v5973
        %v6015 = vsel %vm4287, %v6007, %v5975
        %vm6016 = vcmask 785408
        %v6018 = vsel %vm6016, %v6009, %v5989
        %v6021 = vsel %vm6016, %v6011, %v5991
        %v6024 = vsel %vm6016, %v6013, %v5993
        %v6027 = vsel %vm6016, %v6015, %v5995
        %v6029 = vld [vmem:[#allocation7] sm:$0xf]
        %v6030 = vld [vmem:[#allocation7 + $0x4] sm:$0xf]
        %v6031 = vld [vmem:[#allocation7 + $0x8] sm:$0xf]
        %v6032 = vld [vmem:[#allocation7 + $0xc] sm:$0xf]
        %v6033 = vld [vmem:[#allocation7 + $0x10] sm:$0xf]
        %v6034 = vld [vmem:[#allocation7 + $0x14] sm:$0xf]
        %v6035 = vld [vmem:[#allocation7 + $0x18] sm:$0xf]
        %v6036 = vld [vmem:[#allocation7 + $0x1c] sm:$0xf]
        %v6037 = vld [vmem:[#allocation7 + $0x20] sm:$0xf]
        %v6038 = vld [vmem:[#allocation7 + $0x24] sm:$0xf]
        %v6039 = vld [vmem:[#allocation7 + $0x28] sm:$0xf]
        %v6040 = vld [vmem:[#allocation7 + $0x2c] sm:$0xf]
        %v6041 = vld [vmem:[#allocation7 + $0x30] sm:$0xf]
        %v6042 = vld [vmem:[#allocation7 + $0x34] sm:$0xf]
        %v6043 = vld [vmem:[#allocation7 + $0x38] sm:$0xf]
        %v6044 = vld [vmem:[#allocation7 + $0x3c] sm:$0xf]
        %v6045 = vld [vmem:[%s5] sm:$0x1]
        %v6047 = vperm.slane %v6045, 0
        %v6065 = vunpack.c.l.b16 %v6029
        %v6066 = vunpack.c.l.b16 %v6030
        %v6067 = vunpack.c.l.b16 %v6031
        %v6068 = vunpack.c.l.b16 %v6032
        %v6069 = vunpack.c.l.b16 %v6033
        %v6070 = vunpack.c.l.b16 %v6034
        %v6071 = vunpack.c.l.b16 %v6035
        %v6072 = vunpack.c.l.b16 %v6036
        %v6073 = vunpack.c.l.b16 %v6037
        %v6074 = vunpack.c.l.b16 %v6038
        %v6075 = vunpack.c.l.b16 %v6039
        %v6076 = vunpack.c.l.b16 %v6040
        %v6077 = vunpack.c.l.b16 %v6041
        %v6078 = vunpack.c.l.b16 %v6042
        %v6079 = vunpack.c.l.b16 %v6043
        %v6080 = vunpack.c.l.b16 %v6044
        %v6081 = vpack.c.b16 %v6066, %v6065
        %v6082 = vpack.c.b16 %v6068, %v6067
        %v6083 = vpack.c.b16 %v6070, %v6069
        %v6084 = vpack.c.b16 %v6072, %v6071
        %v6085 = vpack.c.b16 %v6074, %v6073
        %v6086 = vpack.c.b16 %v6076, %v6075
        %v6087 = vpack.c.b16 %v6078, %v6077
        %v6088 = vpack.c.b16 %v6080, %v6079
        %6097 = vmatpush.bf16.msra.mxu0 %v6088
        %6098 = vmatpush.bf16.msra.mxu0 %v6087
        %6099 = vmatpush.bf16.msra.mxu0 %v6086
        %6100 = vmatpush.bf16.msra.mxu0 %v6085
        %6101 = vmatpush.bf16.msra.mxu0 %v6084
        %6102 = vmatpush.bf16.msra.mxu0 %v6083
        %6103 = vmatpush.bf16.msra.mxu0 %v6082
        %6104 = vmatpush.bf16.msra.mxu0 %v6081
        %6105 = vmatmul.bf16.gmra.mxu0 %v6018
        %v6106 = vpop.f32.mrf.mxu0
        %v6107 = vadd.f32 %v6047, %v6106
        %v6108 = vpop.f32.mrf.mxu0
        %v6109 = vadd.f32 %v6047, %v6108
        %6110 = vmatmul.bf16.gmra.mxu0 %v6021
        %v6111 = vpop.f32.mrf.mxu0
        %v6112 = vadd.f32 %v6047, %v6111
        %v6113 = vpop.f32.mrf.mxu0
        %v6114 = vadd.f32 %v6047, %v6113
        %6115 = vmatmul.bf16.gmra.mxu0 %v6024
        %v6116 = vpop.f32.mrf.mxu0
        %v6117 = vadd.f32 %v6047, %v6116
        %v6118 = vpop.f32.mrf.mxu0
        %v6119 = vadd.f32 %v6047, %v6118
        %6120 = vmatmul.bf16.gmra.mxu0 %v6027
        %v6121 = vpop.f32.mrf.mxu0
        %v6122 = vadd.f32 %v6047, %v6121
        %v6123 = vpop.f32.mrf.mxu0
        %v6124 = vadd.f32 %v6047, %v6123
        %6125 = vdwg.mxu0
        %v6126 = vadd.f32 %v532, %v6107
        %v6127 = vadd.f32 %v533, %v6109
        %v6128 = vadd.f32 %v534, %v6112
        %v6129 = vadd.f32 %v535, %v6114
        %v6130 = vadd.f32 %v536, %v6117
        %v6131 = vadd.f32 %v537, %v6119
        %v6132 = vadd.f32 %v538, %v6122
        %v6133 = vadd.f32 %v539, %v6124
        %v6134 = vld [vmem:[#allocation8] sm:$0x1]
        %v6135 = vld [vmem:[#allocation10] sm:$0x1]
        %6136 = vadd.xlane.f32.xlu0 %v6126
        %v6137 = vpop.xlane.xlu0 %6136
        %6138 = vadd.xlane.f32.xlu0 %v6127
        %v6139 = vpop.xlane.xlu0 %6138
        %6140 = vadd.xlane.f32.xlu0 %v6128
        %v6141 = vpop.xlane.xlu0 %6140
        %6142 = vadd.xlane.f32.xlu0 %v6129
        %v6143 = vpop.xlane.xlu0 %6142
        %6144 = vadd.xlane.f32.xlu0 %v6130
        %v6145 = vpop.xlane.xlu0 %6144
        %6146 = vadd.xlane.f32.xlu0 %v6131
        %v6147 = vpop.xlane.xlu0 %6146
        %6148 = vadd.xlane.f32.xlu0 %v6132
        %v6149 = vpop.xlane.xlu0 %6148
        %6150 = vadd.xlane.f32.xlu0 %v6133
        %v6151 = vpop.xlane.xlu0 %6150
        %v6152 = vmul.f32 %v6137, %v564
        %v6153 = vmul.f32 %v6139, %v564
        %v6154 = vmul.f32 %v6141, %v564
        %v6155 = vmul.f32 %v6143, %v564
        %v6156 = vmul.f32 %v6145, %v564
        %v6157 = vmul.f32 %v6147, %v564
        %v6158 = vmul.f32 %v6149, %v564
        %v6159 = vmul.f32 %v6151, %v564
        %v6160 = vsub.f32 %v6126, %v6152
        %v6161 = vsub.f32 %v6127, %v6153
        %v6162 = vsub.f32 %v6128, %v6154
        %v6163 = vsub.f32 %v6129, %v6155
        %v6164 = vsub.f32 %v6130, %v6156
        %v6165 = vsub.f32 %v6131, %v6157
        %v6166 = vsub.f32 %v6132, %v6158
        %v6167 = vsub.f32 %v6133, %v6159
        %v6168 = vmul.f32 %v6160, %v6160
        %v6169 = vmul.f32 %v6161, %v6161
        %v6170 = vmul.f32 %v6162, %v6162
        %v6171 = vmul.f32 %v6163, %v6163
        %v6172 = vmul.f32 %v6164, %v6164
        %v6173 = vmul.f32 %v6165, %v6165
        %v6174 = vmul.f32 %v6166, %v6166
        %v6175 = vmul.f32 %v6167, %v6167
        %6176 = vadd.xlane.f32.xlu0 %v6168
        %v6177 = vpop.xlane.xlu0 %6176
        %6178 = vadd.xlane.f32.xlu0 %v6169
        %v6179 = vpop.xlane.xlu0 %6178
        %6180 = vadd.xlane.f32.xlu0 %v6170
        %v6181 = vpop.xlane.xlu0 %6180
        %6182 = vadd.xlane.f32.xlu0 %v6171
        %v6183 = vpop.xlane.xlu0 %6182
        %6184 = vadd.xlane.f32.xlu0 %v6172
        %v6185 = vpop.xlane.xlu0 %6184
        %6186 = vadd.xlane.f32.xlu0 %v6173
        %v6187 = vpop.xlane.xlu0 %6186
        %6188 = vadd.xlane.f32.xlu0 %v6174
        %v6189 = vpop.xlane.xlu0 %6188
        %6190 = vadd.xlane.f32.xlu0 %v6175
        %v6191 = vpop.xlane.xlu0 %6190
        %v6192 = vmul.f32 %v6177, %v564
        %v6193 = vmul.f32 %v6179, %v564
        %v6194 = vmul.f32 %v6181, %v564
        %v6195 = vmul.f32 %v6183, %v564
        %v6196 = vmul.f32 %v6185, %v564
        %v6197 = vmul.f32 %v6187, %v564
        %v6198 = vmul.f32 %v6189, %v564
        %v6199 = vmul.f32 %v6191, %v564
        %v6200 = vadd.f32 %v6192, 1e-05
        %v6201 = vadd.f32 %v6193, 1e-05
        %v6202 = vadd.f32 %v6194, 1e-05
        %v6203 = vadd.f32 %v6195, 1e-05
        %v6204 = vadd.f32 %v6196, 1e-05
        %v6205 = vadd.f32 %v6197, 1e-05
        %v6206 = vadd.f32 %v6198, 1e-05
        %v6207 = vadd.f32 %v6199, 1e-05
        %v6208 = vrsqrt.pop %v6200
        %v6209 = vmul.f32 %v6208, %v6200
        %v6210 = vmul.f32 %v6209, %v6208
        %v6211 = vmul.f32 0.5, %v6210
        %v6212 = vsub.f32 1.5, %v6211
        %v6213 = vmul.f32 %v6208, %v6212
        %vm6214 = vweird.f32 %v6200
        %vm6215 = vweird.f32 %v6208
        %vm6216 = vmor %vm6214, %vm6215
        %v6217 = vsel %vm6216, %v6208, %v6213
        %v6218 = vrsqrt.pop %v6201
        %v6219 = vmul.f32 %v6218, %v6201
        %v6220 = vmul.f32 %v6219, %v6218
        %v6221 = vmul.f32 0.5, %v6220
        %v6222 = vsub.f32 1.5, %v6221
        %v6223 = vmul.f32 %v6218, %v6222
        %vm6224 = vweird.f32 %v6201
        %vm6225 = vweird.f32 %v6218
        %vm6226 = vmor %vm6224, %vm6225
        %v6227 = vsel %vm6226, %v6218, %v6223
        %v6228 = vrsqrt.pop %v6202
        %v6229 = vmul.f32 %v6228, %v6202
        %v6230 = vmul.f32 %v6229, %v6228
        %v6231 = vmul.f32 0.5, %v6230
        %v6232 = vsub.f32 1.5, %v6231
        %v6233 = vmul.f32 %v6228, %v6232
        %vm6234 = vweird.f32 %v6202
        %vm6235 = vweird.f32 %v6228
        %vm6236 = vmor %vm6234, %vm6235
        %v6237 = vsel %vm6236, %v6228, %v6233
        %v6238 = vrsqrt.pop %v6203
        %v6239 = vmul.f32 %v6238, %v6203
        %v6240 = vmul.f32 %v6239, %v6238
        %v6241 = vmul.f32 0.5, %v6240
        %v6242 = vsub.f32 1.5, %v6241
        %v6243 = vmul.f32 %v6238, %v6242
        %vm6244 = vweird.f32 %v6203
        %vm6245 = vweird.f32 %v6238
        %vm6246 = vmor %vm6244, %vm6245
        %v6247 = vsel %vm6246, %v6238, %v6243
        %v6248 = vrsqrt.pop %v6204
        %v6249 = vmul.f32 %v6248, %v6204
        %v6250 = vmul.f32 %v6249, %v6248
        %v6251 = vmul.f32 0.5, %v6250
        %v6252 = vsub.f32 1.5, %v6251
        %v6253 = vmul.f32 %v6248, %v6252
        %vm6254 = vweird.f32 %v6204
        %vm6255 = vweird.f32 %v6248
        %vm6256 = vmor %vm6254, %vm6255
        %v6257 = vsel %vm6256, %v6248, %v6253
        %v6258 = vrsqrt.pop %v6205
        %v6259 = vmul.f32 %v6258, %v6205
        %v6260 = vmul.f32 %v6259, %v6258
        %v6261 = vmul.f32 0.5, %v6260
        %v6262 = vsub.f32 1.5, %v6261
        %v6263 = vmul.f32 %v6258, %v6262
        %vm6264 = vweird.f32 %v6205
        %vm6265 = vweird.f32 %v6258
        %vm6266 = vmor %vm6264, %vm6265
        %v6267 = vsel %vm6266, %v6258, %v6263
        %v6268 = vrsqrt.pop %v6206
        %v6269 = vmul.f32 %v6268, %v6206
        %v6270 = vmul.f32 %v6269, %v6268
        %v6271 = vmul.f32 0.5, %v6270
        %v6272 = vsub.f32 1.5, %v6271
        %v6273 = vmul.f32 %v6268, %v6272
        %vm6274 = vweird.f32 %v6206
        %vm6275 = vweird.f32 %v6268
        %vm6276 = vmor %vm6274, %vm6275
        %v6277 = vsel %vm6276, %v6268, %v6273
        %v6278 = vrsqrt.pop %v6207
        %v6279 = vmul.f32 %v6278, %v6207
        %v6280 = vmul.f32 %v6279, %v6278
        %v6281 = vmul.f32 0.5, %v6280
        %v6282 = vsub.f32 1.5, %v6281
        %v6283 = vmul.f32 %v6278, %v6282
        %vm6284 = vweird.f32 %v6207
        %vm6285 = vweird.f32 %v6278
        %vm6286 = vmor %vm6284, %vm6285
        %v6287 = vsel %vm6286, %v6278, %v6283
        %v6288 = vmul.f32 %v6160, %v6217
        %v6289 = vmul.f32 %v6161, %v6227
        %v6290 = vmul.f32 %v6162, %v6237
        %v6291 = vmul.f32 %v6163, %v6247
        %v6292 = vmul.f32 %v6164, %v6257
        %v6293 = vmul.f32 %v6165, %v6267
        %v6294 = vmul.f32 %v6166, %v6277
        %v6295 = vmul.f32 %v6167, %v6287
        %v6297 = vperm.slane %v6134, 0
        %v6299 = vmul.f32 %v6288, %v6297
        %v6300 = vmul.f32 %v6289, %v6297
        %v6301 = vmul.f32 %v6290, %v6297
        %v6302 = vmul.f32 %v6291, %v6297
        %v6303 = vmul.f32 %v6292, %v6297
        %v6304 = vmul.f32 %v6293, %v6297
        %v6305 = vmul.f32 %v6294, %v6297
        %v6306 = vmul.f32 %v6295, %v6297
        %v6308 = vperm.slane %v6135, 0
        %v6310 = vadd.f32 %v6299, %v6308
        %v6311 = vadd.f32 %v6300, %v6308
        %v6312 = vadd.f32 %v6301, %v6308
        %v6313 = vadd.f32 %v6302, %v6308
        %v6314 = vadd.f32 %v6303, %v6308
        %v6315 = vadd.f32 %v6304, %v6308
        %v6316 = vadd.f32 %v6305, %v6308
        %v6317 = vadd.f32 %v6306, %v6308
        %v6318 = vpack.c.bf16 %v6311, %v6310
        %v6319 = vpack.c.bf16 %v6313, %v6312
        %v6320 = vpack.c.bf16 %v6315, %v6314
        %v6321 = vpack.c.bf16 %v6317, %v6316
        %v6322 = vld [vmem:[#allocation11] sm:$0xff]
        %v6323 = vld [vmem:[#allocation11 + $0x8] sm:$0xff]
        %v6324 = vld [vmem:[#allocation11 + $0x10] sm:$0xff]
        %v6325 = vld [vmem:[#allocation11 + $0x18] sm:$0xff]
        %v6326 = vld [vmem:[#allocation11 + $0x20] sm:$0xff]
        %v6327 = vld [vmem:[#allocation11 + $0x28] sm:$0xff]
        %v6328 = vld [vmem:[#allocation11 + $0x30] sm:$0xff]
        %v6329 = vld [vmem:[#allocation11 + $0x38] sm:$0xff]
        %v6330 = vld [vmem:[#allocation11 + $0x40] sm:$0xff]
        %v6331 = vld [vmem:[#allocation11 + $0x48] sm:$0xff]
        %v6332 = vld [vmem:[#allocation11 + $0x50] sm:$0xff]
        %v6333 = vld [vmem:[#allocation11 + $0x58] sm:$0xff]
        %v6334 = vld [vmem:[#allocation11 + $0x60] sm:$0xff]
        %v6335 = vld [vmem:[#allocation11 + $0x68] sm:$0xff]
        %v6336 = vld [vmem:[#allocation11 + $0x70] sm:$0xff]
        %v6337 = vld [vmem:[#allocation11 + $0x78] sm:$0xff]
        %v6338 = vld [vmem:[#allocation11 + $0x80] sm:$0xff]
        %v6339 = vld [vmem:[#allocation11 + $0x88] sm:$0xff]
        %v6340 = vld [vmem:[#allocation11 + $0x90] sm:$0xff]
        %v6341 = vld [vmem:[#allocation11 + $0x98] sm:$0xff]
        %v6342 = vld [vmem:[#allocation11 + $0xa0] sm:$0xff]
        %v6343 = vld [vmem:[#allocation11 + $0xa8] sm:$0xff]
        %v6344 = vld [vmem:[#allocation11 + $0xb0] sm:$0xff]
        %v6345 = vld [vmem:[#allocation11 + $0xb8] sm:$0xff]
        %v6346 = vld [vmem:[#allocation11 + $0xc0] sm:$0xff]
        %v6347 = vld [vmem:[#allocation11 + $0xc8] sm:$0xff]
        %v6348 = vld [vmem:[#allocation11 + $0xd0] sm:$0xff]
        %v6349 = vld [vmem:[#allocation11 + $0xd8] sm:$0xff]
        %v6350 = vld [vmem:[#allocation11 + $0xe0] sm:$0xff]
        %v6351 = vld [vmem:[#allocation11 + $0xe8] sm:$0xff]
        %v6352 = vld [vmem:[#allocation11 + $0xf0] sm:$0xff]
        %v6353 = vld [vmem:[#allocation11 + $0xf8] sm:$0xff]
        %v6354 = vld [vmem:[%s9] sm:$0xf]
        %v6356 = vperm.slane %v6354, 0
        %v6357 = vperm.slane %v6354, 1
        %v6358 = vperm.slane %v6354, 2
        %v6359 = vperm.slane %v6354, 3
        %v6396 = vunpack.c.l.b16 %v6322
        %v6397 = vunpack.c.h.b16 %v6322
        %v6398 = vunpack.c.l.b16 %v6323
        %v6399 = vunpack.c.h.b16 %v6323
        %v6400 = vunpack.c.l.b16 %v6324
        %v6401 = vunpack.c.h.b16 %v6324
        %v6402 = vunpack.c.l.b16 %v6325
        %v6403 = vunpack.c.h.b16 %v6325
        %v6404 = vunpack.c.l.b16 %v6326
        %v6405 = vunpack.c.h.b16 %v6326
        %v6406 = vunpack.c.l.b16 %v6327
        %v6407 = vunpack.c.h.b16 %v6327
        %v6408 = vunpack.c.l.b16 %v6328
        %v6409 = vunpack.c.h.b16 %v6328
        %v6410 = vunpack.c.l.b16 %v6329
        %v6411 = vunpack.c.h.b16 %v6329
        %v6412 = vunpack.c.l.b16 %v6330
        %v6413 = vunpack.c.h.b16 %v6330
        %v6414 = vunpack.c.l.b16 %v6331
        %v6415 = vunpack.c.h.b16 %v6331
        %v6416 = vunpack.c.l.b16 %v6332
        %v6417 = vunpack.c.h.b16 %v6332
        %v6418 = vunpack.c.l.b16 %v6333
        %v6419 = vunpack.c.h.b16 %v6333
        %v6420 = vunpack.c.l.b16 %v6334
        %v6421 = vunpack.c.h.b16 %v6334
        %v6422 = vunpack.c.l.b16 %v6335
        %v6423 = vunpack.c.h.b16 %v6335
        %v6424 = vunpack.c.l.b16 %v6336
        %v6425 = vunpack.c.h.b16 %v6336
        %v6426 = vunpack.c.l.b16 %v6337
        %v6427 = vunpack.c.h.b16 %v6337
        %v6428 = vunpack.c.l.b16 %v6338
        %v6429 = vunpack.c.h.b16 %v6338
        %v6430 = vunpack.c.l.b16 %v6339
        %v6431 = vunpack.c.h.b16 %v6339
        %v6432 = vunpack.c.l.b16 %v6340
        %v6433 = vunpack.c.h.b16 %v6340
        %v6434 = vunpack.c.l.b16 %v6341
        %v6435 = vunpack.c.h.b16 %v6341
        %v6436 = vunpack.c.l.b16 %v6342
        %v6437 = vunpack.c.h.b16 %v6342
        %v6438 = vunpack.c.l.b16 %v6343
        %v6439 = vunpack.c.h.b16 %v6343
        %v6440 = vunpack.c.l.b16 %v6344
        %v6441 = vunpack.c.h.b16 %v6344
        %v6442 = vunpack.c.l.b16 %v6345
        %v6443 = vunpack.c.h.b16 %v6345
        %v6444 = vunpack.c.l.b16 %v6346
        %v6445 = vunpack.c.h.b16 %v6346
        %v6446 = vunpack.c.l.b16 %v6347
        %v6447 = vunpack.c.h.b16 %v6347
        %v6448 = vunpack.c.l.b16 %v6348
        %v6449 = vunpack.c.h.b16 %v6348
        %v6450 = vunpack.c.l.b16 %v6349
        %v6451 = vunpack.c.h.b16 %v6349
        %v6452 = vunpack.c.l.b16 %v6350
        %v6453 = vunpack.c.h.b16 %v6350
        %v6454 = vunpack.c.l.b16 %v6351
        %v6455 = vunpack.c.h.b16 %v6351
        %v6456 = vunpack.c.l.b16 %v6352
        %v6457 = vunpack.c.h.b16 %v6352
        %v6458 = vunpack.c.l.b16 %v6353
        %v6459 = vunpack.c.h.b16 %v6353
        %v6460 = vpack.c.b16 %v6400, %v6396
        %v6461 = vpack.c.b16 %v6401, %v6397
        %v6462 = vpack.c.b16 %v6402, %v6398
        %v6463 = vpack.c.b16 %v6403, %v6399
        %v6464 = vpack.c.b16 %v6408, %v6404
        %v6465 = vpack.c.b16 %v6409, %v6405
        %v6466 = vpack.c.b16 %v6410, %v6406
        %v6467 = vpack.c.b16 %v6411, %v6407
        %v6468 = vpack.c.b16 %v6416, %v6412
        %v6469 = vpack.c.b16 %v6417, %v6413
        %v6470 = vpack.c.b16 %v6418, %v6414
        %v6471 = vpack.c.b16 %v6419, %v6415
        %v6472 = vpack.c.b16 %v6424, %v6420
        %v6473 = vpack.c.b16 %v6425, %v6421
        %v6474 = vpack.c.b16 %v6426, %v6422
        %v6475 = vpack.c.b16 %v6427, %v6423
        %v6476 = vpack.c.b16 %v6432, %v6428
        %v6477 = vpack.c.b16 %v6433, %v6429
        %v6478 = vpack.c.b16 %v6434, %v6430
        %v6479 = vpack.c.b16 %v6435, %v6431
        %v6480 = vpack.c.b16 %v6440, %v6436
        %v6481 = vpack.c.b16 %v6441, %v6437
        %v6482 = vpack.c.b16 %v6442, %v6438
        %v6483 = vpack.c.b16 %v6443, %v6439
        %v6484 = vpack.c.b16 %v6448, %v6444
        %v6485 = vpack.c.b16 %v6449, %v6445
        %v6486 = vpack.c.b16 %v6450, %v6446
        %v6487 = vpack.c.b16 %v6451, %v6447
        %v6488 = vpack.c.b16 %v6456, %v6452
        %v6489 = vpack.c.b16 %v6457, %v6453
        %v6490 = vpack.c.b16 %v6458, %v6454
        %v6491 = vpack.c.b16 %v6459, %v6455
        %6524 = vmatpush.bf16.msra.mxu0 %v6488
        %6525 = vmatpush.bf16.msra.mxu0 %v6484
        %6526 = vmatpush.bf16.msra.mxu0 %v6480
        %6527 = vmatpush.bf16.msra.mxu0 %v6476
        %6528 = vmatpush.bf16.msra.mxu0 %v6472
        %6529 = vmatpush.bf16.msra.mxu0 %v6468
        %6530 = vmatpush.bf16.msra.mxu0 %v6464
        %6531 = vmatpush.bf16.msra.mxu0 %v6460
        %6532 = vmatmul.bf16.gmra.mxu0 %v6318
        %v6533 = vpop.f32.mrf.mxu0
        %v6534 = vadd.f32 %v6356, %v6533
        %v6535 = vpop.f32.mrf.mxu0
        %v6536 = vadd.f32 %v6356, %v6535
        %6537 = vmatmul.bf16.gmra.mxu0 %v6319
        %v6538 = vpop.f32.mrf.mxu0
        %v6539 = vadd.f32 %v6356, %v6538
        %v6540 = vpop.f32.mrf.mxu0
        %v6541 = vadd.f32 %v6356, %v6540
        %6542 = vmatmul.bf16.gmra.mxu0 %v6320
        %v6543 = vpop.f32.mrf.mxu0
        %v6544 = vadd.f32 %v6356, %v6543
        %v6545 = vpop.f32.mrf.mxu0
        %v6546 = vadd.f32 %v6356, %v6545
        %6547 = vmatmul.bf16.gmra.mxu0 %v6321
        %v6548 = vpop.f32.mrf.mxu0
        %v6549 = vadd.f32 %v6356, %v6548
        %v6550 = vpop.f32.mrf.mxu0
        %v6551 = vadd.f32 %v6356, %v6550
        %6552 = vdwg.mxu0
        %6553 = vmatpush.bf16.msra.mxu0 %v6489
        %6554 = vmatpush.bf16.msra.mxu0 %v6485
        %6555 = vmatpush.bf16.msra.mxu0 %v6481
        %6556 = vmatpush.bf16.msra.mxu0 %v6477
        %6557 = vmatpush.bf16.msra.mxu0 %v6473
        %6558 = vmatpush.bf16.msra.mxu0 %v6469
        %6559 = vmatpush.bf16.msra.mxu0 %v6465
        %6560 = vmatpush.bf16.msra.mxu0 %v6461
        %6561 = vmatmul.bf16.gmra.mxu0 %v6318
        %v6562 = vpop.f32.mrf.mxu0
        %v6563 = vadd.f32 %v6357, %v6562
        %v6564 = vpop.f32.mrf.mxu0
        %v6565 = vadd.f32 %v6357, %v6564
        %6566 = vmatmul.bf16.gmra.mxu0 %v6319
        %v6567 = vpop.f32.mrf.mxu0
        %v6568 = vadd.f32 %v6357, %v6567
        %v6569 = vpop.f32.mrf.mxu0
        %v6570 = vadd.f32 %v6357, %v6569
        %6571 = vmatmul.bf16.gmra.mxu0 %v6320
        %v6572 = vpop.f32.mrf.mxu0
        %v6573 = vadd.f32 %v6357, %v6572
        %v6574 = vpop.f32.mrf.mxu0
        %v6575 = vadd.f32 %v6357, %v6574
        %6576 = vmatmul.bf16.gmra.mxu0 %v6321
        %v6577 = vpop.f32.mrf.mxu0
        %v6578 = vadd.f32 %v6357, %v6577
        %v6579 = vpop.f32.mrf.mxu0
        %v6580 = vadd.f32 %v6357, %v6579
        %6581 = vdwg.mxu0
        %6582 = vmatpush.bf16.msra.mxu0 %v6490
        %6583 = vmatpush.bf16.msra.mxu0 %v6486
        %6584 = vmatpush.bf16.msra.mxu0 %v6482
        %6585 = vmatpush.bf16.msra.mxu0 %v6478
        %6586 = vmatpush.bf16.msra.mxu0 %v6474
        %6587 = vmatpush.bf16.msra.mxu0 %v6470
        %6588 = vmatpush.bf16.msra.mxu0 %v6466
        %6589 = vmatpush.bf16.msra.mxu0 %v6462
        %6590 = vmatmul.bf16.gmra.mxu0 %v6318
        %v6591 = vpop.f32.mrf.mxu0
        %v6592 = vadd.f32 %v6358, %v6591
        %v6593 = vpop.f32.mrf.mxu0
        %v6594 = vadd.f32 %v6358, %v6593
        %6595 = vmatmul.bf16.gmra.mxu0 %v6319
        %v6596 = vpop.f32.mrf.mxu0
        %v6597 = vadd.f32 %v6358, %v6596
        %v6598 = vpop.f32.mrf.mxu0
        %v6599 = vadd.f32 %v6358, %v6598
        %6600 = vmatmul.bf16.gmra.mxu0 %v6320
        %v6601 = vpop.f32.mrf.mxu0
        %v6602 = vadd.f32 %v6358, %v6601
        %v6603 = vpop.f32.mrf.mxu0
        %v6604 = vadd.f32 %v6358, %v6603
        %6605 = vmatmul.bf16.gmra.mxu0 %v6321
        %v6606 = vpop.f32.mrf.mxu0
        %v6607 = vadd.f32 %v6358, %v6606
        %v6608 = vpop.f32.mrf.mxu0
        %v6609 = vadd.f32 %v6358, %v6608
        %6610 = vdwg.mxu0
        %6611 = vmatpush.bf16.msra.mxu0 %v6491
        %6612 = vmatpush.bf16.msra.mxu0 %v6487
        %6613 = vmatpush.bf16.msra.mxu0 %v6483
        %6614 = vmatpush.bf16.msra.mxu0 %v6479
        %6615 = vmatpush.bf16.msra.mxu0 %v6475
        %6616 = vmatpush.bf16.msra.mxu0 %v6471
        %6617 = vmatpush.bf16.msra.mxu0 %v6467
        %6618 = vmatpush.bf16.msra.mxu0 %v6463
        %6619 = vmatmul.bf16.gmra.mxu0 %v6318
        %v6620 = vpop.f32.mrf.mxu0
        %v6621 = vadd.f32 %v6359, %v6620
        %v6622 = vpop.f32.mrf.mxu0
        %v6623 = vadd.f32 %v6359, %v6622
        %6624 = vmatmul.bf16.gmra.mxu0 %v6319
        %v6625 = vpop.f32.mrf.mxu0
        %v6626 = vadd.f32 %v6359, %v6625
        %v6627 = vpop.f32.mrf.mxu0
        %v6628 = vadd.f32 %v6359, %v6627
        %6629 = vmatmul.bf16.gmra.mxu0 %v6320
        %v6630 = vpop.f32.mrf.mxu0
        %v6631 = vadd.f32 %v6359, %v6630
        %v6632 = vpop.f32.mrf.mxu0
        %v6633 = vadd.f32 %v6359, %v6632
        %6634 = vmatmul.bf16.gmra.mxu0 %v6321
        %v6635 = vpop.f32.mrf.mxu0
        %v6636 = vadd.f32 %v6359, %v6635
        %v6637 = vpop.f32.mrf.mxu0
        %v6638 = vadd.f32 %v6359, %v6637
        %6639 = vdwg.mxu0
        %v6640 = vmax.f32 %v6534, 0.0
        %v6641 = vmax.f32 %v6563, 0.0
        %v6642 = vmax.f32 %v6592, 0.0
        %v6643 = vmax.f32 %v6621, 0.0
        %v6644 = vmax.f32 %v6536, 0.0
        %v6645 = vmax.f32 %v6565, 0.0
        %v6646 = vmax.f32 %v6594, 0.0
        %v6647 = vmax.f32 %v6623, 0.0
        %v6648 = vmax.f32 %v6539, 0.0
        %v6649 = vmax.f32 %v6568, 0.0
        %v6650 = vmax.f32 %v6597, 0.0
        %v6651 = vmax.f32 %v6626, 0.0
        %v6652 = vmax.f32 %v6541, 0.0
        %v6653 = vmax.f32 %v6570, 0.0
        %v6654 = vmax.f32 %v6599, 0.0
        %v6655 = vmax.f32 %v6628, 0.0
        %v6656 = vmax.f32 %v6544, 0.0
        %v6657 = vmax.f32 %v6573, 0.0
        %v6658 = vmax.f32 %v6602, 0.0
        %v6659 = vmax.f32 %v6631, 0.0
        %v6660 = vmax.f32 %v6546, 0.0
        %v6661 = vmax.f32 %v6575, 0.0
        %v6662 = vmax.f32 %v6604, 0.0
        %v6663 = vmax.f32 %v6633, 0.0
        %v6664 = vmax.f32 %v6549, 0.0
        %v6665 = vmax.f32 %v6578, 0.0
        %v6666 = vmax.f32 %v6607, 0.0
        %v6667 = vmax.f32 %v6636, 0.0
        %v6668 = vmax.f32 %v6551, 0.0
        %v6669 = vmax.f32 %v6580, 0.0
        %v6670 = vmax.f32 %v6609, 0.0
        %v6671 = vmax.f32 %v6638, 0.0
        %v6672 = vpack.c.bf16 %v6644, %v6640
        %v6673 = vpack.c.bf16 %v6645, %v6641
        %v6674 = vpack.c.bf16 %v6646, %v6642
        %v6675 = vpack.c.bf16 %v6647, %v6643
        %v6676 = vpack.c.bf16 %v6652, %v6648
        %v6677 = vpack.c.bf16 %v6653, %v6649
        %v6678 = vpack.c.bf16 %v6654, %v6650
        %v6679 = vpack.c.bf16 %v6655, %v6651
        %v6680 = vpack.c.bf16 %v6660, %v6656
        %v6681 = vpack.c.bf16 %v6661, %v6657
        %v6682 = vpack.c.bf16 %v6662, %v6658
        %v6683 = vpack.c.bf16 %v6663, %v6659
        %v6684 = vpack.c.bf16 %v6668, %v6664
        %v6685 = vpack.c.bf16 %v6669, %v6665
        %v6686 = vpack.c.bf16 %v6670, %v6666
        %v6687 = vpack.c.bf16 %v6671, %v6667
        %v6688 = vld [vmem:[#allocation13] sm:$0xf]
        %v6689 = vld [vmem:[#allocation13 + $0x4] sm:$0xf]
        %v6690 = vld [vmem:[#allocation13 + $0x8] sm:$0xf]
        %v6691 = vld [vmem:[#allocation13 + $0xc] sm:$0xf]
        %v6692 = vld [vmem:[#allocation13 + $0x10] sm:$0xf]
        %v6693 = vld [vmem:[#allocation13 + $0x14] sm:$0xf]
        %v6694 = vld [vmem:[#allocation13 + $0x18] sm:$0xf]
        %v6695 = vld [vmem:[#allocation13 + $0x1c] sm:$0xf]
        %v6696 = vld [vmem:[#allocation13 + $0x20] sm:$0xf]
        %v6697 = vld [vmem:[#allocation13 + $0x24] sm:$0xf]
        %v6698 = vld [vmem:[#allocation13 + $0x28] sm:$0xf]
        %v6699 = vld [vmem:[#allocation13 + $0x2c] sm:$0xf]
        %v6700 = vld [vmem:[#allocation13 + $0x30] sm:$0xf]
        %v6701 = vld [vmem:[#allocation13 + $0x34] sm:$0xf]
        %v6702 = vld [vmem:[#allocation13 + $0x38] sm:$0xf]
        %v6703 = vld [vmem:[#allocation13 + $0x3c] sm:$0xf]
        %v6704 = vld [vmem:[#allocation13 + $0x40] sm:$0xf]
        %v6705 = vld [vmem:[#allocation13 + $0x44] sm:$0xf]
        %v6706 = vld [vmem:[#allocation13 + $0x48] sm:$0xf]
        %v6707 = vld [vmem:[#allocation13 + $0x4c] sm:$0xf]
        %v6708 = vld [vmem:[#allocation13 + $0x50] sm:$0xf]
        %v6709 = vld [vmem:[#allocation13 + $0x54] sm:$0xf]
        %v6710 = vld [vmem:[#allocation13 + $0x58] sm:$0xf]
        %v6711 = vld [vmem:[#allocation13 + $0x5c] sm:$0xf]
        %v6712 = vld [vmem:[#allocation13 + $0x60] sm:$0xf]
        %v6713 = vld [vmem:[#allocation13 + $0x64] sm:$0xf]
        %v6714 = vld [vmem:[#allocation13 + $0x68] sm:$0xf]
        %v6715 = vld [vmem:[#allocation13 + $0x6c] sm:$0xf]
        %v6716 = vld [vmem:[#allocation13 + $0x70] sm:$0xf]
        %v6717 = vld [vmem:[#allocation13 + $0x74] sm:$0xf]
        %v6718 = vld [vmem:[#allocation13 + $0x78] sm:$0xf]
        %v6719 = vld [vmem:[#allocation13 + $0x7c] sm:$0xf]
        %v6720 = vld [vmem:[#allocation13 + $0x80] sm:$0xf]
        %v6721 = vld [vmem:[#allocation13 + $0x84] sm:$0xf]
        %v6722 = vld [vmem:[#allocation13 + $0x88] sm:$0xf]
        %v6723 = vld [vmem:[#allocation13 + $0x8c] sm:$0xf]
        %v6724 = vld [vmem:[#allocation13 + $0x90] sm:$0xf]
        %v6725 = vld [vmem:[#allocation13 + $0x94] sm:$0xf]
        %v6726 = vld [vmem:[#allocation13 + $0x98] sm:$0xf]
        %v6727 = vld [vmem:[#allocation13 + $0x9c] sm:$0xf]
        %v6728 = vld [vmem:[#allocation13 + $0xa0] sm:$0xf]
        %v6729 = vld [vmem:[#allocation13 + $0xa4] sm:$0xf]
        %v6730 = vld [vmem:[#allocation13 + $0xa8] sm:$0xf]
        %v6731 = vld [vmem:[#allocation13 + $0xac] sm:$0xf]
        %v6732 = vld [vmem:[#allocation13 + $0xb0] sm:$0xf]
        %v6733 = vld [vmem:[#allocation13 + $0xb4] sm:$0xf]
        %v6734 = vld [vmem:[#allocation13 + $0xb8] sm:$0xf]
        %v6735 = vld [vmem:[#allocation13 + $0xbc] sm:$0xf]
        %v6736 = vld [vmem:[#allocation13 + $0xc0] sm:$0xf]
        %v6737 = vld [vmem:[#allocation13 + $0xc4] sm:$0xf]
        %v6738 = vld [vmem:[#allocation13 + $0xc8] sm:$0xf]
        %v6739 = vld [vmem:[#allocation13 + $0xcc] sm:$0xf]
        %v6740 = vld [vmem:[#allocation13 + $0xd0] sm:$0xf]
        %v6741 = vld [vmem:[#allocation13 + $0xd4] sm:$0xf]
        %v6742 = vld [vmem:[#allocation13 + $0xd8] sm:$0xf]
        %v6743 = vld [vmem:[#allocation13 + $0xdc] sm:$0xf]
        %v6744 = vld [vmem:[#allocation13 + $0xe0] sm:$0xf]
        %v6745 = vld [vmem:[#allocation13 + $0xe4] sm:$0xf]
        %v6746 = vld [vmem:[#allocation13 + $0xe8] sm:$0xf]
        %v6747 = vld [vmem:[#allocation13 + $0xec] sm:$0xf]
        %v6748 = vld [vmem:[#allocation13 + $0xf0] sm:$0xf]
        %v6749 = vld [vmem:[#allocation13 + $0xf4] sm:$0xf]
        %v6750 = vld [vmem:[#allocation13 + $0xf8] sm:$0xf]
        %v6751 = vld [vmem:[#allocation13 + $0xfc] sm:$0xf]
        %v6752 = vld [vmem:[%s11] sm:$0x1]
        %v6754 = vperm.slane %v6752, 0
        %v6820 = vunpack.c.l.b16 %v6688
        %v6821 = vunpack.c.l.b16 %v6689
        %v6822 = vunpack.c.l.b16 %v6690
        %v6823 = vunpack.c.l.b16 %v6691
        %v6824 = vunpack.c.l.b16 %v6692
        %v6825 = vunpack.c.l.b16 %v6693
        %v6826 = vunpack.c.l.b16 %v6694
        %v6827 = vunpack.c.l.b16 %v6695
        %v6828 = vunpack.c.l.b16 %v6696
        %v6829 = vunpack.c.l.b16 %v6697
        %v6830 = vunpack.c.l.b16 %v6698
        %v6831 = vunpack.c.l.b16 %v6699
        %v6832 = vunpack.c.l.b16 %v6700
        %v6833 = vunpack.c.l.b16 %v6701
        %v6834 = vunpack.c.l.b16 %v6702
        %v6835 = vunpack.c.l.b16 %v6703
        %v6836 = vunpack.c.l.b16 %v6704
        %v6837 = vunpack.c.l.b16 %v6705
        %v6838 = vunpack.c.l.b16 %v6706
        %v6839 = vunpack.c.l.b16 %v6707
        %v6840 = vunpack.c.l.b16 %v6708
        %v6841 = vunpack.c.l.b16 %v6709
        %v6842 = vunpack.c.l.b16 %v6710
        %v6843 = vunpack.c.l.b16 %v6711
        %v6844 = vunpack.c.l.b16 %v6712
        %v6845 = vunpack.c.l.b16 %v6713
        %v6846 = vunpack.c.l.b16 %v6714
        %v6847 = vunpack.c.l.b16 %v6715
        %v6848 = vunpack.c.l.b16 %v6716
        %v6849 = vunpack.c.l.b16 %v6717
        %v6850 = vunpack.c.l.b16 %v6718
        %v6851 = vunpack.c.l.b16 %v6719
        %v6852 = vunpack.c.l.b16 %v6720
        %v6853 = vunpack.c.l.b16 %v6721
        %v6854 = vunpack.c.l.b16 %v6722
        %v6855 = vunpack.c.l.b16 %v6723
        %v6856 = vunpack.c.l.b16 %v6724
        %v6857 = vunpack.c.l.b16 %v6725
        %v6858 = vunpack.c.l.b16 %v6726
        %v6859 = vunpack.c.l.b16 %v6727
        %v6860 = vunpack.c.l.b16 %v6728
        %v6861 = vunpack.c.l.b16 %v6729
        %v6862 = vunpack.c.l.b16 %v6730
        %v6863 = vunpack.c.l.b16 %v6731
        %v6864 = vunpack.c.l.b16 %v6732
        %v6865 = vunpack.c.l.b16 %v6733
        %v6866 = vunpack.c.l.b16 %v6734
        %v6867 = vunpack.c.l.b16 %v6735
        %v6868 = vunpack.c.l.b16 %v6736
        %v6869 = vunpack.c.l.b16 %v6737
        %v6870 = vunpack.c.l.b16 %v6738
        %v6871 = vunpack.c.l.b16 %v6739
        %v6872 = vunpack.c.l.b16 %v6740
        %v6873 = vunpack.c.l.b16 %v6741
        %v6874 = vunpack.c.l.b16 %v6742
        %v6875 = vunpack.c.l.b16 %v6743
        %v6876 = vunpack.c.l.b16 %v6744
        %v6877 = vunpack.c.l.b16 %v6745
        %v6878 = vunpack.c.l.b16 %v6746
        %v6879 = vunpack.c.l.b16 %v6747
        %v6880 = vunpack.c.l.b16 %v6748
        %v6881 = vunpack.c.l.b16 %v6749
        %v6882 = vunpack.c.l.b16 %v6750
        %v6883 = vunpack.c.l.b16 %v6751
        %v6884 = vpack.c.b16 %v6821, %v6820
        %v6885 = vpack.c.b16 %v6823, %v6822
        %v6886 = vpack.c.b16 %v6825, %v6824
        %v6887 = vpack.c.b16 %v6827, %v6826
        %v6888 = vpack.c.b16 %v6829, %v6828
        %v6889 = vpack.c.b16 %v6831, %v6830
        %v6890 = vpack.c.b16 %v6833, %v6832
        %v6891 = vpack.c.b16 %v6835, %v6834
        %v6892 = vpack.c.b16 %v6837, %v6836
        %v6893 = vpack.c.b16 %v6839, %v6838
        %v6894 = vpack.c.b16 %v6841, %v6840
        %v6895 = vpack.c.b16 %v6843, %v6842
        %v6896 = vpack.c.b16 %v6845, %v6844
        %v6897 = vpack.c.b16 %v6847, %v6846
        %v6898 = vpack.c.b16 %v6849, %v6848
        %v6899 = vpack.c.b16 %v6851, %v6850
        %v6900 = vpack.c.b16 %v6853, %v6852
        %v6901 = vpack.c.b16 %v6855, %v6854
        %v6902 = vpack.c.b16 %v6857, %v6856
        %v6903 = vpack.c.b16 %v6859, %v6858
        %v6904 = vpack.c.b16 %v6861, %v6860
        %v6905 = vpack.c.b16 %v6863, %v6862
        %v6906 = vpack.c.b16 %v6865, %v6864
        %v6907 = vpack.c.b16 %v6867, %v6866
        %v6908 = vpack.c.b16 %v6869, %v6868
        %v6909 = vpack.c.b16 %v6871, %v6870
        %v6910 = vpack.c.b16 %v6873, %v6872
        %v6911 = vpack.c.b16 %v6875, %v6874
        %v6912 = vpack.c.b16 %v6877, %v6876
        %v6913 = vpack.c.b16 %v6879, %v6878
        %v6914 = vpack.c.b16 %v6881, %v6880
        %v6915 = vpack.c.b16 %v6883, %v6882
        %6948 = vmatpush.bf16.msra.mxu0 %v6891
        %6949 = vmatpush.bf16.msra.mxu0 %v6890
        %6950 = vmatpush.bf16.msra.mxu0 %v6889
        %6951 = vmatpush.bf16.msra.mxu0 %v6888
        %6952 = vmatpush.bf16.msra.mxu0 %v6887
        %6953 = vmatpush.bf16.msra.mxu0 %v6886
        %6954 = vmatpush.bf16.msra.mxu0 %v6885
        %6955 = vmatpush.bf16.msra.mxu0 %v6884
        %6956 = vmatmul.bf16.gmra.mxu0 %v6672
        %v6957 = vpop.f32.mrf.mxu0
        %v6958 = vadd.f32 %v6754, %v6957
        %v6959 = vpop.f32.mrf.mxu0
        %v6960 = vadd.f32 %v6754, %v6959
        %6961 = vmatmul.bf16.gmra.mxu0 %v6676
        %v6962 = vpop.f32.mrf.mxu0
        %v6963 = vadd.f32 %v6754, %v6962
        %v6964 = vpop.f32.mrf.mxu0
        %v6965 = vadd.f32 %v6754, %v6964
        %6966 = vmatmul.bf16.gmra.mxu0 %v6680
        %v6967 = vpop.f32.mrf.mxu0
        %v6968 = vadd.f32 %v6754, %v6967
        %v6969 = vpop.f32.mrf.mxu0
        %v6970 = vadd.f32 %v6754, %v6969
        %6971 = vmatmul.bf16.gmra.mxu0 %v6684
        %v6972 = vpop.f32.mrf.mxu0
        %v6973 = vadd.f32 %v6754, %v6972
        %v6974 = vpop.f32.mrf.mxu0
        %v6975 = vadd.f32 %v6754, %v6974
        %6976 = vdwg.mxu0
        %6977 = vmatpush.bf16.msra.mxu0 %v6899
        %6978 = vmatpush.bf16.msra.mxu0 %v6898
        %6979 = vmatpush.bf16.msra.mxu0 %v6897
        %6980 = vmatpush.bf16.msra.mxu0 %v6896
        %6981 = vmatpush.bf16.msra.mxu0 %v6895
        %6982 = vmatpush.bf16.msra.mxu0 %v6894
        %6983 = vmatpush.bf16.msra.mxu0 %v6893
        %6984 = vmatpush.bf16.msra.mxu0 %v6892
        %6985 = vmatmul.bf16.gmra.mxu0 %v6673
        %v6986 = vpop.f32.mrf.mxu0
        %v6987 = vadd.f32 %v6958, %v6986
        %v6988 = vpop.f32.mrf.mxu0
        %v6989 = vadd.f32 %v6960, %v6988
        %6990 = vmatmul.bf16.gmra.mxu0 %v6677
        %v6991 = vpop.f32.mrf.mxu0
        %v6992 = vadd.f32 %v6963, %v6991
        %v6993 = vpop.f32.mrf.mxu0
        %v6994 = vadd.f32 %v6965, %v6993
        %6995 = vmatmul.bf16.gmra.mxu0 %v6681
        %v6996 = vpop.f32.mrf.mxu0
        %v6997 = vadd.f32 %v6968, %v6996
        %v6998 = vpop.f32.mrf.mxu0
        %v6999 = vadd.f32 %v6970, %v6998
        %7000 = vmatmul.bf16.gmra.mxu0 %v6685
        %v7001 = vpop.f32.mrf.mxu0
        %v7002 = vadd.f32 %v6973, %v7001
        %v7003 = vpop.f32.mrf.mxu0
        %v7004 = vadd.f32 %v6975, %v7003
        %7005 = vdwg.mxu0
        %7006 = vmatpush.bf16.msra.mxu0 %v6907
        %7007 = vmatpush.bf16.msra.mxu0 %v6906
        %7008 = vmatpush.bf16.msra.mxu0 %v6905
        %7009 = vmatpush.bf16.msra.mxu0 %v6904
        %7010 = vmatpush.bf16.msra.mxu0 %v6903
        %7011 = vmatpush.bf16.msra.mxu0 %v6902
        %7012 = vmatpush.bf16.msra.mxu0 %v6901
        %7013 = vmatpush.bf16.msra.mxu0 %v6900
        %7014 = vmatmul.bf16.gmra.mxu0 %v6674
        %v7015 = vpop.f32.mrf.mxu0
        %v7016 = vadd.f32 %v6987, %v7015
        %v7017 = vpop.f32.mrf.mxu0
        %v7018 = vadd.f32 %v6989, %v7017
        %7019 = vmatmul.bf16.gmra.mxu0 %v6678
        %v7020 = vpop.f32.mrf.mxu0
        %v7021 = vadd.f32 %v6992, %v7020
        %v7022 = vpop.f32.mrf.mxu0
        %v7023 = vadd.f32 %v6994, %v7022
        %7024 = vmatmul.bf16.gmra.mxu0 %v6682
        %v7025 = vpop.f32.mrf.mxu0
        %v7026 = vadd.f32 %v6997, %v7025
        %v7027 = vpop.f32.mrf.mxu0
        %v7028 = vadd.f32 %v6999, %v7027
        %7029 = vmatmul.bf16.gmra.mxu0 %v6686
        %v7030 = vpop.f32.mrf.mxu0
        %v7031 = vadd.f32 %v7002, %v7030
        %v7032 = vpop.f32.mrf.mxu0
        %v7033 = vadd.f32 %v7004, %v7032
        %7034 = vdwg.mxu0
        %7035 = vmatpush.bf16.msra.mxu0 %v6915
        %7036 = vmatpush.bf16.msra.mxu0 %v6914
        %7037 = vmatpush.bf16.msra.mxu0 %v6913
        %7038 = vmatpush.bf16.msra.mxu0 %v6912
        %7039 = vmatpush.bf16.msra.mxu0 %v6911
        %7040 = vmatpush.bf16.msra.mxu0 %v6910
        %7041 = vmatpush.bf16.msra.mxu0 %v6909
        %7042 = vmatpush.bf16.msra.mxu0 %v6908
        %7043 = vmatmul.bf16.gmra.mxu0 %v6675
        %v7044 = vpop.f32.mrf.mxu0
        %v7045 = vadd.f32 %v7016, %v7044
        %v7046 = vpop.f32.mrf.mxu0
        %v7047 = vadd.f32 %v7018, %v7046
        %7048 = vmatmul.bf16.gmra.mxu0 %v6679
        %v7049 = vpop.f32.mrf.mxu0
        %v7050 = vadd.f32 %v7021, %v7049
        %v7051 = vpop.f32.mrf.mxu0
        %v7052 = vadd.f32 %v7023, %v7051
        %7053 = vmatmul.bf16.gmra.mxu0 %v6683
        %v7054 = vpop.f32.mrf.mxu0
        %v7055 = vadd.f32 %v7026, %v7054
        %v7056 = vpop.f32.mrf.mxu0
        %v7057 = vadd.f32 %v7028, %v7056
        %7058 = vmatmul.bf16.gmra.mxu0 %v6687
        %v7059 = vpop.f32.mrf.mxu0
        %v7060 = vadd.f32 %v7031, %v7059
        %v7061 = vpop.f32.mrf.mxu0
        %v7062 = vadd.f32 %v7033, %v7061
        %7063 = vdwg.mxu0
        %v7064 = vadd.f32 %v6126, %v7045
        %v7065 = vadd.f32 %v6127, %v7047
        %v7066 = vadd.f32 %v6128, %v7050
        %v7067 = vadd.f32 %v6129, %v7052
        %v7068 = vadd.f32 %v6130, %v7055
        %v7069 = vadd.f32 %v6131, %v7057
        %v7070 = vadd.f32 %v6132, %v7060
        %v7071 = vadd.f32 %v6133, %v7062
        %7072 = vst [vmem:[%s528] sm:$0xff] %v7064
        %7073 = vst [vmem:[%s528 + $0x8] sm:$0xff] %v7065
        %7074 = vst [vmem:[%s528 + $0x10] sm:$0xff] %v7066
        %7075 = vst [vmem:[%s528 + $0x18] sm:$0xff] %v7067
        %7076 = vst [vmem:[%s528 + $0x20] sm:$0xff] %v7068
        %7077 = vst [vmem:[%s528 + $0x28] sm:$0xff] %v7069
        %7078 = vst [vmem:[%s528 + $0x30] sm:$0xff] %v7070
        %7079 = vst [vmem:[%s528 + $0x38] sm:$0xff] %v7071
        %s7080 = sand.u32 %s297, 1
        %s7081 = scalar_lea.sflag [#allocation4], %s7080
        %s7082 = sand.u32 %s297, 1
        %s7083 = smul.addr %s7082, 64
        %s7084 = scalar_lea.vmem [#allocation14], %s7083
        // Predicated region
        $region97: #{block_forward.1} parent=67 // pred_check
          %p7085 = pneg %p307
        $region98: #{block_forward.1} parent=67 // pred_check_branch
          %7087 = sbr.rel (%p7085) target = $region100
        $region99: #{block_forward.1} parent=67 // pred_region
          %s7088 = smul.u32 8, %s32
          %7090 = vsyncadd %s7081, 0
          %s7091 = smul.addr %s7088, 8
          %s7092 = scalar_lea.hbm %s12, %s7091
          %s7093 = sshll.u32 %s7084, 4
          %s7094 = int_to_ptr.vmem [resolvable:$true] %s7093
          %s7095 = sshll.u32 %s7092, 4
          %s7096 = int_to_ptr.hbm [resolvable:$true] %s7095
          %7101 = dma.vmem_to_hbm [thread:$0]  %s7094, 1024, %s7096, %s7081, 128, 128, 8
        $region100: #{block_forward.1} parent=67 // pred_fallthru
          _
      $region68: #{block_forward.1} parent=5 // pred_fallthru
        _
      %p7102 = scmp.le.s32.totalorder 2, %s27
      // Predicated region
      $region101: #{block_forward.1} parent=5 // pred_check
        %p7103 = pneg %p7102
      $region102: #{block_forward.1} parent=5 // pred_check_branch
        %7105 = sbr.rel (%p7103) target = $region104
      $region103: #{block_forward.1} parent=5 // pred_region
        %s7106 = ssub.s32 %s27, 2
        // Predicated region
        $region105: #{block_forward.1} parent=103 // pred_check
          %p7107 = pneg %p313
        $region106: #{block_forward.1} parent=103 // pred_check_branch
          %7109 = sbr.rel (%p7107) target = $region108
        $region107: #{block_forward.1} parent=103 // pred_region
          %s7110 = sand.u32 %s298, 1
          %s7111 = scalar_lea.sflag [#allocation4], %s7110
          %s7112 = sand.u32 %s298, 1
          %s7113 = smul.addr %s7112, 64
          %s7114 = scalar_lea.vmem [#allocation14], %s7113
          %7116 = dma.done %s7111, 1024
        $region108: #{block_forward.1} parent=103 // pred_fallthru
          _
      $region104: #{block_forward.1} parent=5 // pred_fallthru
        _
    $region6: #{block_forward.1} parent=1 // loop_footer
      %s31 = sadd.s32 1, %s27
    $region7: #{block_forward.1} parent=1 // loop_footer_branch
      %26 = sbr.rel target = $region3
    $region8: #{block_forward.1} parent=1 // loop_exit
      _
    %7117 = vsyncpa [#allocation3], 1
    %s7118 = scalar_lea.sflag [#allocation3], 1
    %7119 = vsyncpa %s7118, 1
    %7120 = vsyncpa [#allocation6], 1
    %7121 = vsyncpa [#allocation9], 1
    %7122 = vsyncpa [#allocation12], 1
    %7123 = vsyncpa [#allocation4], 1
    %s7124 = scalar_lea.sflag [#allocation4], 1
    %7125 = vsyncpa %s7124, 1

</llo_original>
